<compile_context>
chip_gen: v6e
topology: v6e:2x2x1
jax: 0.10.0
libtpu: 0.0.40
codegen_flags: <defaults>
</compile_context>

<pallas_src>
import functools

import jax
import jax.numpy as jnp
from jax.experimental import pallas as pl
from jax.experimental.pallas import tpu as pltpu


def _round_up(x, m):
    return (x + m - 1) // m * m


def _attention_kernel(hid_ref, enc_ref, wuh_ref, wue_ref, bu_ref, wv_ref,
                      out_ref, hid_e_ref, score_ref, *, s_valid, tanh_dtype):
    # hid_ref:   (TB, H)        decoder hidden, batch-major block
    # enc_ref:   (TS, TB, 2H)   encoder outputs, seq-major S-tile (no wrapper transpose)
    # wuh_ref:   (H, H)   bf16  U weight rows acting on `hidden`
    # wue_ref:   (2H, H)  bf16  U weight rows acting on encoder outputs
    # bu_ref:    (1, H)   f32   U bias
    # wv_ref:    (1, H)   f32   V weight (row vector), no bias
    # out_ref:   (TB, S_pad)    attention weights (resident across the S axis)
    # hid_e_ref: (TB, H)  f32   scratch: hidden @ Wu_hid + b (computed at s == 0)
    # score_ref: (TB, S_pad) f32 scratch: pre-softmax scores, filled tile by tile
    s = pl.program_id(1)
    n_s = pl.num_programs(1)
    TS, TB, two_h = enc_ref.shape
    S_pad = score_ref.shape[1]

    # hidden's share of the U pre-activation (+ bias): once per batch block,
    # broadcast over every src_len tile (replaces the repeat+concat in PyTorch).
    @pl.when(s == 0)
    def _():
        hid_e_ref[...] = (
            jnp.dot(hid_ref[...].astype(jnp.bfloat16), wuh_ref[...],
                    preferred_element_type=jnp.float32)
            + bu_ref[...])

    # Encoder share: one MXU matmul over all (s, b) rows of this S-tile.
    # TB is a multiple of the sublane tile so the collapse is layout-preserving.
    enc = enc_ref[...]
    if enc.dtype != jnp.bfloat16:
        enc = enc.astype(jnp.bfloat16)
    enc_e = jnp.dot(enc.reshape(TS * TB, two_h), wue_ref[...],
                    preferred_element_type=jnp.float32)
    enc_e = enc_e.reshape(TS, TB, -1)                                  # (TS, TB, H)

    # energy = tanh(U([hidden, enc]) + b) -- the concat is never materialized.
    # tanh (and the V multiply) run in bf16 on v6e/v7x, f32 on v5e.
    energy = jnp.tanh((enc_e + hid_e_ref[...][None, :, :]).astype(tanh_dtype))

    # V projection: VPU multiply + lane reduction (f32 accumulate), no N=1 matmul.
    score = jnp.sum((energy * wv_ref[...].astype(tanh_dtype)).astype(jnp.float32),
                    axis=-1)                                           # (TS, TB)

    # Stash this tile's scores (batch-major) in the resident scratch.
    col0 = pl.multiple_of(s * TS, TS)
    score_ref[:, pl.ds(col0, TS)] = score.T                            # (TB, TS)

    # Last S-tile: masked softmax over src_len, one lane-dense store.
    @pl.when(s == n_s - 1)
    def _():
        sc = score_ref[...]                                            # (TB, S_pad)
        if s_valid < S_pad:
            col = jax.lax.broadcasted_iota(jnp.int32, sc.shape, 1)
            sc = jnp.where(col < s_valid, sc, -jnp.inf)
        m = jnp.max(sc, axis=-1, keepdims=True)
        p = jnp.exp(sc - m)
        denom = jnp.sum(p, axis=-1, keepdims=True)
        # approx reciprocal (EUP slot); rows sum to 1 within ~1e-3 -- use
        # approx=False if the consumer needs exact normalization.
        out_ref[...] = (p * pl.reciprocal(denom, approx=True)).astype(out_ref.dtype)


def attention_forward(hidden, encoder_outs, W_u, b_u, W_v, *,
                      batch_block=128, seq_block=None, tanh_in_bf16=None):
    """hidden: (B, H); encoder_outs: (S, B, 2H) seq-major (f32 or bf16 -- pass bf16
    straight from the producer to halve the dominant HBM read);
    W_u: (H, 3H), b_u: (H,), W_v: (1, H)  (PyTorch nn.Linear parameter shapes).
    Returns attention weights (B, S) f32 (softmax over S)."""
    S, B, two_h = encoder_outs.shape
    H = hidden.shape[1]
    assert two_h == 2 * H
    assert W_u.shape == (H, 3 * H) and b_u.shape == (H,) and W_v.shape == (1, H)

    # ---- elementwise dtype: bf16 tanh/V-mul on v6e/v7x, f32 on v5e and older.
    if tanh_in_bf16 is None:
        try:
            kind = jax.devices()[0].device_kind.lower()
        except Exception:
            kind = ""
        tanh_in_bf16 = not any(v in kind for v in ("v2", "v3", "v4", "v5"))
    tanh_dtype = jnp.bfloat16 if tanh_in_bf16 else jnp.float32

    # ---- batch tile (sublane-dense; lane/sublane-dense score & output vregs).
    enc_itemsize = jnp.dtype(encoder_outs.dtype).itemsize
    sub = 8 * max(1, 4 // enc_itemsize)          # 8 for f32, 16 for bf16
    TB = max(sub, min(_round_up(int(batch_block), sub), _round_up(B, sub)))
    # v7x has 2 TensorCores: if the whole batch fits one block, split it so the
    # "parallel" batch axis has >= 2 grid steps.
    if _round_up(B, sub) // TB < 2 and TB > sub:
        TB = max(sub, _round_up(_round_up(B, sub) // 2, sub))

    # ---- src_len tile.  Pad S to a multiple of 128 -> lane-dense output stores.
    S_pad = _round_up(S, 128)

    VMEM_BUDGET = 24 * 1024 * 1024   # fits v7x's 32 MiB default scoped VMEM w/ headroom

    def _vmem_estimate(tb, ts):
        enc_tile = 2 * ts * tb * two_h * enc_itemsize          # double-buffered encoder
        temps = ts * tb * H * (4 + (2 if tanh_in_bf16 else 4))  # enc_e f32 + energy
        weights = 3 * H * H * 2                                 # Wu_hid + Wu_enc (bf16)
        resident = tb * S_pad * 4 * 3                           # score scratch + out bufs
        hid = tb * H * (4 * 2 + 4)                              # hidden bufs + hid_e scratch
        return enc_tile + temps + weights + resident + hid

    if seq_block is None:
        TS = None
        while True:
            for cand in range(S_pad, 127, -128):   # largest 128-multiple divisor first
                if S_pad % cand == 0 and _vmem_estimate(TB, cand) <= VMEM_BUDGET:
                    TS = cand
                    break
            if TS is not None or TB <= sub:
                break
            TB = max(sub, _round_up(TB // 2, sub))  # shrink batch block before giving up
        if TS is None:
            TS = 128                                # smallest lane-dense tile
    else:
        TS = int(seq_block)
        assert TS % 128 == 0 and S_pad % TS == 0
    n_s = S_pad // TS

    n_blk = pl.cdiv(B, TB)
    B_pad = n_blk * TB

    # ---- U weight split: torch.cat puts `hidden` first, so input columns [:H]
    # act on hidden and [H:] on encoder outputs.  Weights -> bf16 for the MXU
    # (f32 accumulation); activations are cast in-kernel (no extra HBM pass).
    # (v5e note: padding H / 2H up to multiples of 128 improves 128-wide MXU
    # utilization for small H; omitted here as a pure-perf weight-prep step.)
    Wu_t = W_u.T                                     # (3H, H)
    wu_hid = Wu_t[:H].astype(jnp.bfloat16)           # (H, H)
    wu_enc = Wu_t[H:].astype(jnp.bfloat16)           # (2H, H)
    bu = b_u.reshape(1, H).astype(jnp.float32)
    wv = W_v.reshape(1, H).astype(jnp.float32)

    # ---- padding.  Padded batch rows give a harmless uniform softmax (sliced
    # off); padded S columns are masked to -inf inside the kernel.
    if B_pad != B:
        hidden = jnp.pad(hidden, ((0, B_pad - B), (0, 0)))
        encoder_outs = jnp.pad(encoder_outs, ((0, 0), (0, B_pad - B), (0, 0)))
    if S_pad != S:
        encoder_outs = jnp.pad(encoder_outs, ((0, S_pad - S), (0, 0), (0, 0)))

    kernel = functools.partial(_attention_kernel, s_valid=S, tanh_dtype=tanh_dtype)

    def _call(single_buffer_weights):
        if single_buffer_weights:
            # Constant-index weights: single buffering saves VMEM (they never change).
            def wspec(shape):
                return pl.BlockSpec(shape, lambda i, s: (0, 0),
                                    pipeline_mode=pl.Buffered(1))
        else:
            def wspec(shape):
                return pl.BlockSpec(shape, lambda i, s: (0, 0))
        return pl.pallas_call(
            kernel,
            out_shape=jax.ShapeDtypeStruct((B_pad, S_pad), jnp.float32),
            grid_spec=pltpu.PrefetchScalarGridSpec(
                num_scalar_prefetch=0,
                grid=(n_blk, n_s),                                   # batch outer, S inner
                in_specs=[
                    pl.BlockSpec((TB, H), lambda i, s: (i, 0)),            # hidden
                    pl.BlockSpec((TS, TB, two_h), lambda i, s: (s, i, 0)),  # encoder (seq-major)
                    wspec((H, H)),           # Wu_hid
                    wspec((2 * H, H)),       # Wu_enc
                    wspec((1, H)),           # U bias
                    wspec((1, H)),           # V weight row
                ],
                out_specs=pl.BlockSpec((TB, S_pad), lambda i, s: (i, 0)),
                scratch_shapes=[
                    pltpu.VMEM((TB, H), jnp.float32),        # hidden @ Wu_hid + b
                    pltpu.VMEM((TB, S_pad), jnp.float32),    # resident scores
                ],
            ),
            compiler_params=pltpu.CompilerParams(
                dimension_semantics=("parallel", "arbitrary"),
                vmem_limit_bytes=48 * 1024 * 1024,
            ),
        )(hidden, encoder_outs, wu_hid, wu_enc, bu, wv)

    try:
        out = _call(True)
    except Exception:
        # Graceful fallback if this jax build rejects pipeline_mode=Buffered(1).
        out = _call(False)

    return out[:B, :S]                                               # (B, S)


def _reference(hidden, encoder_outs, W_u, b_u, W_v):
    """Pure-JAX f32 reference with the exact PyTorch dataflow."""
    S, B, _ = encoder_outs.shape
    H = hidden.shape[1]
    hidden_rep = jnp.broadcast_to(hidden[:, None, :], (B, S, H))
    enc = jnp.transpose(encoder_outs, (1, 0, 2))
    x = jnp.concatenate([hidden_rep, enc], axis=2)
    energy = jnp.tanh(jnp.einsum("bsd,hd->bsh", x, W_u) + b_u)
    score = jnp.einsum("bsh,h->bs", energy, W_v[0])
    return jax.nn.softmax(score, axis=1)


if __name__ == "__main__":
    B, S, H = 2, 8, 32

    key = jax.random.PRNGKey(0)
    k_hid, k_enc, k_wu, k_bu, k_wv = jax.random.split(key, 5)

    # Deterministic parameter init (nn.Linear(3H, H) and nn.Linear(H, 1, bias=False)).
    bound_u = 1.0 / jnp.sqrt(3.0 * H)
    W_u = jax.random.uniform(k_wu, (H, 3 * H), jnp.float32, -bound_u, bound_u)
    b_u = jax.random.uniform(k_bu, (H,), jnp.float32, -bound_u, bound_u)
    bound_v = 1.0 / jnp.sqrt(1.0 * H)
    W_v = jax.random.uniform(k_wv, (1, H), jnp.float32, -bound_v, bound_v)

    # Example inputs (f32, as in the PyTorch spec; bf16 encoder also accepted).
    hidden = jax.random.normal(k_hid, (B, H), jnp.float32)          # decoder hidden
    encoder_outs = jax.random.normal(k_enc, (S, B, 2 * H), jnp.float32)

    att_w = attention_forward(hidden, encoder_outs, W_u, b_u, W_v)
    att_w = jax.block_until_ready(att_w)

    ref = _reference(hidden, encoder_outs, W_u, b_u, W_v)
    assert att_w.shape == (B, S)
    # bf16 matmul operands (+ bf16 tanh on v6e/v7x) and approx reciprocal in the
    # kernel => relaxed tolerance against the pure-f32 reference.
    assert jnp.allclose(att_w, ref, atol=3e-2), float(jnp.max(jnp.abs(att_w - ref)))
    assert jnp.allclose(jnp.sum(att_w, axis=1), jnp.ones((B,)), atol=2e-2)

    print("KERNEL_OK")
</pallas_src>

<mosaic_0001>
module attributes {stable_mosaic.version = 11 : i64} {
  func.func @_attention_kernel(%arg0: i32, %arg1: i32, %arg2: memref<8x32xf32, #tpu.memory_space<vmem>>, %arg3: memref<128x8x64xf32, #tpu.memory_space<vmem>>, %arg4: memref<32x32xbf16, #tpu.memory_space<vmem>>, %arg5: memref<64x32xbf16, #tpu.memory_space<vmem>>, %arg6: memref<1x32xf32, #tpu.memory_space<vmem>>, %arg7: memref<1x32xf32, #tpu.memory_space<vmem>>, %arg8: memref<8x128xf32, #tpu.memory_space<vmem>>, %arg9: memref<8x32xf32, #tpu.memory_space<vmem>>, %arg10: memref<8x128xf32, #tpu.memory_space<vmem>>) attributes {dimension_semantics = [#tpu.dimension_semantics<parallel>, #tpu.dimension_semantics<arbitrary>], iteration_bounds = array<i64: 1, 1>, scalar_prefetch = 0 : i64, scratch_operands = 2 : i64, tpu.core_type = #tpu.core_type<tc>, window_params = [{transform_indices = @transform_0, window_bounds = array<i64: 8, 32>}, {transform_indices = @transform_1, window_bounds = array<i64: 128, 8, 64>}, {pipeline_mode = #tpu.pipeline_mode<synchronous>, transform_indices = @transform_2, window_bounds = array<i64: 32, 32>}, {pipeline_mode = #tpu.pipeline_mode<synchronous>, transform_indices = @transform_3, window_bounds = array<i64: 64, 32>}, {pipeline_mode = #tpu.pipeline_mode<synchronous>, transform_indices = @transform_4, window_bounds = array<i64: 1, 32>}, {pipeline_mode = #tpu.pipeline_mode<synchronous>, transform_indices = @transform_5, window_bounds = array<i64: 1, 32>}, {transform_indices = @transform_6, window_bounds = array<i64: 8, 128>}]} {
    %c0_i32 = arith.constant 0 : i32
    %0 = arith.cmpi eq, %arg1, %c0_i32 : i32
    %1 = arith.extui %0 : i1 to i32
    %c0_i32_0 = arith.constant 0 : i32
    %2 = arith.cmpi ne, %1, %c0_i32_0 : i32
    scf.if %2 {
      %c0_13 = arith.constant 0 : index
      %c0_14 = arith.constant 0 : index
      %30 = vector.load %arg2[%c0_13, %c0_14] : memref<8x32xf32, #tpu.memory_space<vmem>>, vector<8x32xf32>
      %31 = arith.truncf %30 : vector<8x32xf32> to vector<8x32xbf16>
      %c0_15 = arith.constant 0 : index
      %c0_16 = arith.constant 0 : index
      %32 = vector.load %arg4[%c0_15, %c0_16] : memref<32x32xbf16, #tpu.memory_space<vmem>>, vector<32x32xbf16>
      %cst_17 = arith.constant dense<0.000000e+00> : vector<8x32xf32>
      %33 = tpu.matmul %31, %32, %cst_17 {dimension_numbers = #tpu.dot_dimension_numbers<[1], [0], [0], [1], [0, 0, 1, 1], [], []>} : vector<8x32xbf16>, vector<32x32xbf16>, vector<8x32xf32> -> vector<8x32xf32>
      %c0_18 = arith.constant 0 : index
      %c0_19 = arith.constant 0 : index
      %34 = vector.load %arg6[%c0_18, %c0_19] : memref<1x32xf32, #tpu.memory_space<vmem>>, vector<1x32xf32>
      %35 = vector.broadcast %34 : vector<1x32xf32> to vector<8x32xf32>
      %36 = arith.addf %33, %35 : vector<8x32xf32>
      %c0_20 = arith.constant 0 : index
      %c0_21 = arith.constant 0 : index
      %37 = vector.load %arg9[%c0_20, %c0_21] : memref<8x32xf32, #tpu.memory_space<vmem>>, vector<8x32xf32>
      tpu.vector_store %arg9[%c0_20, %c0_21], %36 {strides = array<i32>} : memref<8x32xf32, #tpu.memory_space<vmem>>, vector<8x32xf32>,
    } else {
    }
    %c0 = arith.constant 0 : index
    %c0_1 = arith.constant 0 : index
    %c0_2 = arith.constant 0 : index
    %3 = vector.load %arg3[%c0, %c0_1, %c0_2] : memref<128x8x64xf32, #tpu.memory_space<vmem>>, vector<128x8x64xf32>
    %4 = arith.truncf %3 : vector<128x8x64xf32> to vector<128x8x64xbf16>
    %5 = vector.shape_cast %4 : vector<128x8x64xbf16> to vector<1024x64xbf16>
    %c0_3 = arith.constant 0 : index
    %c0_4 = arith.constant 0 : index
    %6 = vector.load %arg5[%c0_3, %c0_4] : memref<64x32xbf16, #tpu.memory_space<vmem>>, vector<64x32xbf16>
    %cst = arith.constant dense<0.000000e+00> : vector<1024x32xf32>
    %7 = tpu.matmul %5, %6, %cst {dimension_numbers = #tpu.dot_dimension_numbers<[1], [0], [0], [1], [0, 0, 1, 1], [], []>} : vector<1024x64xbf16>, vector<64x32xbf16>, vector<1024x32xf32> -> vector<1024x32xf32>
    %8 = vector.shape_cast %7 : vector<1024x32xf32> to vector<128x8x32xf32>
    %c0_5 = arith.constant 0 : index
    %c0_6 = arith.constant 0 : index
    %9 = vector.load %arg9[%c0_5, %c0_6] : memref<8x32xf32, #tpu.memory_space<vmem>>, vector<8x32xf32>
    %10 = vector.shape_cast %9 : vector<8x32xf32> to vector<1x8x32xf32>
    %11 = vector.broadcast %10 : vector<1x8x32xf32> to vector<128x8x32xf32>
    %12 = arith.addf %8, %11 : vector<128x8x32xf32>
    %13 = arith.truncf %12 : vector<128x8x32xf32> to vector<128x8x32xbf16>
    %14 = math.tanh %13 : vector<128x8x32xbf16>
    %c0_7 = arith.constant 0 : index
    %c0_8 = arith.constant 0 : index
    %15 = vector.load %arg7[%c0_7, %c0_8] : memref<1x32xf32, #tpu.memory_space<vmem>>, vector<1x32xf32>
    %16 = arith.truncf %15 : vector<1x32xf32> to vector<1x32xbf16>
    %17 = vector.shape_cast %16 : vector<1x32xbf16> to vector<1x1x32xbf16>
    %18 = vector.broadcast %17 : vector<1x1x32xbf16> to vector<128x8x32xbf16>
    %19 = arith.mulf %14, %18 : vector<128x8x32xbf16>
    %20 = arith.extf %19 : vector<128x8x32xbf16> to vector<128x8x32xf32>
    %cst_9 = arith.constant dense<0.000000e+00> : vector<128x8xf32>
    %21 = vector.multi_reduction <add>, %20, %cst_9 [2] : vector<128x8x32xf32> to vector<128x8xf32>
    %c128_i32 = arith.constant 128 : i32
    %22 = arith.muli %arg1, %c128_i32 : i32
    %23 = tpu.assume_multiple %22, 128 : i32
    %24 = tpu.transpose %21, [1, 0] : vector<128x8xf32> -> vector<8x128xf32>
    %c0_10 = arith.constant 0 : index
    %25 = arith.index_cast %23 : i32 to index
    %26 = vector.load %arg10[%c0_10, %25] : memref<8x128xf32, #tpu.memory_space<vmem>>, vector<8x128xf32>
    tpu.vector_store %arg10[%c0_10, %25], %24 {strides = array<i32>} : memref<8x128xf32, #tpu.memory_space<vmem>>, vector<8x128xf32>,
    %c0_i32_11 = arith.constant 0 : i32
    %27 = arith.cmpi eq, %arg1, %c0_i32_11 : i32
    %28 = arith.extui %27 : i1 to i32
    %c0_i32_12 = arith.constant 0 : i32
    %29 = arith.cmpi ne, %28, %c0_i32_12 : i32
    scf.if %29 {
      %c0_13 = arith.constant 0 : index
      %c0_14 = arith.constant 0 : index
      %30 = vector.load %arg10[%c0_13, %c0_14] : memref<8x128xf32, #tpu.memory_space<vmem>>, vector<8x128xf32>
      %31 = tpu.iota {dimensions = array<i32: 1>} : vector<8x128xi32>
      %c8_i32 = arith.constant 8 : i32
      %32 = vector.broadcast %c8_i32 : i32 to vector<8x128xi32>
      %33 = arith.cmpi slt, %31, %32 : vector<8x128xi32>
      %cst_15 = arith.constant 0xFF800000 : f32
      %34 = vector.broadcast %cst_15 : f32 to vector<8x128xf32>
      %35 = arith.select %33, %30, %34 : vector<8x128xi1>, vector<8x128xf32>
      %cst_16 = arith.constant dense<0xFF800000> : vector<8xf32>
      %36 = vector.multi_reduction <maximumf>, %35, %cst_16 [1] : vector<8x128xf32> to vector<8xf32>
      %37 = vector.shape_cast %36 : vector<8xf32> to vector<8x1xf32>
      %38 = vector.broadcast %37 : vector<8x1xf32> to vector<8x128xf32>
      %39 = arith.subf %35, %38 : vector<8x128xf32>
      %40 = math.exp %39 : vector<8x128xf32>
      %cst_17 = arith.constant dense<0.000000e+00> : vector<8xf32>
      %41 = vector.multi_reduction <add>, %40, %cst_17 [1] : vector<8x128xf32> to vector<8xf32>
      %42 = vector.shape_cast %41 : vector<8xf32> to vector<8x1xf32>
      %43 = tpu.reciprocal %42 {approx = true} : vector<8x1xf32> -> vector<8x1xf32>
      %44 = vector.broadcast %43 : vector<8x1xf32> to vector<8x128xf32>
      %45 = arith.mulf %40, %44 : vector<8x128xf32>
      %c0_18 = arith.constant 0 : index
      %c0_19 = arith.constant 0 : index
      %46 = vector.load %arg8[%c0_18, %c0_19] : memref<8x128xf32, #tpu.memory_space<vmem>>, vector<8x128xf32>
      tpu.vector_store %arg8[%c0_18, %c0_19], %45 {strides = array<i32>} : memref<8x128xf32, #tpu.memory_space<vmem>>, vector<8x128xf32>,
    } else {
    }
    return
  }
  func.func @transform_0(%arg0: i32, %arg1: i32) -> (i32, i32) {
    %c0_i32 = arith.constant 0 : i32
    %c0_i32_0 = arith.constant 0 : i32
    return %arg0, %c0_i32 : i32, i32
  }
  func.func @transform_1(%arg0: i32, %arg1: i32) -> (i32, i32, i32) {
    %c0_i32 = arith.constant 0 : i32
    %c0_i32_0 = arith.constant 0 : i32
    return %arg1, %arg0, %c0_i32 : i32, i32, i32
  }
  func.func @transform_2(%arg0: i32, %arg1: i32) -> (i32, i32) {
    %c0_i32 = arith.constant 0 : i32
    %c0_i32_0 = arith.constant 0 : i32
    %c0_i32_1 = arith.constant 0 : i32
    return %c0_i32, %c0_i32_0 : i32, i32
  }
  func.func @transform_3(%arg0: i32, %arg1: i32) -> (i32, i32) {
    %c0_i32 = arith.constant 0 : i32
    %c0_i32_0 = arith.constant 0 : i32
    %c0_i32_1 = arith.constant 0 : i32
    return %c0_i32, %c0_i32_0 : i32, i32
  }
  func.func @transform_4(%arg0: i32, %arg1: i32) -> (i32, i32) {
    %c0_i32 = arith.constant 0 : i32
    %c0_i32_0 = arith.constant 0 : i32
    %c0_i32_1 = arith.constant 0 : i32
    return %c0_i32, %c0_i32_0 : i32, i32
  }
  func.func @transform_5(%arg0: i32, %arg1: i32) -> (i32, i32) {
    %c0_i32 = arith.constant 0 : i32
    %c0_i32_0 = arith.constant 0 : i32
    %c0_i32_1 = arith.constant 0 : i32
    return %c0_i32, %c0_i32_0 : i32, i32
  }
  func.func @transform_6(%arg0: i32, %arg1: i32) -> (i32, i32) {
    %c0_i32 = arith.constant 0 : i32
    %c0_i32_0 = arith.constant 0 : i32
    return %arg0, %c0_i32 : i32, i32
  }
}

module attributes {stable_mosaic.version = 11 : i64} {
  func.func @_attention_kernel(%arg0: i32, %arg1: i32, %arg2: memref<8x32xf32, #tpu.memory_space<vmem>>, %arg3: memref<128x8x64xf32, #tpu.memory_space<vmem>>, %arg4: memref<32x32xbf16, #tpu.memory_space<vmem>>, %arg5: memref<64x32xbf16, #tpu.memory_space<vmem>>, %arg6: memref<1x32xf32, #tpu.memory_space<vmem>>, %arg7: memref<1x32xf32, #tpu.memory_space<vmem>>, %arg8: memref<8x128xf32, #tpu.memory_space<vmem>>, %arg9: memref<8x32xf32, #tpu.memory_space<vmem>>, %arg10: memref<8x128xf32, #tpu.memory_space<vmem>>) attributes {dimension_semantics = [#tpu.dimension_semantics<parallel>, #tpu.dimension_semantics<arbitrary>], iteration_bounds = array<i64: 1, 1>, scalar_prefetch = 0 : i64, scratch_operands = 2 : i64, tpu.core_type = #tpu.core_type<tc>, window_params = [{transform_indices = @transform_0, window_bounds = array<i64: 8, 32>}, {transform_indices = @transform_1, window_bounds = array<i64: 128, 8, 64>}, {pipeline_mode = #tpu.pipeline_mode<synchronous>, transform_indices = @transform_2, window_bounds = array<i64: 32, 32>}, {pipeline_mode = #tpu.pipeline_mode<synchronous>, transform_indices = @transform_3, window_bounds = array<i64: 64, 32>}, {pipeline_mode = #tpu.pipeline_mode<synchronous>, transform_indices = @transform_4, window_bounds = array<i64: 1, 32>}, {pipeline_mode = #tpu.pipeline_mode<synchronous>, transform_indices = @transform_5, window_bounds = array<i64: 1, 32>}, {transform_indices = @transform_6, window_bounds = array<i64: 8, 128>}]} {
    %c0_i32 = arith.constant 0 : i32
    %0 = arith.cmpi eq, %arg1, %c0_i32 : i32
    %1 = arith.extui %0 : i1 to i32
    %c0_i32_0 = arith.constant 0 : i32
    %2 = arith.cmpi ne, %1, %c0_i32_0 : i32
    scf.if %2 {
      %c0_13 = arith.constant 0 : index
      %c0_14 = arith.constant 0 : index
      %30 = vector.load %arg2[%c0_13, %c0_14] : memref<8x32xf32, #tpu.memory_space<vmem>>, vector<8x32xf32>
      %31 = arith.truncf %30 : vector<8x32xf32> to vector<8x32xbf16>
      %c0_15 = arith.constant 0 : index
      %c0_16 = arith.constant 0 : index
      %32 = vector.load %arg4[%c0_15, %c0_16] : memref<32x32xbf16, #tpu.memory_space<vmem>>, vector<32x32xbf16>
      %cst_17 = arith.constant dense<0.000000e+00> : vector<8x32xf32>
      %33 = tpu.matmul %31, %32, %cst_17 {dimension_numbers = #tpu.dot_dimension_numbers<[1], [0], [0], [1], [0, 0, 1, 1], [], []>} : vector<8x32xbf16>, vector<32x32xbf16>, vector<8x32xf32> -> vector<8x32xf32>
      %c0_18 = arith.constant 0 : index
      %c0_19 = arith.constant 0 : index
      %34 = vector.load %arg6[%c0_18, %c0_19] : memref<1x32xf32, #tpu.memory_space<vmem>>, vector<1x32xf32>
      %35 = vector.broadcast %34 : vector<1x32xf32> to vector<8x32xf32>
      %36 = arith.addf %33, %35 : vector<8x32xf32>
      %c0_20 = arith.constant 0 : index
      %c0_21 = arith.constant 0 : index
      %37 = vector.load %arg9[%c0_20, %c0_21] : memref<8x32xf32, #tpu.memory_space<vmem>>, vector<8x32xf32>
      tpu.vector_store %arg9[%c0_20, %c0_21], %36 {strides = array<i32>} : memref<8x32xf32, #tpu.memory_space<vmem>>, vector<8x32xf32>,
    } else {
    }
    %c0 = arith.constant 0 : index
    %c0_1 = arith.constant 0 : index
    %c0_2 = arith.constant 0 : index
    %3 = vector.load %arg3[%c0, %c0_1, %c0_2] : memref<128x8x64xf32, #tpu.memory_space<vmem>>, vector<128x8x64xf32>
    %4 = arith.truncf %3 : vector<128x8x64xf32> to vector<128x8x64xbf16>
    %5 = vector.shape_cast %4 : vector<128x8x64xbf16> to vector<1024x64xbf16>
    %c0_3 = arith.constant 0 : index
    %c0_4 = arith.constant 0 : index
    %6 = vector.load %arg5[%c0_3, %c0_4] : memref<64x32xbf16, #tpu.memory_space<vmem>>, vector<64x32xbf16>
    %cst = arith.constant dense<0.000000e+00> : vector<1024x32xf32>
    %7 = tpu.matmul %5, %6, %cst {dimension_numbers = #tpu.dot_dimension_numbers<[1], [0], [0], [1], [0, 0, 1, 1], [], []>} : vector<1024x64xbf16>, vector<64x32xbf16>, vector<1024x32xf32> -> vector<1024x32xf32>
    %8 = vector.shape_cast %7 : vector<1024x32xf32> to vector<128x8x32xf32>
    %c0_5 = arith.constant 0 : index
    %c0_6 = arith.constant 0 : index
    %9 = vector.load %arg9[%c0_5, %c0_6] : memref<8x32xf32, #tpu.memory_space<vmem>>, vector<8x32xf32>
    %10 = vector.shape_cast %9 : vector<8x32xf32> to vector<1x8x32xf32>
    %11 = vector.broadcast %10 : vector<1x8x32xf32> to vector<128x8x32xf32>
    %12 = arith.addf %8, %11 : vector<128x8x32xf32>
    %13 = arith.truncf %12 : vector<128x8x32xf32> to vector<128x8x32xbf16>
    %14 = math.tanh %13 : vector<128x8x32xbf16>
    %c0_7 = arith.constant 0 : index
    %c0_8 = arith.constant 0 : index
    %15 = vector.load %arg7[%c0_7, %c0_8] : memref<1x32xf32, #tpu.memory_space<vmem>>, vector<1x32xf32>
    %16 = arith.truncf %15 : vector<1x32xf32> to vector<1x32xbf16>
    %17 = vector.shape_cast %16 : vector<1x32xbf16> to vector<1x1x32xbf16>
    %18 = vector.broadcast %17 : vector<1x1x32xbf16> to vector<128x8x32xbf16>
    %19 = arith.mulf %14, %18 : vector<128x8x32xbf16>
    %20 = arith.extf %19 : vector<128x8x32xbf16> to vector<128x8x32xf32>
    %cst_9 = arith.constant dense<0.000000e+00> : vector<128x8xf32>
    %21 = vector.multi_reduction <add>, %20, %cst_9 [2] : vector<128x8x32xf32> to vector<128x8xf32>
    %c128_i32 = arith.constant 128 : i32
    %22 = arith.muli %arg1, %c128_i32 : i32
    %23 = tpu.assume_multiple %22, 128 : i32
    %24 = tpu.transpose %21, [1, 0] : vector<128x8xf32> -> vector<8x128xf32>
    %c0_10 = arith.constant 0 : index
    %25 = arith.index_cast %23 : i32 to index
    %26 = vector.load %arg10[%c0_10, %25] : memref<8x128xf32, #tpu.memory_space<vmem>>, vector<8x128xf32>
    tpu.vector_store %arg10[%c0_10, %25], %24 {strides = array<i32>} : memref<8x128xf32, #tpu.memory_space<vmem>>, vector<8x128xf32>,
    %c0_i32_11 = arith.constant 0 : i32
    %27 = arith.cmpi eq, %arg1, %c0_i32_11 : i32
    %28 = arith.extui %27 : i1 to i32
    %c0_i32_12 = arith.constant 0 : i32
    %29 = arith.cmpi ne, %28, %c0_i32_12 : i32
    scf.if %29 {
      %c0_13 = arith.constant 0 : index
      %c0_14 = arith.constant 0 : index
      %30 = vector.load %arg10[%c0_13, %c0_14] : memref<8x128xf32, #tpu.memory_space<vmem>>, vector<8x128xf32>
      %31 = tpu.iota {dimensions = array<i32: 1>} : vector<8x128xi32>
      %c8_i32 = arith.constant 8 : i32
      %32 = vector.broadcast %c8_i32 : i32 to vector<8x128xi32>
      %33 = arith.cmpi slt, %31, %32 : vector<8x128xi32>
      %cst_15 = arith.constant 0xFF800000 : f32
      %34 = vector.broadcast %cst_15 : f32 to vector<8x128xf32>
      %35 = arith.select %33, %30, %34 : vector<8x128xi1>, vector<8x128xf32>
      %cst_16 = arith.constant dense<0xFF800000> : vector<8xf32>
      %36 = vector.multi_reduction <maximumf>, %35, %cst_16 [1] : vector<8x128xf32> to vector<8xf32>
      %37 = vector.shape_cast %36 : vector<8xf32> to vector<8x1xf32>
      %38 = vector.broadcast %37 : vector<8x1xf32> to vector<8x128xf32>
      %39 = arith.subf %35, %38 : vector<8x128xf32>
      %40 = math.exp %39 : vector<8x128xf32>
      %cst_17 = arith.constant dense<0.000000e+00> : vector<8xf32>
      %41 = vector.multi_reduction <add>, %40, %cst_17 [1] : vector<8x128xf32> to vector<8xf32>
      %42 = vector.shape_cast %41 : vector<8xf32> to vector<8x1xf32>
      %43 = tpu.reciprocal %42 {approx = true} : vector<8x1xf32> -> vector<8x1xf32>
      %44 = vector.broadcast %43 : vector<8x1xf32> to vector<8x128xf32>
      %45 = arith.mulf %40, %44 : vector<8x128xf32>
      %c0_18 = arith.constant 0 : index
      %c0_19 = arith.constant 0 : index
      %46 = vector.load %arg8[%c0_18, %c0_19] : memref<8x128xf32, #tpu.memory_space<vmem>>, vector<8x128xf32>
      tpu.vector_store %arg8[%c0_18, %c0_19], %45 {strides = array<i32>} : memref<8x128xf32, #tpu.memory_space<vmem>>, vector<8x128xf32>,
    } else {
    }
    return
  }
  func.func @transform_0(%arg0: i32, %arg1: i32) -> (i32, i32) {
    %c0_i32 = arith.constant 0 : i32
    %c0_i32_0 = arith.constant 0 : i32
    return %arg0, %c0_i32 : i32, i32
  }
  func.func @transform_1(%arg0: i32, %arg1: i32) -> (i32, i32, i32) {
    %c0_i32 = arith.constant 0 : i32
    %c0_i32_0 = arith.constant 0 : i32
    return %arg1, %arg0, %c0_i32 : i32, i32, i32
  }
  func.func @transform_2(%arg0: i32, %arg1: i32) -> (i32, i32) {
    %c0_i32 = arith.constant 0 : i32
    %c0_i32_0 = arith.constant 0 : i32
    %c0_i32_1 = arith.constant 0 : i32
    return %c0_i32, %c0_i32_0 : i32, i32
  }
  func.func @transform_3(%arg0: i32, %arg1: i32) -> (i32, i32) {
    %c0_i32 = arith.constant 0 : i32
    %c0_i32_0 = arith.constant 0 : i32
    %c0_i32_1 = arith.constant 0 : i32
    return %c0_i32, %c0_i32_0 : i32, i32
  }
  func.func @transform_4(%arg0: i32, %arg1: i32) -> (i32, i32) {
    %c0_i32 = arith.constant 0 : i32
    %c0_i32_0 = arith.constant 0 : i32
    %c0_i32_1 = arith.constant 0 : i32
    return %c0_i32, %c0_i32_0 : i32, i32
  }
  func.func @transform_5(%arg0: i32, %arg1: i32) -> (i32, i32) {
    %c0_i32 = arith.constant 0 : i32
    %c0_i32_0 = arith.constant 0 : i32
    %c0_i32_1 = arith.constant 0 : i32
    return %c0_i32, %c0_i32_0 : i32, i32
  }
  func.func @transform_6(%arg0: i32, %arg1: i32) -> (i32, i32) {
    %c0_i32 = arith.constant 0 : i32
    %c0_i32_0 = arith.constant 0 : i32
    return %arg0, %c0_i32 : i32, i32
  }
}

</mosaic_0001>

<llo_original>
// kernel: tpu_custom_call.1
$region0: #{tpu_custom_call.1}
  #allocation0 [shape = 'u32[]', space=smem, size = 0x4, offset = 0x4, fixed_abs, tag = 'smem constant byte address 0x4 - core index']
  #allocation1 [shape = 'u32[144,128]{1,0:T(1,128)}', space=vmem, size = 0x12000, scoped, tag = 'internal scratch']
  #allocation2 [shape = 'f32[8,32]{1,0:T(8,128)}', space=vmem, size = 0x1000, scoped, tag = 'scratch operand']
  #allocation3 [shape = 'f32[8,128]{1,0:T(8,128)}', space=vmem, size = 0x1000, scoped, tag = 'scratch operand']
  %s0 = inlined_call_operand.vmem [shape: f32[8,32], index: 0, kind: input, shape index: {}]
  %s1 = inlined_call_operand.vmem [shape: f32[128,8,64], index: 1, kind: input, shape index: {}]
  %s2 = inlined_call_operand.vmem [shape: bf16[32,32], index: 2, kind: input, shape index: {}]
  %s3 = inlined_call_operand.vmem [shape: bf16[64,32], index: 3, kind: input, shape index: {}]
  %s4 = inlined_call_operand.vmem [shape: f32[1,32], index: 4, kind: input, shape index: {}]
  %s5 = inlined_call_operand.vmem [shape: f32[1,32], index: 5, kind: input, shape index: {}]
  %s6 = inlined_call_operand.hbm [shape: f32[8,128], index: 6, kind: output, shape index: {}]
  %s7 = sld [smem:[#allocation0]]
  $region42: #{tpu_custom_call.1} parent=0
    _
  %s9 = ssub.s32 1, %s7
  %s10 = scalar_select 0, %s9, %s7
  $region1: #{tpu_custom_call.1} parent=0
    #allocation4 [shape = 'u8[4096]{0}', space=vmem, size = 0x1000, scoped, tag = 'output window, operand 0, single buffered']
    #allocation5 [shape = 's32[1]{0}', space=sflag, size = 0x4, scoped, tag = 'scoped memory for tpu_custom_call.1']
    %11 = vsyncpa [#allocation5], 0
    // Predicated region
    $region2: #{tpu_custom_call.1} parent=1 // pred_check
      _
    $region3: #{tpu_custom_call.1} parent=1 // pred_check_branch
      %13 = sbr.rel (0) target = $region5
    $region4: #{tpu_custom_call.1} parent=1 // pred_region
      _
    $region5: #{tpu_custom_call.1} parent=1 // pred_fallthru
      _
    // Predicated region
    $region6: #{tpu_custom_call.1} parent=1 // pred_check
      _
    $region7: #{tpu_custom_call.1} parent=1 // pred_check_branch
      %15 = sbr.rel (0) target = $region9
    $region8: #{tpu_custom_call.1} parent=1 // pred_region
      _
    $region9: #{tpu_custom_call.1} parent=1 // pred_fallthru
      _
    // Predicated region
    $region10: #{tpu_custom_call.1} parent=1 // pred_check
      _
    $region11: #{tpu_custom_call.1} parent=1 // pred_check_branch
      %17 = sbr.rel (0) target = $region13
    $region12: #{tpu_custom_call.1} parent=1 // pred_region
      _
    $region13: #{tpu_custom_call.1} parent=1 // pred_fallthru
      _
    // Predicated region
    $region14: #{tpu_custom_call.1} parent=1 // pred_check
      _
    $region15: #{tpu_custom_call.1} parent=1 // pred_check_branch
      %19 = sbr.rel (0) target = $region17
    $region16: #{tpu_custom_call.1} parent=1 // pred_region
      _
    $region17: #{tpu_custom_call.1} parent=1 // pred_fallthru
      _
    // Predicated region
    $region18: #{tpu_custom_call.1} parent=1 // pred_check
      _
    $region19: #{tpu_custom_call.1} parent=1 // pred_check_branch
      %21 = sbr.rel (0) target = $region21
    $region20: #{tpu_custom_call.1} parent=1 // pred_region
      _
    $region21: #{tpu_custom_call.1} parent=1 // pred_fallthru
      _
    // Predicated region
    $region22: #{tpu_custom_call.1} parent=1 // pred_check
      _
    $region23: #{tpu_custom_call.1} parent=1 // pred_check_branch
      %23 = sbr.rel (0) target = $region25
    $region24: #{tpu_custom_call.1} parent=1 // pred_region
      _
    $region25: #{tpu_custom_call.1} parent=1 // pred_fallthru
      _
    %p25 = scmp.eq.s32.totalorder 0, 0
    // Predicated region
    $region26: #{tpu_custom_call.1} parent=1 // pred_check
      %p26 = pneg %p25
    $region27: #{tpu_custom_call.1} parent=1 // pred_check_branch
      %28 = sbr.rel (%p26) target = $region29
    $region28: #{tpu_custom_call.1} parent=1 // pred_region
      %v29 = vld [vmem:[%s0] sm:$0xff]
      %v30 = vpack.c.bf16 %v29, %v29
      %v31 = vld [vmem:[%s2] sm:$0xf]
      %v32 = vld [vmem:[%s2 + $0x4] sm:$0xf]
      %v33 = vld [vmem:[%s2 + $0x8] sm:$0xf]
      %v34 = vld [vmem:[%s2 + $0xc] sm:$0xf]
      %v35 = vld [vmem:[%s4] sm:$0x1]
      %v37 = vlaneseq
      %v38 = vshrl.u32 %v37, 7
      %v39 = vsub.s32 0, %v38
      %v40 = vrot.slane %v35, %v39
      %v46 = vunpack.c.l.b16 %v31
      %v47 = vunpack.c.l.b16 %v32
      %v48 = vunpack.c.l.b16 %v33
      %v49 = vunpack.c.l.b16 %v34
      %v50 = vpack.c.b16 %v47, %v46
      %v51 = vpack.c.b16 %v49, %v48
      %vm54 = vcmask 261120
      %v56 = vsel %vm54, %v30, 0
      %58 = vmatprep.subr.bf16.mxu0 0
      %59 = vmatpush1.bf16.msra.mxu0 0
      %60 = vmatprep.subr.bf16.mxu0 0
      %61 = vmatpush1.bf16.msra.mxu0 0
      %62 = vmatprep.subr.bf16.mxu0 0
      %63 = vmatpush1.bf16.msra.mxu0 0
      %64 = vmatprep.subr.bf16.mxu0 0
      %65 = vmatpush1.bf16.msra.mxu0 0
      %66 = vmatprep.subr.bf16.mxu0 0
      %67 = vmatpush1.bf16.msra.mxu0 0
      %68 = vmatprep.subr.bf16.mxu0 0
      %69 = vmatpush1.bf16.msra.mxu0 0
      %70 = vmatprep.subr.bf16.mxu0 0
      %71 = vmatpush1.bf16.msra.mxu0 %v51
      %72 = vmatprep.subr.bf16.mxu0 0
      %73 = vmatpush1.bf16.msra.mxu0 %v50
      %74 = vmatprep.subr.bf16.mxu0 0
      %75 = vmatpush2.bf16.msra.mxu0 0
      %76 = vmatprep.subr.bf16.mxu0 0
      %77 = vmatpush2.bf16.msra.mxu0 0
      %78 = vmatprep.subr.bf16.mxu0 0
      %79 = vmatpush2.bf16.msra.mxu0 0
      %80 = vmatprep.subr.bf16.mxu0 0
      %81 = vmatpush2.bf16.msra.mxu0 0
      %82 = vmatprep.subr.bf16.mxu0 0
      %83 = vmatpush2.bf16.msra.mxu0 0
      %84 = vmatprep.subr.bf16.mxu0 0
      %85 = vmatpush2.bf16.msra.mxu0 0
      %86 = vmatprep.subr.bf16.mxu0 0
      %87 = vmatpush2.bf16.msra.mxu0 0
      %88 = vmatprep.subr.bf16.mxu0 0
      %89 = vmatpush2.bf16.msra.mxu0 0
      %90 = vmatprep.mubr.bf16.mxu0 0
      %91 = vmatmul.mubr.bf16.gmra.mxu0 %v56
      %v92 = vpop.f32.mrf.mxu0
      %v93 = vadd.f32 %v40, %v92
      %v94 = vpop.f32.mrf.mxu0
      %v95 = vpop.f32.mrf.mxu0
      %v96 = vpop.f32.mrf.mxu0
      %97 = vdwg.mxu0
      %98 = vst.msk [vmem:[#allocation2] sm:$0xff] %vm54, %v93
    $region29: #{tpu_custom_call.1} parent=1 // pred_fallthru
      _
    %v99 = vld [vmem:[%s1] sm:$0xff]
    %v100 = vld [vmem:[%s1 + $0x8] sm:$0xff]
    %v101 = vld [vmem:[%s1 + $0x10] sm:$0xff]
    %v102 = vld [vmem:[%s1 + $0x18] sm:$0xff]
    %v103 = vld [vmem:[%s1 + $0x20] sm:$0xff]
    %v104 = vld [vmem:[%s1 + $0x28] sm:$0xff]
    %v105 = vld [vmem:[%s1 + $0x30] sm:$0xff]
    %v106 = vld [vmem:[%s1 + $0x38] sm:$0xff]
    %v107 = vld [vmem:[%s1 + $0x40] sm:$0xff]
    %v108 = vld [vmem:[%s1 + $0x48] sm:$0xff]
    %v109 = vld [vmem:[%s1 + $0x50] sm:$0xff]
    %v110 = vld [vmem:[%s1 + $0x58] sm:$0xff]
    %v111 = vld [vmem:[%s1 + $0x60] sm:$0xff]
    %v112 = vld [vmem:[%s1 + $0x68] sm:$0xff]
    %v113 = vld [vmem:[%s1 + $0x70] sm:$0xff]
    %v114 = vld [vmem:[%s1 + $0x78] sm:$0xff]
    %v115 = vld [vmem:[%s1 + $0x80] sm:$0xff]
    %v116 = vld [vmem:[%s1 + $0x88] sm:$0xff]
    %v117 = vld [vmem:[%s1 + $0x90] sm:$0xff]
    %v118 = vld [vmem:[%s1 + $0x98] sm:$0xff]
    %v119 = vld [vmem:[%s1 + $0xa0] sm:$0xff]
    %v120 = vld [vmem:[%s1 + $0xa8] sm:$0xff]
    %v121 = vld [vmem:[%s1 + $0xb0] sm:$0xff]
    %v122 = vld [vmem:[%s1 + $0xb8] sm:$0xff]
    %v123 = vld [vmem:[%s1 + $0xc0] sm:$0xff]
    %v124 = vld [vmem:[%s1 + $0xc8] sm:$0xff]
    %v125 = vld [vmem:[%s1 + $0xd0] sm:$0xff]
    %v126 = vld [vmem:[%s1 + $0xd8] sm:$0xff]
    %v127 = vld [vmem:[%s1 + $0xe0] sm:$0xff]
    %v128 = vld [vmem:[%s1 + $0xe8] sm:$0xff]
    %v129 = vld [vmem:[%s1 + $0xf0] sm:$0xff]
    %v130 = vld [vmem:[%s1 + $0xf8] sm:$0xff]
    %v131 = vld [vmem:[%s1 + $0x100] sm:$0xff]
    %v132 = vld [vmem:[%s1 + $0x108] sm:$0xff]
    %v133 = vld [vmem:[%s1 + $0x110] sm:$0xff]
    %v134 = vld [vmem:[%s1 + $0x118] sm:$0xff]
    %v135 = vld [vmem:[%s1 + $0x120] sm:$0xff]
    %v136 = vld [vmem:[%s1 + $0x128] sm:$0xff]
    %v137 = vld [vmem:[%s1 + $0x130] sm:$0xff]
    %v138 = vld [vmem:[%s1 + $0x138] sm:$0xff]
    %v139 = vld [vmem:[%s1 + $0x140] sm:$0xff]
    %v140 = vld [vmem:[%s1 + $0x148] sm:$0xff]
    %v141 = vld [vmem:[%s1 + $0x150] sm:$0xff]
    %v142 = vld [vmem:[%s1 + $0x158] sm:$0xff]
    %v143 = vld [vmem:[%s1 + $0x160] sm:$0xff]
    %v144 = vld [vmem:[%s1 + $0x168] sm:$0xff]
    %v145 = vld [vmem:[%s1 + $0x170] sm:$0xff]
    %v146 = vld [vmem:[%s1 + $0x178] sm:$0xff]
    %v147 = vld [vmem:[%s1 + $0x180] sm:$0xff]
    %v148 = vld [vmem:[%s1 + $0x188] sm:$0xff]
    %v149 = vld [vmem:[%s1 + $0x190] sm:$0xff]
    %v150 = vld [vmem:[%s1 + $0x198] sm:$0xff]
    %v151 = vld [vmem:[%s1 + $0x1a0] sm:$0xff]
    %v152 = vld [vmem:[%s1 + $0x1a8] sm:$0xff]
    %v153 = vld [vmem:[%s1 + $0x1b0] sm:$0xff]
    %v154 = vld [vmem:[%s1 + $0x1b8] sm:$0xff]
    %v155 = vld [vmem:[%s1 + $0x1c0] sm:$0xff]
    %v156 = vld [vmem:[%s1 + $0x1c8] sm:$0xff]
    %v157 = vld [vmem:[%s1 + $0x1d0] sm:$0xff]
    %v158 = vld [vmem:[%s1 + $0x1d8] sm:$0xff]
    %v159 = vld [vmem:[%s1 + $0x1e0] sm:$0xff]
    %v160 = vld [vmem:[%s1 + $0x1e8] sm:$0xff]
    %v161 = vld [vmem:[%s1 + $0x1f0] sm:$0xff]
    %v162 = vld [vmem:[%s1 + $0x1f8] sm:$0xff]
    %v163 = vld [vmem:[%s1 + $0x200] sm:$0xff]
    %v164 = vld [vmem:[%s1 + $0x208] sm:$0xff]
    %v165 = vld [vmem:[%s1 + $0x210] sm:$0xff]
    %v166 = vld [vmem:[%s1 + $0x218] sm:$0xff]
    %v167 = vld [vmem:[%s1 + $0x220] sm:$0xff]
    %v168 = vld [vmem:[%s1 + $0x228] sm:$0xff]
    %v169 = vld [vmem:[%s1 + $0x230] sm:$0xff]
    %v170 = vld [vmem:[%s1 + $0x238] sm:$0xff]
    %v171 = vld [vmem:[%s1 + $0x240] sm:$0xff]
    %v172 = vld [vmem:[%s1 + $0x248] sm:$0xff]
    %v173 = vld [vmem:[%s1 + $0x250] sm:$0xff]
    %v174 = vld [vmem:[%s1 + $0x258] sm:$0xff]
    %v175 = vld [vmem:[%s1 + $0x260] sm:$0xff]
    %v176 = vld [vmem:[%s1 + $0x268] sm:$0xff]
    %v177 = vld [vmem:[%s1 + $0x270] sm:$0xff]
    %v178 = vld [vmem:[%s1 + $0x278] sm:$0xff]
    %v179 = vld [vmem:[%s1 + $0x280] sm:$0xff]
    %v180 = vld [vmem:[%s1 + $0x288] sm:$0xff]
    %v181 = vld [vmem:[%s1 + $0x290] sm:$0xff]
    %v182 = vld [vmem:[%s1 + $0x298] sm:$0xff]
    %v183 = vld [vmem:[%s1 + $0x2a0] sm:$0xff]
    %v184 = vld [vmem:[%s1 + $0x2a8] sm:$0xff]
    %v185 = vld [vmem:[%s1 + $0x2b0] sm:$0xff]
    %v186 = vld [vmem:[%s1 + $0x2b8] sm:$0xff]
    %v187 = vld [vmem:[%s1 + $0x2c0] sm:$0xff]
    %v188 = vld [vmem:[%s1 + $0x2c8] sm:$0xff]
    %v189 = vld [vmem:[%s1 + $0x2d0] sm:$0xff]
    %v190 = vld [vmem:[%s1 + $0x2d8] sm:$0xff]
    %v191 = vld [vmem:[%s1 + $0x2e0] sm:$0xff]
    %v192 = vld [vmem:[%s1 + $0x2e8] sm:$0xff]
    %v193 = vld [vmem:[%s1 + $0x2f0] sm:$0xff]
    %v194 = vld [vmem:[%s1 + $0x2f8] sm:$0xff]
    %v195 = vld [vmem:[%s1 + $0x300] sm:$0xff]
    %v196 = vld [vmem:[%s1 + $0x308] sm:$0xff]
    %v197 = vld [vmem:[%s1 + $0x310] sm:$0xff]
    %v198 = vld [vmem:[%s1 + $0x318] sm:$0xff]
    %v199 = vld [vmem:[%s1 + $0x320] sm:$0xff]
    %v200 = vld [vmem:[%s1 + $0x328] sm:$0xff]
    %v201 = vld [vmem:[%s1 + $0x330] sm:$0xff]
    %v202 = vld [vmem:[%s1 + $0x338] sm:$0xff]
    %v203 = vld [vmem:[%s1 + $0x340] sm:$0xff]
    %v204 = vld [vmem:[%s1 + $0x348] sm:$0xff]
    %v205 = vld [vmem:[%s1 + $0x350] sm:$0xff]
    %v206 = vld [vmem:[%s1 + $0x358] sm:$0xff]
    %v207 = vld [vmem:[%s1 + $0x360] sm:$0xff]
    %v208 = vld [vmem:[%s1 + $0x368] sm:$0xff]
    %v209 = vld [vmem:[%s1 + $0x370] sm:$0xff]
    %v210 = vld [vmem:[%s1 + $0x378] sm:$0xff]
    %v211 = vld [vmem:[%s1 + $0x380] sm:$0xff]
    %v212 = vld [vmem:[%s1 + $0x388] sm:$0xff]
    %v213 = vld [vmem:[%s1 + $0x390] sm:$0xff]
    %v214 = vld [vmem:[%s1 + $0x398] sm:$0xff]
    %v215 = vld [vmem:[%s1 + $0x3a0] sm:$0xff]
    %v216 = vld [vmem:[%s1 + $0x3a8] sm:$0xff]
    %v217 = vld [vmem:[%s1 + $0x3b0] sm:$0xff]
    %v218 = vld [vmem:[%s1 + $0x3b8] sm:$0xff]
    %v219 = vld [vmem:[%s1 + $0x3c0] sm:$0xff]
    %v220 = vld [vmem:[%s1 + $0x3c8] sm:$0xff]
    %v221 = vld [vmem:[%s1 + $0x3d0] sm:$0xff]
    %v222 = vld [vmem:[%s1 + $0x3d8] sm:$0xff]
    %v223 = vld [vmem:[%s1 + $0x3e0] sm:$0xff]
    %v224 = vld [vmem:[%s1 + $0x3e8] sm:$0xff]
    %v225 = vld [vmem:[%s1 + $0x3f0] sm:$0xff]
    %v226 = vld [vmem:[%s1 + $0x3f8] sm:$0xff]
    %v227 = vpack.c.bf16 %v99, %v99
    %v228 = vpack.c.bf16 %v100, %v100
    %v229 = vpack.c.bf16 %v101, %v101
    %v230 = vpack.c.bf16 %v102, %v102
    %v231 = vpack.c.bf16 %v103, %v103
    %v232 = vpack.c.bf16 %v104, %v104
    %v233 = vpack.c.bf16 %v105, %v105
    %v234 = vpack.c.bf16 %v106, %v106
    %v235 = vpack.c.bf16 %v107, %v107
    %v236 = vpack.c.bf16 %v108, %v108
    %v237 = vpack.c.bf16 %v109, %v109
    %v238 = vpack.c.bf16 %v110, %v110
    %v239 = vpack.c.bf16 %v111, %v111
    %v240 = vpack.c.bf16 %v112, %v112
    %v241 = vpack.c.bf16 %v113, %v113
    %v242 = vpack.c.bf16 %v114, %v114
    %v243 = vpack.c.bf16 %v115, %v115
    %v244 = vpack.c.bf16 %v116, %v116
    %v245 = vpack.c.bf16 %v117, %v117
    %v246 = vpack.c.bf16 %v118, %v118
    %v247 = vpack.c.bf16 %v119, %v119
    %v248 = vpack.c.bf16 %v120, %v120
    %v249 = vpack.c.bf16 %v121, %v121
    %v250 = vpack.c.bf16 %v122, %v122
    %v251 = vpack.c.bf16 %v123, %v123
    %v252 = vpack.c.bf16 %v124, %v124
    %v253 = vpack.c.bf16 %v125, %v125
    %v254 = vpack.c.bf16 %v126, %v126
    %v255 = vpack.c.bf16 %v127, %v127
    %v256 = vpack.c.bf16 %v128, %v128
    %v257 = vpack.c.bf16 %v129, %v129
    %v258 = vpack.c.bf16 %v130, %v130
    %v259 = vpack.c.bf16 %v131, %v131
    %v260 = vpack.c.bf16 %v132, %v132
    %v261 = vpack.c.bf16 %v133, %v133
    %v262 = vpack.c.bf16 %v134, %v134
    %v263 = vpack.c.bf16 %v135, %v135
    %v264 = vpack.c.bf16 %v136, %v136
    %v265 = vpack.c.bf16 %v137, %v137
    %v266 = vpack.c.bf16 %v138, %v138
    %v267 = vpack.c.bf16 %v139, %v139
    %v268 = vpack.c.bf16 %v140, %v140
    %v269 = vpack.c.bf16 %v141, %v141
    %v270 = vpack.c.bf16 %v142, %v142
    %v271 = vpack.c.bf16 %v143, %v143
    %v272 = vpack.c.bf16 %v144, %v144
    %v273 = vpack.c.bf16 %v145, %v145
    %v274 = vpack.c.bf16 %v146, %v146
    %v275 = vpack.c.bf16 %v147, %v147
    %v276 = vpack.c.bf16 %v148, %v148
    %v277 = vpack.c.bf16 %v149, %v149
    %v278 = vpack.c.bf16 %v150, %v150
    %v279 = vpack.c.bf16 %v151, %v151
    %v280 = vpack.c.bf16 %v152, %v152
    %v281 = vpack.c.bf16 %v153, %v153
    %v282 = vpack.c.bf16 %v154, %v154
    %v283 = vpack.c.bf16 %v155, %v155
    %v284 = vpack.c.bf16 %v156, %v156
    %v285 = vpack.c.bf16 %v157, %v157
    %v286 = vpack.c.bf16 %v158, %v158
    %v287 = vpack.c.bf16 %v159, %v159
    %v288 = vpack.c.bf16 %v160, %v160
    %v289 = vpack.c.bf16 %v161, %v161
    %v290 = vpack.c.bf16 %v162, %v162
    %v291 = vpack.c.bf16 %v163, %v163
    %v292 = vpack.c.bf16 %v164, %v164
    %v293 = vpack.c.bf16 %v165, %v165
    %v294 = vpack.c.bf16 %v166, %v166
    %v295 = vpack.c.bf16 %v167, %v167
    %v296 = vpack.c.bf16 %v168, %v168
    %v297 = vpack.c.bf16 %v169, %v169
    %v298 = vpack.c.bf16 %v170, %v170
    %v299 = vpack.c.bf16 %v171, %v171
    %v300 = vpack.c.bf16 %v172, %v172
    %v301 = vpack.c.bf16 %v173, %v173
    %v302 = vpack.c.bf16 %v174, %v174
    %v303 = vpack.c.bf16 %v175, %v175
    %v304 = vpack.c.bf16 %v176, %v176
    %v305 = vpack.c.bf16 %v177, %v177
    %v306 = vpack.c.bf16 %v178, %v178
    %v307 = vpack.c.bf16 %v179, %v179
    %v308 = vpack.c.bf16 %v180, %v180
    %v309 = vpack.c.bf16 %v181, %v181
    %v310 = vpack.c.bf16 %v182, %v182
    %v311 = vpack.c.bf16 %v183, %v183
    %v312 = vpack.c.bf16 %v184, %v184
    %v313 = vpack.c.bf16 %v185, %v185
    %v314 = vpack.c.bf16 %v186, %v186
    %v315 = vpack.c.bf16 %v187, %v187
    %v316 = vpack.c.bf16 %v188, %v188
    %v317 = vpack.c.bf16 %v189, %v189
    %v318 = vpack.c.bf16 %v190, %v190
    %v319 = vpack.c.bf16 %v191, %v191
    %v320 = vpack.c.bf16 %v192, %v192
    %v321 = vpack.c.bf16 %v193, %v193
    %v322 = vpack.c.bf16 %v194, %v194
    %v323 = vpack.c.bf16 %v195, %v195
    %v324 = vpack.c.bf16 %v196, %v196
    %v325 = vpack.c.bf16 %v197, %v197
    %v326 = vpack.c.bf16 %v198, %v198
    %v327 = vpack.c.bf16 %v199, %v199
    %v328 = vpack.c.bf16 %v200, %v200
    %v329 = vpack.c.bf16 %v201, %v201
    %v330 = vpack.c.bf16 %v202, %v202
    %v331 = vpack.c.bf16 %v203, %v203
    %v332 = vpack.c.bf16 %v204, %v204
    %v333 = vpack.c.bf16 %v205, %v205
    %v334 = vpack.c.bf16 %v206, %v206
    %v335 = vpack.c.bf16 %v207, %v207
    %v336 = vpack.c.bf16 %v208, %v208
    %v337 = vpack.c.bf16 %v209, %v209
    %v338 = vpack.c.bf16 %v210, %v210
    %v339 = vpack.c.bf16 %v211, %v211
    %v340 = vpack.c.bf16 %v212, %v212
    %v341 = vpack.c.bf16 %v213, %v213
    %v342 = vpack.c.bf16 %v214, %v214
    %v343 = vpack.c.bf16 %v215, %v215
    %v344 = vpack.c.bf16 %v216, %v216
    %v345 = vpack.c.bf16 %v217, %v217
    %v346 = vpack.c.bf16 %v218, %v218
    %v347 = vpack.c.bf16 %v219, %v219
    %v348 = vpack.c.bf16 %v220, %v220
    %v349 = vpack.c.bf16 %v221, %v221
    %v350 = vpack.c.bf16 %v222, %v222
    %v351 = vpack.c.bf16 %v223, %v223
    %v352 = vpack.c.bf16 %v224, %v224
    %v353 = vpack.c.bf16 %v225, %v225
    %v354 = vpack.c.bf16 %v226, %v226
    %v355 = vld [vmem:[%s3] sm:$0xf]
    %v356 = vld [vmem:[%s3 + $0x4] sm:$0xf]
    %v357 = vld [vmem:[%s3 + $0x8] sm:$0xf]
    %v358 = vld [vmem:[%s3 + $0xc] sm:$0xf]
    %v359 = vld [vmem:[%s3 + $0x10] sm:$0xf]
    %v360 = vld [vmem:[%s3 + $0x14] sm:$0xf]
    %v361 = vld [vmem:[%s3 + $0x18] sm:$0xf]
    %v362 = vld [vmem:[%s3 + $0x1c] sm:$0xf]
    %v491 = vunpack.c.l.b16 %v227
    %v492 = vunpack.c.l.b16 %v228
    %v493 = vunpack.c.l.b16 %v229
    %v494 = vunpack.c.l.b16 %v230
    %v495 = vunpack.c.l.b16 %v231
    %v496 = vunpack.c.l.b16 %v232
    %v497 = vunpack.c.l.b16 %v233
    %v498 = vunpack.c.l.b16 %v234
    %v499 = vunpack.c.l.b16 %v235
    %v500 = vunpack.c.l.b16 %v236
    %v501 = vunpack.c.l.b16 %v237
    %v502 = vunpack.c.l.b16 %v238
    %v503 = vunpack.c.l.b16 %v239
    %v504 = vunpack.c.l.b16 %v240
    %v505 = vunpack.c.l.b16 %v241
    %v506 = vunpack.c.l.b16 %v242
    %v507 = vunpack.c.l.b16 %v243
    %v508 = vunpack.c.l.b16 %v244
    %v509 = vunpack.c.l.b16 %v245
    %v510 = vunpack.c.l.b16 %v246
    %v511 = vunpack.c.l.b16 %v247
    %v512 = vunpack.c.l.b16 %v248
    %v513 = vunpack.c.l.b16 %v249
    %v514 = vunpack.c.l.b16 %v250
    %v515 = vunpack.c.l.b16 %v251
    %v516 = vunpack.c.l.b16 %v252
    %v517 = vunpack.c.l.b16 %v253
    %v518 = vunpack.c.l.b16 %v254
    %v519 = vunpack.c.l.b16 %v255
    %v520 = vunpack.c.l.b16 %v256
    %v521 = vunpack.c.l.b16 %v257
    %v522 = vunpack.c.l.b16 %v258
    %v523 = vunpack.c.l.b16 %v259
    %v524 = vunpack.c.l.b16 %v260
    %v525 = vunpack.c.l.b16 %v261
    %v526 = vunpack.c.l.b16 %v262
    %v527 = vunpack.c.l.b16 %v263
    %v528 = vunpack.c.l.b16 %v264
    %v529 = vunpack.c.l.b16 %v265
    %v530 = vunpack.c.l.b16 %v266
    %v531 = vunpack.c.l.b16 %v267
    %v532 = vunpack.c.l.b16 %v268
    %v533 = vunpack.c.l.b16 %v269
    %v534 = vunpack.c.l.b16 %v270
    %v535 = vunpack.c.l.b16 %v271
    %v536 = vunpack.c.l.b16 %v272
    %v537 = vunpack.c.l.b16 %v273
    %v538 = vunpack.c.l.b16 %v274
    %v539 = vunpack.c.l.b16 %v275
    %v540 = vunpack.c.l.b16 %v276
    %v541 = vunpack.c.l.b16 %v277
    %v542 = vunpack.c.l.b16 %v278
    %v543 = vunpack.c.l.b16 %v279
    %v544 = vunpack.c.l.b16 %v280
    %v545 = vunpack.c.l.b16 %v281
    %v546 = vunpack.c.l.b16 %v282
    %v547 = vunpack.c.l.b16 %v283
    %v548 = vunpack.c.l.b16 %v284
    %v549 = vunpack.c.l.b16 %v285
    %v550 = vunpack.c.l.b16 %v286
    %v551 = vunpack.c.l.b16 %v287
    %v552 = vunpack.c.l.b16 %v288
    %v553 = vunpack.c.l.b16 %v289
    %v554 = vunpack.c.l.b16 %v290
    %v555 = vunpack.c.l.b16 %v291
    %v556 = vunpack.c.l.b16 %v292
    %v557 = vunpack.c.l.b16 %v293
    %v558 = vunpack.c.l.b16 %v294
    %v559 = vunpack.c.l.b16 %v295
    %v560 = vunpack.c.l.b16 %v296
    %v561 = vunpack.c.l.b16 %v297
    %v562 = vunpack.c.l.b16 %v298
    %v563 = vunpack.c.l.b16 %v299
    %v564 = vunpack.c.l.b16 %v300
    %v565 = vunpack.c.l.b16 %v301
    %v566 = vunpack.c.l.b16 %v302
    %v567 = vunpack.c.l.b16 %v303
    %v568 = vunpack.c.l.b16 %v304
    %v569 = vunpack.c.l.b16 %v305
    %v570 = vunpack.c.l.b16 %v306
    %v571 = vunpack.c.l.b16 %v307
    %v572 = vunpack.c.l.b16 %v308
    %v573 = vunpack.c.l.b16 %v309
    %v574 = vunpack.c.l.b16 %v310
    %v575 = vunpack.c.l.b16 %v311
    %v576 = vunpack.c.l.b16 %v312
    %v577 = vunpack.c.l.b16 %v313
    %v578 = vunpack.c.l.b16 %v314
    %v579 = vunpack.c.l.b16 %v315
    %v580 = vunpack.c.l.b16 %v316
    %v581 = vunpack.c.l.b16 %v317
    %v582 = vunpack.c.l.b16 %v318
    %v583 = vunpack.c.l.b16 %v319
    %v584 = vunpack.c.l.b16 %v320
    %v585 = vunpack.c.l.b16 %v321
    %v586 = vunpack.c.l.b16 %v322
    %v587 = vunpack.c.l.b16 %v323
    %v588 = vunpack.c.l.b16 %v324
    %v589 = vunpack.c.l.b16 %v325
    %v590 = vunpack.c.l.b16 %v326
    %v591 = vunpack.c.l.b16 %v327
    %v592 = vunpack.c.l.b16 %v328
    %v593 = vunpack.c.l.b16 %v329
    %v594 = vunpack.c.l.b16 %v330
    %v595 = vunpack.c.l.b16 %v331
    %v596 = vunpack.c.l.b16 %v332
    %v597 = vunpack.c.l.b16 %v333
    %v598 = vunpack.c.l.b16 %v334
    %v599 = vunpack.c.l.b16 %v335
    %v600 = vunpack.c.l.b16 %v336
    %v601 = vunpack.c.l.b16 %v337
    %v602 = vunpack.c.l.b16 %v338
    %v603 = vunpack.c.l.b16 %v339
    %v604 = vunpack.c.l.b16 %v340
    %v605 = vunpack.c.l.b16 %v341
    %v606 = vunpack.c.l.b16 %v342
    %v607 = vunpack.c.l.b16 %v343
    %v608 = vunpack.c.l.b16 %v344
    %v609 = vunpack.c.l.b16 %v345
    %v610 = vunpack.c.l.b16 %v346
    %v611 = vunpack.c.l.b16 %v347
    %v612 = vunpack.c.l.b16 %v348
    %v613 = vunpack.c.l.b16 %v349
    %v614 = vunpack.c.l.b16 %v350
    %v615 = vunpack.c.l.b16 %v351
    %v616 = vunpack.c.l.b16 %v352
    %v617 = vunpack.c.l.b16 %v353
    %v618 = vunpack.c.l.b16 %v354
    %v619 = vpack.c.b16 %v492, %v491
    %v620 = vpack.c.b16 %v494, %v493
    %v621 = vpack.c.b16 %v496, %v495
    %v622 = vpack.c.b16 %v498, %v497
    %v623 = vpack.c.b16 %v500, %v499
    %v624 = vpack.c.b16 %v502, %v501
    %v625 = vpack.c.b16 %v504, %v503
    %v626 = vpack.c.b16 %v506, %v505
    %v627 = vpack.c.b16 %v508, %v507
    %v628 = vpack.c.b16 %v510, %v509
    %v629 = vpack.c.b16 %v512, %v511
    %v630 = vpack.c.b16 %v514, %v513
    %v631 = vpack.c.b16 %v516, %v515
    %v632 = vpack.c.b16 %v518, %v517
    %v633 = vpack.c.b16 %v520, %v519
    %v634 = vpack.c.b16 %v522, %v521
    %v635 = vpack.c.b16 %v524, %v523
    %v636 = vpack.c.b16 %v526, %v525
    %v637 = vpack.c.b16 %v528, %v527
    %v638 = vpack.c.b16 %v530, %v529
    %v639 = vpack.c.b16 %v532, %v531
    %v640 = vpack.c.b16 %v534, %v533
    %v641 = vpack.c.b16 %v536, %v535
    %v642 = vpack.c.b16 %v538, %v537
    %v643 = vpack.c.b16 %v540, %v539
    %v644 = vpack.c.b16 %v542, %v541
    %v645 = vpack.c.b16 %v544, %v543
    %v646 = vpack.c.b16 %v546, %v545
    %v647 = vpack.c.b16 %v548, %v547
    %v648 = vpack.c.b16 %v550, %v549
    %v649 = vpack.c.b16 %v552, %v551
    %v650 = vpack.c.b16 %v554, %v553
    %v651 = vpack.c.b16 %v556, %v555
    %v652 = vpack.c.b16 %v558, %v557
    %v653 = vpack.c.b16 %v560, %v559
    %v654 = vpack.c.b16 %v562, %v561
    %v655 = vpack.c.b16 %v564, %v563
    %v656 = vpack.c.b16 %v566, %v565
    %v657 = vpack.c.b16 %v568, %v567
    %v658 = vpack.c.b16 %v570, %v569
    %v659 = vpack.c.b16 %v572, %v571
    %v660 = vpack.c.b16 %v574, %v573
    %v661 = vpack.c.b16 %v576, %v575
    %v662 = vpack.c.b16 %v578, %v577
    %v663 = vpack.c.b16 %v580, %v579
    %v664 = vpack.c.b16 %v582, %v581
    %v665 = vpack.c.b16 %v584, %v583
    %v666 = vpack.c.b16 %v586, %v585
    %v667 = vpack.c.b16 %v588, %v587
    %v668 = vpack.c.b16 %v590, %v589
    %v669 = vpack.c.b16 %v592, %v591
    %v670 = vpack.c.b16 %v594, %v593
    %v671 = vpack.c.b16 %v596, %v595
    %v672 = vpack.c.b16 %v598, %v597
    %v673 = vpack.c.b16 %v600, %v599
    %v674 = vpack.c.b16 %v602, %v601
    %v675 = vpack.c.b16 %v604, %v603
    %v676 = vpack.c.b16 %v606, %v605
    %v677 = vpack.c.b16 %v608, %v607
    %v678 = vpack.c.b16 %v610, %v609
    %v679 = vpack.c.b16 %v612, %v611
    %v680 = vpack.c.b16 %v614, %v613
    %v681 = vpack.c.b16 %v616, %v615
    %v682 = vpack.c.b16 %v618, %v617
    %v691 = vunpack.c.l.b16 %v355
    %v692 = vunpack.c.l.b16 %v356
    %v693 = vunpack.c.l.b16 %v357
    %v694 = vunpack.c.l.b16 %v358
    %v695 = vunpack.c.l.b16 %v359
    %v696 = vunpack.c.l.b16 %v360
    %v697 = vunpack.c.l.b16 %v361
    %v698 = vunpack.c.l.b16 %v362
    %v699 = vpack.c.b16 %v692, %v691
    %v700 = vpack.c.b16 %v694, %v693
    %v701 = vpack.c.b16 %v696, %v695
    %v702 = vpack.c.b16 %v698, %v697
    %vm707 = vcmask 523264
    %v709 = vsel %vm707, %v619, 0
    %v712 = vsel %vm707, %v620, 0
    %v715 = vsel %vm707, %v621, 0
    %v718 = vsel %vm707, %v622, 0
    %v721 = vsel %vm707, %v623, 0
    %v724 = vsel %vm707, %v624, 0
    %v727 = vsel %vm707, %v625, 0
    %v730 = vsel %vm707, %v626, 0
    %v733 = vsel %vm707, %v627, 0
    %v736 = vsel %vm707, %v628, 0
    %v739 = vsel %vm707, %v629, 0
    %v742 = vsel %vm707, %v630, 0
    %v745 = vsel %vm707, %v631, 0
    %v748 = vsel %vm707, %v632, 0
    %v751 = vsel %vm707, %v633, 0
    %v754 = vsel %vm707, %v634, 0
    %v757 = vsel %vm707, %v635, 0
    %v760 = vsel %vm707, %v636, 0
    %v763 = vsel %vm707, %v637, 0
    %v766 = vsel %vm707, %v638, 0
    %v769 = vsel %vm707, %v639, 0
    %v772 = vsel %vm707, %v640, 0
    %v775 = vsel %vm707, %v641, 0
    %v778 = vsel %vm707, %v642, 0
    %v781 = vsel %vm707, %v643, 0
    %v784 = vsel %vm707, %v644, 0
    %v787 = vsel %vm707, %v645, 0
    %v790 = vsel %vm707, %v646, 0
    %v793 = vsel %vm707, %v647, 0
    %v796 = vsel %vm707, %v648, 0
    %v799 = vsel %vm707, %v649, 0
    %v802 = vsel %vm707, %v650, 0
    %v805 = vsel %vm707, %v651, 0
    %v808 = vsel %vm707, %v652, 0
    %v811 = vsel %vm707, %v653, 0
    %v814 = vsel %vm707, %v654, 0
    %v817 = vsel %vm707, %v655, 0
    %v820 = vsel %vm707, %v656, 0
    %v823 = vsel %vm707, %v657, 0
    %v826 = vsel %vm707, %v658, 0
    %v829 = vsel %vm707, %v659, 0
    %v832 = vsel %vm707, %v660, 0
    %v835 = vsel %vm707, %v661, 0
    %v838 = vsel %vm707, %v662, 0
    %v841 = vsel %vm707, %v663, 0
    %v844 = vsel %vm707, %v664, 0
    %v847 = vsel %vm707, %v665, 0
    %v850 = vsel %vm707, %v666, 0
    %v853 = vsel %vm707, %v667, 0
    %v856 = vsel %vm707, %v668, 0
    %v859 = vsel %vm707, %v669, 0
    %v862 = vsel %vm707, %v670, 0
    %v865 = vsel %vm707, %v671, 0
    %v868 = vsel %vm707, %v672, 0
    %v871 = vsel %vm707, %v673, 0
    %v874 = vsel %vm707, %v674, 0
    %v877 = vsel %vm707, %v675, 0
    %v880 = vsel %vm707, %v676, 0
    %v883 = vsel %vm707, %v677, 0
    %v886 = vsel %vm707, %v678, 0
    %v889 = vsel %vm707, %v679, 0
    %v892 = vsel %vm707, %v680, 0
    %v895 = vsel %vm707, %v681, 0
    %v898 = vsel %vm707, %v682, 0
    %900 = vmatprep.subr.bf16.mxu0 0
    %901 = vmatpush1.bf16.msra.mxu0 0
    %902 = vmatprep.subr.bf16.mxu0 0
    %903 = vmatpush1.bf16.msra.mxu0 0
    %904 = vmatprep.subr.bf16.mxu0 0
    %905 = vmatpush1.bf16.msra.mxu0 0
    %906 = vmatprep.subr.bf16.mxu0 0
    %907 = vmatpush1.bf16.msra.mxu0 0
    %908 = vmatprep.subr.bf16.mxu0 0
    %909 = vmatpush1.bf16.msra.mxu0 %v702
    %910 = vmatprep.subr.bf16.mxu0 0
    %911 = vmatpush1.bf16.msra.mxu0 %v701
    %912 = vmatprep.subr.bf16.mxu0 0
    %913 = vmatpush1.bf16.msra.mxu0 %v700
    %914 = vmatprep.subr.bf16.mxu0 0
    %915 = vmatpush1.bf16.msra.mxu0 %v699
    %916 = vmatprep.subr.bf16.mxu0 0
    %917 = vmatpush2.bf16.msra.mxu0 0
    %918 = vmatprep.subr.bf16.mxu0 0
    %919 = vmatpush2.bf16.msra.mxu0 0
    %920 = vmatprep.subr.bf16.mxu0 0
    %921 = vmatpush2.bf16.msra.mxu0 0
    %922 = vmatprep.subr.bf16.mxu0 0
    %923 = vmatpush2.bf16.msra.mxu0 0
    %924 = vmatprep.subr.bf16.mxu0 0
    %925 = vmatpush2.bf16.msra.mxu0 0
    %926 = vmatprep.subr.bf16.mxu0 0
    %927 = vmatpush2.bf16.msra.mxu0 0
    %928 = vmatprep.subr.bf16.mxu0 0
    %929 = vmatpush2.bf16.msra.mxu0 0
    %930 = vmatprep.subr.bf16.mxu0 0
    %931 = vmatpush2.bf16.msra.mxu0 0
    %932 = vmatprep.mubr.bf16.mxu0 0
    %933 = vmatmul.mubr.bf16.gmra.mxu0 %v709
    %v934 = vpop.f32.mrf.mxu0
    %v935 = vadd.f32 0.0, %v934
    %v936 = vpop.f32.mrf.mxu0
    %v937 = vpop.f32.mrf.mxu0
    %v938 = vadd.f32 0.0, %v937
    %v939 = vpop.f32.mrf.mxu0
    %940 = vmatprep.mubr.bf16.mxu0 0
    %941 = vmatmul.mubr.bf16.gmra.mxu0 %v712
    %v942 = vpop.f32.mrf.mxu0
    %v943 = vadd.f32 0.0, %v942
    %v944 = vpop.f32.mrf.mxu0
    %v945 = vpop.f32.mrf.mxu0
    %v946 = vadd.f32 0.0, %v945
    %v947 = vpop.f32.mrf.mxu0
    %948 = vmatprep.mubr.bf16.mxu0 0
    %949 = vmatmul.mubr.bf16.gmra.mxu0 %v715
    %v950 = vpop.f32.mrf.mxu0
    %v951 = vadd.f32 0.0, %v950
    %v952 = vpop.f32.mrf.mxu0
    %v953 = vpop.f32.mrf.mxu0
    %v954 = vadd.f32 0.0, %v953
    %v955 = vpop.f32.mrf.mxu0
    %956 = vmatprep.mubr.bf16.mxu0 0
    %957 = vmatmul.mubr.bf16.gmra.mxu0 %v718
    %v958 = vpop.f32.mrf.mxu0
    %v959 = vadd.f32 0.0, %v958
    %v960 = vpop.f32.mrf.mxu0
    %v961 = vpop.f32.mrf.mxu0
    %v962 = vadd.f32 0.0, %v961
    %v963 = vpop.f32.mrf.mxu0
    %964 = vmatprep.mubr.bf16.mxu0 0
    %965 = vmatmul.mubr.bf16.gmra.mxu0 %v721
    %v966 = vpop.f32.mrf.mxu0
    %v967 = vadd.f32 0.0, %v966
    %v968 = vpop.f32.mrf.mxu0
    %v969 = vpop.f32.mrf.mxu0
    %v970 = vadd.f32 0.0, %v969
    %v971 = vpop.f32.mrf.mxu0
    %972 = vmatprep.mubr.bf16.mxu0 0
    %973 = vmatmul.mubr.bf16.gmra.mxu0 %v724
    %v974 = vpop.f32.mrf.mxu0
    %v975 = vadd.f32 0.0, %v974
    %v976 = vpop.f32.mrf.mxu0
    %v977 = vpop.f32.mrf.mxu0
    %v978 = vadd.f32 0.0, %v977
    %v979 = vpop.f32.mrf.mxu0
    %980 = vmatprep.mubr.bf16.mxu0 0
    %981 = vmatmul.mubr.bf16.gmra.mxu0 %v727
    %v982 = vpop.f32.mrf.mxu0
    %v983 = vadd.f32 0.0, %v982
    %v984 = vpop.f32.mrf.mxu0
    %v985 = vpop.f32.mrf.mxu0
    %v986 = vadd.f32 0.0, %v985
    %v987 = vpop.f32.mrf.mxu0
    %988 = vmatprep.mubr.bf16.mxu0 0
    %989 = vmatmul.mubr.bf16.gmra.mxu0 %v730
    %v990 = vpop.f32.mrf.mxu0
    %v991 = vadd.f32 0.0, %v990
    %v992 = vpop.f32.mrf.mxu0
    %v993 = vpop.f32.mrf.mxu0
    %v994 = vadd.f32 0.0, %v993
    %v995 = vpop.f32.mrf.mxu0
    %996 = vmatprep.mubr.bf16.mxu0 0
    %997 = vmatmul.mubr.bf16.gmra.mxu0 %v733
    %v998 = vpop.f32.mrf.mxu0
    %v999 = vadd.f32 0.0, %v998
    %v1000 = vpop.f32.mrf.mxu0
    %v1001 = vpop.f32.mrf.mxu0
    %v1002 = vadd.f32 0.0, %v1001
    %v1003 = vpop.f32.mrf.mxu0
    %1004 = vmatprep.mubr.bf16.mxu0 0
    %1005 = vmatmul.mubr.bf16.gmra.mxu0 %v736
    %v1006 = vpop.f32.mrf.mxu0
    %v1007 = vadd.f32 0.0, %v1006
    %v1008 = vpop.f32.mrf.mxu0
    %v1009 = vpop.f32.mrf.mxu0
    %v1010 = vadd.f32 0.0, %v1009
    %v1011 = vpop.f32.mrf.mxu0
    %1012 = vmatprep.mubr.bf16.mxu0 0
    %1013 = vmatmul.mubr.bf16.gmra.mxu0 %v739
    %v1014 = vpop.f32.mrf.mxu0
    %v1015 = vadd.f32 0.0, %v1014
    %v1016 = vpop.f32.mrf.mxu0
    %v1017 = vpop.f32.mrf.mxu0
    %v1018 = vadd.f32 0.0, %v1017
    %v1019 = vpop.f32.mrf.mxu0
    %1020 = vmatprep.mubr.bf16.mxu0 0
    %1021 = vmatmul.mubr.bf16.gmra.mxu0 %v742
    %v1022 = vpop.f32.mrf.mxu0
    %v1023 = vadd.f32 0.0, %v1022
    %v1024 = vpop.f32.mrf.mxu0
    %v1025 = vpop.f32.mrf.mxu0
    %v1026 = vadd.f32 0.0, %v1025
    %v1027 = vpop.f32.mrf.mxu0
    %1028 = vmatprep.mubr.bf16.mxu0 0
    %1029 = vmatmul.mubr.bf16.gmra.mxu0 %v745
    %v1030 = vpop.f32.mrf.mxu0
    %v1031 = vadd.f32 0.0, %v1030
    %v1032 = vpop.f32.mrf.mxu0
    %v1033 = vpop.f32.mrf.mxu0
    %v1034 = vadd.f32 0.0, %v1033
    %v1035 = vpop.f32.mrf.mxu0
    %1036 = vmatprep.mubr.bf16.mxu0 0
    %1037 = vmatmul.mubr.bf16.gmra.mxu0 %v748
    %v1038 = vpop.f32.mrf.mxu0
    %v1039 = vadd.f32 0.0, %v1038
    %v1040 = vpop.f32.mrf.mxu0
    %v1041 = vpop.f32.mrf.mxu0
    %v1042 = vadd.f32 0.0, %v1041
    %v1043 = vpop.f32.mrf.mxu0
    %1044 = vmatprep.mubr.bf16.mxu0 0
    %1045 = vmatmul.mubr.bf16.gmra.mxu0 %v751
    %v1046 = vpop.f32.mrf.mxu0
    %v1047 = vadd.f32 0.0, %v1046
    %v1048 = vpop.f32.mrf.mxu0
    %v1049 = vpop.f32.mrf.mxu0
    %v1050 = vadd.f32 0.0, %v1049
    %v1051 = vpop.f32.mrf.mxu0
    %1052 = vmatprep.mubr.bf16.mxu0 0
    %1053 = vmatmul.mubr.bf16.gmra.mxu0 %v754
    %v1054 = vpop.f32.mrf.mxu0
    %v1055 = vadd.f32 0.0, %v1054
    %v1056 = vpop.f32.mrf.mxu0
    %v1057 = vpop.f32.mrf.mxu0
    %v1058 = vadd.f32 0.0, %v1057
    %v1059 = vpop.f32.mrf.mxu0
    %1060 = vmatprep.mubr.bf16.mxu0 0
    %1061 = vmatmul.mubr.bf16.gmra.mxu0 %v757
    %v1062 = vpop.f32.mrf.mxu0
    %v1063 = vadd.f32 0.0, %v1062
    %v1064 = vpop.f32.mrf.mxu0
    %v1065 = vpop.f32.mrf.mxu0
    %v1066 = vadd.f32 0.0, %v1065
    %v1067 = vpop.f32.mrf.mxu0
    %1068 = vmatprep.mubr.bf16.mxu0 0
    %1069 = vmatmul.mubr.bf16.gmra.mxu0 %v760
    %v1070 = vpop.f32.mrf.mxu0
    %v1071 = vadd.f32 0.0, %v1070
    %v1072 = vpop.f32.mrf.mxu0
    %v1073 = vpop.f32.mrf.mxu0
    %v1074 = vadd.f32 0.0, %v1073
    %v1075 = vpop.f32.mrf.mxu0
    %1076 = vmatprep.mubr.bf16.mxu0 0
    %1077 = vmatmul.mubr.bf16.gmra.mxu0 %v763
    %v1078 = vpop.f32.mrf.mxu0
    %v1079 = vadd.f32 0.0, %v1078
    %v1080 = vpop.f32.mrf.mxu0
    %v1081 = vpop.f32.mrf.mxu0
    %v1082 = vadd.f32 0.0, %v1081
    %v1083 = vpop.f32.mrf.mxu0
    %1084 = vmatprep.mubr.bf16.mxu0 0
    %1085 = vmatmul.mubr.bf16.gmra.mxu0 %v766
    %v1086 = vpop.f32.mrf.mxu0
    %v1087 = vadd.f32 0.0, %v1086
    %v1088 = vpop.f32.mrf.mxu0
    %v1089 = vpop.f32.mrf.mxu0
    %v1090 = vadd.f32 0.0, %v1089
    %v1091 = vpop.f32.mrf.mxu0
    %1092 = vmatprep.mubr.bf16.mxu0 0
    %1093 = vmatmul.mubr.bf16.gmra.mxu0 %v769
    %v1094 = vpop.f32.mrf.mxu0
    %v1095 = vadd.f32 0.0, %v1094
    %v1096 = vpop.f32.mrf.mxu0
    %v1097 = vpop.f32.mrf.mxu0
    %v1098 = vadd.f32 0.0, %v1097
    %v1099 = vpop.f32.mrf.mxu0
    %1100 = vmatprep.mubr.bf16.mxu0 0
    %1101 = vmatmul.mubr.bf16.gmra.mxu0 %v772
    %v1102 = vpop.f32.mrf.mxu0
    %v1103 = vadd.f32 0.0, %v1102
    %v1104 = vpop.f32.mrf.mxu0
    %v1105 = vpop.f32.mrf.mxu0
    %v1106 = vadd.f32 0.0, %v1105
    %v1107 = vpop.f32.mrf.mxu0
    %1108 = vmatprep.mubr.bf16.mxu0 0
    %1109 = vmatmul.mubr.bf16.gmra.mxu0 %v775
    %v1110 = vpop.f32.mrf.mxu0
    %v1111 = vadd.f32 0.0, %v1110
    %v1112 = vpop.f32.mrf.mxu0
    %v1113 = vpop.f32.mrf.mxu0
    %v1114 = vadd.f32 0.0, %v1113
    %v1115 = vpop.f32.mrf.mxu0
    %1116 = vmatprep.mubr.bf16.mxu0 0
    %1117 = vmatmul.mubr.bf16.gmra.mxu0 %v778
    %v1118 = vpop.f32.mrf.mxu0
    %v1119 = vadd.f32 0.0, %v1118
    %v1120 = vpop.f32.mrf.mxu0
    %v1121 = vpop.f32.mrf.mxu0
    %v1122 = vadd.f32 0.0, %v1121
    %v1123 = vpop.f32.mrf.mxu0
    %1124 = vmatprep.mubr.bf16.mxu0 0
    %1125 = vmatmul.mubr.bf16.gmra.mxu0 %v781
    %v1126 = vpop.f32.mrf.mxu0
    %v1127 = vadd.f32 0.0, %v1126
    %v1128 = vpop.f32.mrf.mxu0
    %v1129 = vpop.f32.mrf.mxu0
    %v1130 = vadd.f32 0.0, %v1129
    %v1131 = vpop.f32.mrf.mxu0
    %1132 = vmatprep.mubr.bf16.mxu0 0
    %1133 = vmatmul.mubr.bf16.gmra.mxu0 %v784
    %v1134 = vpop.f32.mrf.mxu0
    %v1135 = vadd.f32 0.0, %v1134
    %v1136 = vpop.f32.mrf.mxu0
    %v1137 = vpop.f32.mrf.mxu0
    %v1138 = vadd.f32 0.0, %v1137
    %v1139 = vpop.f32.mrf.mxu0
    %1140 = vmatprep.mubr.bf16.mxu0 0
    %1141 = vmatmul.mubr.bf16.gmra.mxu0 %v787
    %v1142 = vpop.f32.mrf.mxu0
    %v1143 = vadd.f32 0.0, %v1142
    %v1144 = vpop.f32.mrf.mxu0
    %v1145 = vpop.f32.mrf.mxu0
    %v1146 = vadd.f32 0.0, %v1145
    %v1147 = vpop.f32.mrf.mxu0
    %1148 = vmatprep.mubr.bf16.mxu0 0
    %1149 = vmatmul.mubr.bf16.gmra.mxu0 %v790
    %v1150 = vpop.f32.mrf.mxu0
    %v1151 = vadd.f32 0.0, %v1150
    %v1152 = vpop.f32.mrf.mxu0
    %v1153 = vpop.f32.mrf.mxu0
    %v1154 = vadd.f32 0.0, %v1153
    %v1155 = vpop.f32.mrf.mxu0
    %1156 = vmatprep.mubr.bf16.mxu0 0
    %1157 = vmatmul.mubr.bf16.gmra.mxu0 %v793
    %v1158 = vpop.f32.mrf.mxu0
    %v1159 = vadd.f32 0.0, %v1158
    %v1160 = vpop.f32.mrf.mxu0
    %v1161 = vpop.f32.mrf.mxu0
    %v1162 = vadd.f32 0.0, %v1161
    %v1163 = vpop.f32.mrf.mxu0
    %1164 = vmatprep.mubr.bf16.mxu0 0
    %1165 = vmatmul.mubr.bf16.gmra.mxu0 %v796
    %v1166 = vpop.f32.mrf.mxu0
    %v1167 = vadd.f32 0.0, %v1166
    %v1168 = vpop.f32.mrf.mxu0
    %v1169 = vpop.f32.mrf.mxu0
    %v1170 = vadd.f32 0.0, %v1169
    %v1171 = vpop.f32.mrf.mxu0
    %1172 = vmatprep.mubr.bf16.mxu0 0
    %1173 = vmatmul.mubr.bf16.gmra.mxu0 %v799
    %v1174 = vpop.f32.mrf.mxu0
    %v1175 = vadd.f32 0.0, %v1174
    %v1176 = vpop.f32.mrf.mxu0
    %v1177 = vpop.f32.mrf.mxu0
    %v1178 = vadd.f32 0.0, %v1177
    %v1179 = vpop.f32.mrf.mxu0
    %1180 = vmatprep.mubr.bf16.mxu0 0
    %1181 = vmatmul.mubr.bf16.gmra.mxu0 %v802
    %v1182 = vpop.f32.mrf.mxu0
    %v1183 = vadd.f32 0.0, %v1182
    %v1184 = vpop.f32.mrf.mxu0
    %v1185 = vpop.f32.mrf.mxu0
    %v1186 = vadd.f32 0.0, %v1185
    %v1187 = vpop.f32.mrf.mxu0
    %1188 = vmatprep.mubr.bf16.mxu0 0
    %1189 = vmatmul.mubr.bf16.gmra.mxu0 %v805
    %v1190 = vpop.f32.mrf.mxu0
    %v1191 = vadd.f32 0.0, %v1190
    %v1192 = vpop.f32.mrf.mxu0
    %v1193 = vpop.f32.mrf.mxu0
    %v1194 = vadd.f32 0.0, %v1193
    %v1195 = vpop.f32.mrf.mxu0
    %1196 = vmatprep.mubr.bf16.mxu0 0
    %1197 = vmatmul.mubr.bf16.gmra.mxu0 %v808
    %v1198 = vpop.f32.mrf.mxu0
    %v1199 = vadd.f32 0.0, %v1198
    %v1200 = vpop.f32.mrf.mxu0
    %v1201 = vpop.f32.mrf.mxu0
    %v1202 = vadd.f32 0.0, %v1201
    %v1203 = vpop.f32.mrf.mxu0
    %1204 = vmatprep.mubr.bf16.mxu0 0
    %1205 = vmatmul.mubr.bf16.gmra.mxu0 %v811
    %v1206 = vpop.f32.mrf.mxu0
    %v1207 = vadd.f32 0.0, %v1206
    %v1208 = vpop.f32.mrf.mxu0
    %v1209 = vpop.f32.mrf.mxu0
    %v1210 = vadd.f32 0.0, %v1209
    %v1211 = vpop.f32.mrf.mxu0
    %1212 = vmatprep.mubr.bf16.mxu0 0
    %1213 = vmatmul.mubr.bf16.gmra.mxu0 %v814
    %v1214 = vpop.f32.mrf.mxu0
    %v1215 = vadd.f32 0.0, %v1214
    %v1216 = vpop.f32.mrf.mxu0
    %v1217 = vpop.f32.mrf.mxu0
    %v1218 = vadd.f32 0.0, %v1217
    %v1219 = vpop.f32.mrf.mxu0
    %1220 = vmatprep.mubr.bf16.mxu0 0
    %1221 = vmatmul.mubr.bf16.gmra.mxu0 %v817
    %v1222 = vpop.f32.mrf.mxu0
    %v1223 = vadd.f32 0.0, %v1222
    %v1224 = vpop.f32.mrf.mxu0
    %v1225 = vpop.f32.mrf.mxu0
    %v1226 = vadd.f32 0.0, %v1225
    %v1227 = vpop.f32.mrf.mxu0
    %1228 = vmatprep.mubr.bf16.mxu0 0
    %1229 = vmatmul.mubr.bf16.gmra.mxu0 %v820
    %v1230 = vpop.f32.mrf.mxu0
    %v1231 = vadd.f32 0.0, %v1230
    %v1232 = vpop.f32.mrf.mxu0
    %v1233 = vpop.f32.mrf.mxu0
    %v1234 = vadd.f32 0.0, %v1233
    %v1235 = vpop.f32.mrf.mxu0
    %1236 = vmatprep.mubr.bf16.mxu0 0
    %1237 = vmatmul.mubr.bf16.gmra.mxu0 %v823
    %v1238 = vpop.f32.mrf.mxu0
    %v1239 = vadd.f32 0.0, %v1238
    %v1240 = vpop.f32.mrf.mxu0
    %v1241 = vpop.f32.mrf.mxu0
    %v1242 = vadd.f32 0.0, %v1241
    %v1243 = vpop.f32.mrf.mxu0
    %1244 = vmatprep.mubr.bf16.mxu0 0
    %1245 = vmatmul.mubr.bf16.gmra.mxu0 %v826
    %v1246 = vpop.f32.mrf.mxu0
    %v1247 = vadd.f32 0.0, %v1246
    %v1248 = vpop.f32.mrf.mxu0
    %v1249 = vpop.f32.mrf.mxu0
    %v1250 = vadd.f32 0.0, %v1249
    %v1251 = vpop.f32.mrf.mxu0
    %1252 = vmatprep.mubr.bf16.mxu0 0
    %1253 = vmatmul.mubr.bf16.gmra.mxu0 %v829
    %v1254 = vpop.f32.mrf.mxu0
    %v1255 = vadd.f32 0.0, %v1254
    %v1256 = vpop.f32.mrf.mxu0
    %v1257 = vpop.f32.mrf.mxu0
    %v1258 = vadd.f32 0.0, %v1257
    %v1259 = vpop.f32.mrf.mxu0
    %1260 = vmatprep.mubr.bf16.mxu0 0
    %1261 = vmatmul.mubr.bf16.gmra.mxu0 %v832
    %v1262 = vpop.f32.mrf.mxu0
    %v1263 = vadd.f32 0.0, %v1262
    %v1264 = vpop.f32.mrf.mxu0
    %v1265 = vpop.f32.mrf.mxu0
    %v1266 = vadd.f32 0.0, %v1265
    %v1267 = vpop.f32.mrf.mxu0
    %1268 = vmatprep.mubr.bf16.mxu0 0
    %1269 = vmatmul.mubr.bf16.gmra.mxu0 %v835
    %v1270 = vpop.f32.mrf.mxu0
    %v1271 = vadd.f32 0.0, %v1270
    %v1272 = vpop.f32.mrf.mxu0
    %v1273 = vpop.f32.mrf.mxu0
    %v1274 = vadd.f32 0.0, %v1273
    %v1275 = vpop.f32.mrf.mxu0
    %1276 = vmatprep.mubr.bf16.mxu0 0
    %1277 = vmatmul.mubr.bf16.gmra.mxu0 %v838
    %v1278 = vpop.f32.mrf.mxu0
    %v1279 = vadd.f32 0.0, %v1278
    %v1280 = vpop.f32.mrf.mxu0
    %v1281 = vpop.f32.mrf.mxu0
    %v1282 = vadd.f32 0.0, %v1281
    %v1283 = vpop.f32.mrf.mxu0
    %1284 = vmatprep.mubr.bf16.mxu0 0
    %1285 = vmatmul.mubr.bf16.gmra.mxu0 %v841
    %v1286 = vpop.f32.mrf.mxu0
    %v1287 = vadd.f32 0.0, %v1286
    %v1288 = vpop.f32.mrf.mxu0
    %v1289 = vpop.f32.mrf.mxu0
    %v1290 = vadd.f32 0.0, %v1289
    %v1291 = vpop.f32.mrf.mxu0
    %1292 = vmatprep.mubr.bf16.mxu0 0
    %1293 = vmatmul.mubr.bf16.gmra.mxu0 %v844
    %v1294 = vpop.f32.mrf.mxu0
    %v1295 = vadd.f32 0.0, %v1294
    %v1296 = vpop.f32.mrf.mxu0
    %v1297 = vpop.f32.mrf.mxu0
    %v1298 = vadd.f32 0.0, %v1297
    %v1299 = vpop.f32.mrf.mxu0
    %1300 = vmatprep.mubr.bf16.mxu0 0
    %1301 = vmatmul.mubr.bf16.gmra.mxu0 %v847
    %v1302 = vpop.f32.mrf.mxu0
    %v1303 = vadd.f32 0.0, %v1302
    %v1304 = vpop.f32.mrf.mxu0
    %v1305 = vpop.f32.mrf.mxu0
    %v1306 = vadd.f32 0.0, %v1305
    %v1307 = vpop.f32.mrf.mxu0
    %1308 = vmatprep.mubr.bf16.mxu0 0
    %1309 = vmatmul.mubr.bf16.gmra.mxu0 %v850
    %v1310 = vpop.f32.mrf.mxu0
    %v1311 = vadd.f32 0.0, %v1310
    %v1312 = vpop.f32.mrf.mxu0
    %v1313 = vpop.f32.mrf.mxu0
    %v1314 = vadd.f32 0.0, %v1313
    %v1315 = vpop.f32.mrf.mxu0
    %1316 = vmatprep.mubr.bf16.mxu0 0
    %1317 = vmatmul.mubr.bf16.gmra.mxu0 %v853
    %v1318 = vpop.f32.mrf.mxu0
    %v1319 = vadd.f32 0.0, %v1318
    %v1320 = vpop.f32.mrf.mxu0
    %v1321 = vpop.f32.mrf.mxu0
    %v1322 = vadd.f32 0.0, %v1321
    %v1323 = vpop.f32.mrf.mxu0
    %1324 = vmatprep.mubr.bf16.mxu0 0
    %1325 = vmatmul.mubr.bf16.gmra.mxu0 %v856
    %v1326 = vpop.f32.mrf.mxu0
    %v1327 = vadd.f32 0.0, %v1326
    %v1328 = vpop.f32.mrf.mxu0
    %v1329 = vpop.f32.mrf.mxu0
    %v1330 = vadd.f32 0.0, %v1329
    %v1331 = vpop.f32.mrf.mxu0
    %1332 = vmatprep.mubr.bf16.mxu0 0
    %1333 = vmatmul.mubr.bf16.gmra.mxu0 %v859
    %v1334 = vpop.f32.mrf.mxu0
    %v1335 = vadd.f32 0.0, %v1334
    %v1336 = vpop.f32.mrf.mxu0
    %v1337 = vpop.f32.mrf.mxu0
    %v1338 = vadd.f32 0.0, %v1337
    %v1339 = vpop.f32.mrf.mxu0
    %1340 = vmatprep.mubr.bf16.mxu0 0
    %1341 = vmatmul.mubr.bf16.gmra.mxu0 %v862
    %v1342 = vpop.f32.mrf.mxu0
    %v1343 = vadd.f32 0.0, %v1342
    %v1344 = vpop.f32.mrf.mxu0
    %v1345 = vpop.f32.mrf.mxu0
    %v1346 = vadd.f32 0.0, %v1345
    %v1347 = vpop.f32.mrf.mxu0
    %1348 = vmatprep.mubr.bf16.mxu0 0
    %1349 = vmatmul.mubr.bf16.gmra.mxu0 %v865
    %v1350 = vpop.f32.mrf.mxu0
    %v1351 = vadd.f32 0.0, %v1350
    %v1352 = vpop.f32.mrf.mxu0
    %v1353 = vpop.f32.mrf.mxu0
    %v1354 = vadd.f32 0.0, %v1353
    %v1355 = vpop.f32.mrf.mxu0
    %1356 = vmatprep.mubr.bf16.mxu0 0
    %1357 = vmatmul.mubr.bf16.gmra.mxu0 %v868
    %v1358 = vpop.f32.mrf.mxu0
    %v1359 = vadd.f32 0.0, %v1358
    %v1360 = vpop.f32.mrf.mxu0
    %v1361 = vpop.f32.mrf.mxu0
    %v1362 = vadd.f32 0.0, %v1361
    %v1363 = vpop.f32.mrf.mxu0
    %1364 = vmatprep.mubr.bf16.mxu0 0
    %1365 = vmatmul.mubr.bf16.gmra.mxu0 %v871
    %v1366 = vpop.f32.mrf.mxu0
    %v1367 = vadd.f32 0.0, %v1366
    %v1368 = vpop.f32.mrf.mxu0
    %v1369 = vpop.f32.mrf.mxu0
    %v1370 = vadd.f32 0.0, %v1369
    %v1371 = vpop.f32.mrf.mxu0
    %1372 = vmatprep.mubr.bf16.mxu0 0
    %1373 = vmatmul.mubr.bf16.gmra.mxu0 %v874
    %v1374 = vpop.f32.mrf.mxu0
    %v1375 = vadd.f32 0.0, %v1374
    %v1376 = vpop.f32.mrf.mxu0
    %v1377 = vpop.f32.mrf.mxu0
    %v1378 = vadd.f32 0.0, %v1377
    %v1379 = vpop.f32.mrf.mxu0
    %1380 = vmatprep.mubr.bf16.mxu0 0
    %1381 = vmatmul.mubr.bf16.gmra.mxu0 %v877
    %v1382 = vpop.f32.mrf.mxu0
    %v1383 = vadd.f32 0.0, %v1382
    %v1384 = vpop.f32.mrf.mxu0
    %v1385 = vpop.f32.mrf.mxu0
    %v1386 = vadd.f32 0.0, %v1385
    %v1387 = vpop.f32.mrf.mxu0
    %1388 = vmatprep.mubr.bf16.mxu0 0
    %1389 = vmatmul.mubr.bf16.gmra.mxu0 %v880
    %v1390 = vpop.f32.mrf.mxu0
    %v1391 = vadd.f32 0.0, %v1390
    %v1392 = vpop.f32.mrf.mxu0
    %v1393 = vpop.f32.mrf.mxu0
    %v1394 = vadd.f32 0.0, %v1393
    %v1395 = vpop.f32.mrf.mxu0
    %1396 = vmatprep.mubr.bf16.mxu0 0
    %1397 = vmatmul.mubr.bf16.gmra.mxu0 %v883
    %v1398 = vpop.f32.mrf.mxu0
    %v1399 = vadd.f32 0.0, %v1398
    %v1400 = vpop.f32.mrf.mxu0
    %v1401 = vpop.f32.mrf.mxu0
    %v1402 = vadd.f32 0.0, %v1401
    %v1403 = vpop.f32.mrf.mxu0
    %1404 = vmatprep.mubr.bf16.mxu0 0
    %1405 = vmatmul.mubr.bf16.gmra.mxu0 %v886
    %v1406 = vpop.f32.mrf.mxu0
    %v1407 = vadd.f32 0.0, %v1406
    %v1408 = vpop.f32.mrf.mxu0
    %v1409 = vpop.f32.mrf.mxu0
    %v1410 = vadd.f32 0.0, %v1409
    %v1411 = vpop.f32.mrf.mxu0
    %1412 = vmatprep.mubr.bf16.mxu0 0
    %1413 = vmatmul.mubr.bf16.gmra.mxu0 %v889
    %v1414 = vpop.f32.mrf.mxu0
    %v1415 = vadd.f32 0.0, %v1414
    %v1416 = vpop.f32.mrf.mxu0
    %v1417 = vpop.f32.mrf.mxu0
    %v1418 = vadd.f32 0.0, %v1417
    %v1419 = vpop.f32.mrf.mxu0
    %1420 = vmatprep.mubr.bf16.mxu0 0
    %1421 = vmatmul.mubr.bf16.gmra.mxu0 %v892
    %v1422 = vpop.f32.mrf.mxu0
    %v1423 = vadd.f32 0.0, %v1422
    %v1424 = vpop.f32.mrf.mxu0
    %v1425 = vpop.f32.mrf.mxu0
    %v1426 = vadd.f32 0.0, %v1425
    %v1427 = vpop.f32.mrf.mxu0
    %1428 = vmatprep.mubr.bf16.mxu0 0
    %1429 = vmatmul.mubr.bf16.gmra.mxu0 %v895
    %v1430 = vpop.f32.mrf.mxu0
    %v1431 = vadd.f32 0.0, %v1430
    %v1432 = vpop.f32.mrf.mxu0
    %v1433 = vpop.f32.mrf.mxu0
    %v1434 = vadd.f32 0.0, %v1433
    %v1435 = vpop.f32.mrf.mxu0
    %1436 = vmatprep.mubr.bf16.mxu0 0
    %1437 = vmatmul.mubr.bf16.gmra.mxu0 %v898
    %v1438 = vpop.f32.mrf.mxu0
    %v1439 = vadd.f32 0.0, %v1438
    %v1440 = vpop.f32.mrf.mxu0
    %v1441 = vpop.f32.mrf.mxu0
    %v1442 = vadd.f32 0.0, %v1441
    %v1443 = vpop.f32.mrf.mxu0
    %1444 = vdwg.mxu0
    %v1445 = vld [vmem:[#allocation2] sm:$0xff]
    %v1446 = vadd.f32 %v935, %v1445
    %v1447 = vadd.f32 %v938, %v1445
    %v1448 = vadd.f32 %v943, %v1445
    %v1449 = vadd.f32 %v946, %v1445
    %v1450 = vadd.f32 %v951, %v1445
    %v1451 = vadd.f32 %v954, %v1445
    %v1452 = vadd.f32 %v959, %v1445
    %v1453 = vadd.f32 %v962, %v1445
    %v1454 = vadd.f32 %v967, %v1445
    %v1455 = vadd.f32 %v970, %v1445
    %v1456 = vadd.f32 %v975, %v1445
    %v1457 = vadd.f32 %v978, %v1445
    %v1458 = vadd.f32 %v983, %v1445
    %v1459 = vadd.f32 %v986, %v1445
    %v1460 = vadd.f32 %v991, %v1445
    %v1461 = vadd.f32 %v994, %v1445
    %v1462 = vadd.f32 %v999, %v1445
    %v1463 = vadd.f32 %v1002, %v1445
    %v1464 = vadd.f32 %v1007, %v1445
    %v1465 = vadd.f32 %v1010, %v1445
    %v1466 = vadd.f32 %v1015, %v1445
    %v1467 = vadd.f32 %v1018, %v1445
    %v1468 = vadd.f32 %v1023, %v1445
    %v1469 = vadd.f32 %v1026, %v1445
    %v1470 = vadd.f32 %v1031, %v1445
    %v1471 = vadd.f32 %v1034, %v1445
    %v1472 = vadd.f32 %v1039, %v1445
    %v1473 = vadd.f32 %v1042, %v1445
    %v1474 = vadd.f32 %v1047, %v1445
    %v1475 = vadd.f32 %v1050, %v1445
    %v1476 = vadd.f32 %v1055, %v1445
    %v1477 = vadd.f32 %v1058, %v1445
    %v1478 = vadd.f32 %v1063, %v1445
    %v1479 = vadd.f32 %v1066, %v1445
    %v1480 = vadd.f32 %v1071, %v1445
    %v1481 = vadd.f32 %v1074, %v1445
    %v1482 = vadd.f32 %v1079, %v1445
    %v1483 = vadd.f32 %v1082, %v1445
    %v1484 = vadd.f32 %v1087, %v1445
    %v1485 = vadd.f32 %v1090, %v1445
    %v1486 = vadd.f32 %v1095, %v1445
    %v1487 = vadd.f32 %v1098, %v1445
    %v1488 = vadd.f32 %v1103, %v1445
    %v1489 = vadd.f32 %v1106, %v1445
    %v1490 = vadd.f32 %v1111, %v1445
    %v1491 = vadd.f32 %v1114, %v1445
    %v1492 = vadd.f32 %v1119, %v1445
    %v1493 = vadd.f32 %v1122, %v1445
    %v1494 = vadd.f32 %v1127, %v1445
    %v1495 = vadd.f32 %v1130, %v1445
    %v1496 = vadd.f32 %v1135, %v1445
    %v1497 = vadd.f32 %v1138, %v1445
    %v1498 = vadd.f32 %v1143, %v1445
    %v1499 = vadd.f32 %v1146, %v1445
    %v1500 = vadd.f32 %v1151, %v1445
    %v1501 = vadd.f32 %v1154, %v1445
    %v1502 = vadd.f32 %v1159, %v1445
    %v1503 = vadd.f32 %v1162, %v1445
    %v1504 = vadd.f32 %v1167, %v1445
    %v1505 = vadd.f32 %v1170, %v1445
    %v1506 = vadd.f32 %v1175, %v1445
    %v1507 = vadd.f32 %v1178, %v1445
    %v1508 = vadd.f32 %v1183, %v1445
    %v1509 = vadd.f32 %v1186, %v1445
    %v1510 = vadd.f32 %v1191, %v1445
    %v1511 = vadd.f32 %v1194, %v1445
    %v1512 = vadd.f32 %v1199, %v1445
    %v1513 = vadd.f32 %v1202, %v1445
    %v1514 = vadd.f32 %v1207, %v1445
    %v1515 = vadd.f32 %v1210, %v1445
    %v1516 = vadd.f32 %v1215, %v1445
    %v1517 = vadd.f32 %v1218, %v1445
    %v1518 = vadd.f32 %v1223, %v1445
    %v1519 = vadd.f32 %v1226, %v1445
    %v1520 = vadd.f32 %v1231, %v1445
    %v1521 = vadd.f32 %v1234, %v1445
    %v1522 = vadd.f32 %v1239, %v1445
    %v1523 = vadd.f32 %v1242, %v1445
    %v1524 = vadd.f32 %v1247, %v1445
    %v1525 = vadd.f32 %v1250, %v1445
    %v1526 = vadd.f32 %v1255, %v1445
    %v1527 = vadd.f32 %v1258, %v1445
    %v1528 = vadd.f32 %v1263, %v1445
    %v1529 = vadd.f32 %v1266, %v1445
    %v1530 = vadd.f32 %v1271, %v1445
    %v1531 = vadd.f32 %v1274, %v1445
    %v1532 = vadd.f32 %v1279, %v1445
    %v1533 = vadd.f32 %v1282, %v1445
    %v1534 = vadd.f32 %v1287, %v1445
    %v1535 = vadd.f32 %v1290, %v1445
    %v1536 = vadd.f32 %v1295, %v1445
    %v1537 = vadd.f32 %v1298, %v1445
    %v1538 = vadd.f32 %v1303, %v1445
    %v1539 = vadd.f32 %v1306, %v1445
    %v1540 = vadd.f32 %v1311, %v1445
    %v1541 = vadd.f32 %v1314, %v1445
    %v1542 = vadd.f32 %v1319, %v1445
    %v1543 = vadd.f32 %v1322, %v1445
    %v1544 = vadd.f32 %v1327, %v1445
    %v1545 = vadd.f32 %v1330, %v1445
    %v1546 = vadd.f32 %v1335, %v1445
    %v1547 = vadd.f32 %v1338, %v1445
    %v1548 = vadd.f32 %v1343, %v1445
    %v1549 = vadd.f32 %v1346, %v1445
    %v1550 = vadd.f32 %v1351, %v1445
    %v1551 = vadd.f32 %v1354, %v1445
    %v1552 = vadd.f32 %v1359, %v1445
    %v1553 = vadd.f32 %v1362, %v1445
    %v1554 = vadd.f32 %v1367, %v1445
    %v1555 = vadd.f32 %v1370, %v1445
    %v1556 = vadd.f32 %v1375, %v1445
    %v1557 = vadd.f32 %v1378, %v1445
    %v1558 = vadd.f32 %v1383, %v1445
    %v1559 = vadd.f32 %v1386, %v1445
    %v1560 = vadd.f32 %v1391, %v1445
    %v1561 = vadd.f32 %v1394, %v1445
    %v1562 = vadd.f32 %v1399, %v1445
    %v1563 = vadd.f32 %v1402, %v1445
    %v1564 = vadd.f32 %v1407, %v1445
    %v1565 = vadd.f32 %v1410, %v1445
    %v1566 = vadd.f32 %v1415, %v1445
    %v1567 = vadd.f32 %v1418, %v1445
    %v1568 = vadd.f32 %v1423, %v1445
    %v1569 = vadd.f32 %v1426, %v1445
    %v1570 = vadd.f32 %v1431, %v1445
    %v1571 = vadd.f32 %v1434, %v1445
    %v1572 = vadd.f32 %v1439, %v1445
    %v1573 = vadd.f32 %v1442, %v1445
    %v1574 = vpack.c.bf16 %v1446, %v1446
    %v1575 = vpack.c.bf16 %v1447, %v1447
    %v1576 = vpack.c.bf16 %v1448, %v1448
    %v1577 = vpack.c.bf16 %v1449, %v1449
    %v1578 = vpack.c.bf16 %v1450, %v1450
    %v1579 = vpack.c.bf16 %v1451, %v1451
    %v1580 = vpack.c.bf16 %v1452, %v1452
    %v1581 = vpack.c.bf16 %v1453, %v1453
    %v1582 = vpack.c.bf16 %v1454, %v1454
    %v1583 = vpack.c.bf16 %v1455, %v1455
    %v1584 = vpack.c.bf16 %v1456, %v1456
    %v1585 = vpack.c.bf16 %v1457, %v1457
    %v1586 = vpack.c.bf16 %v1458, %v1458
    %v1587 = vpack.c.bf16 %v1459, %v1459
    %v1588 = vpack.c.bf16 %v1460, %v1460
    %v1589 = vpack.c.bf16 %v1461, %v1461
    %v1590 = vpack.c.bf16 %v1462, %v1462
    %v1591 = vpack.c.bf16 %v1463, %v1463
    %v1592 = vpack.c.bf16 %v1464, %v1464
    %v1593 = vpack.c.bf16 %v1465, %v1465
    %v1594 = vpack.c.bf16 %v1466, %v1466
    %v1595 = vpack.c.bf16 %v1467, %v1467
    %v1596 = vpack.c.bf16 %v1468, %v1468
    %v1597 = vpack.c.bf16 %v1469, %v1469
    %v1598 = vpack.c.bf16 %v1470, %v1470
    %v1599 = vpack.c.bf16 %v1471, %v1471
    %v1600 = vpack.c.bf16 %v1472, %v1472
    %v1601 = vpack.c.bf16 %v1473, %v1473
    %v1602 = vpack.c.bf16 %v1474, %v1474
    %v1603 = vpack.c.bf16 %v1475, %v1475
    %v1604 = vpack.c.bf16 %v1476, %v1476
    %v1605 = vpack.c.bf16 %v1477, %v1477
    %v1606 = vpack.c.bf16 %v1478, %v1478
    %v1607 = vpack.c.bf16 %v1479, %v1479
    %v1608 = vpack.c.bf16 %v1480, %v1480
    %v1609 = vpack.c.bf16 %v1481, %v1481
    %v1610 = vpack.c.bf16 %v1482, %v1482
    %v1611 = vpack.c.bf16 %v1483, %v1483
    %v1612 = vpack.c.bf16 %v1484, %v1484
    %v1613 = vpack.c.bf16 %v1485, %v1485
    %v1614 = vpack.c.bf16 %v1486, %v1486
    %v1615 = vpack.c.bf16 %v1487, %v1487
    %v1616 = vpack.c.bf16 %v1488, %v1488
    %v1617 = vpack.c.bf16 %v1489, %v1489
    %v1618 = vpack.c.bf16 %v1490, %v1490
    %v1619 = vpack.c.bf16 %v1491, %v1491
    %v1620 = vpack.c.bf16 %v1492, %v1492
    %v1621 = vpack.c.bf16 %v1493, %v1493
    %v1622 = vpack.c.bf16 %v1494, %v1494
    %v1623 = vpack.c.bf16 %v1495, %v1495
    %v1624 = vpack.c.bf16 %v1496, %v1496
    %v1625 = vpack.c.bf16 %v1497, %v1497
    %v1626 = vpack.c.bf16 %v1498, %v1498
    %v1627 = vpack.c.bf16 %v1499, %v1499
    %v1628 = vpack.c.bf16 %v1500, %v1500
    %v1629 = vpack.c.bf16 %v1501, %v1501
    %v1630 = vpack.c.bf16 %v1502, %v1502
    %v1631 = vpack.c.bf16 %v1503, %v1503
    %v1632 = vpack.c.bf16 %v1504, %v1504
    %v1633 = vpack.c.bf16 %v1505, %v1505
    %v1634 = vpack.c.bf16 %v1506, %v1506
    %v1635 = vpack.c.bf16 %v1507, %v1507
    %v1636 = vpack.c.bf16 %v1508, %v1508
    %v1637 = vpack.c.bf16 %v1509, %v1509
    %v1638 = vpack.c.bf16 %v1510, %v1510
    %v1639 = vpack.c.bf16 %v1511, %v1511
    %v1640 = vpack.c.bf16 %v1512, %v1512
    %v1641 = vpack.c.bf16 %v1513, %v1513
    %v1642 = vpack.c.bf16 %v1514, %v1514
    %v1643 = vpack.c.bf16 %v1515, %v1515
    %v1644 = vpack.c.bf16 %v1516, %v1516
    %v1645 = vpack.c.bf16 %v1517, %v1517
    %v1646 = vpack.c.bf16 %v1518, %v1518
    %v1647 = vpack.c.bf16 %v1519, %v1519
    %v1648 = vpack.c.bf16 %v1520, %v1520
    %v1649 = vpack.c.bf16 %v1521, %v1521
    %v1650 = vpack.c.bf16 %v1522, %v1522
    %v1651 = vpack.c.bf16 %v1523, %v1523
    %v1652 = vpack.c.bf16 %v1524, %v1524
    %v1653 = vpack.c.bf16 %v1525, %v1525
    %v1654 = vpack.c.bf16 %v1526, %v1526
    %v1655 = vpack.c.bf16 %v1527, %v1527
    %v1656 = vpack.c.bf16 %v1528, %v1528
    %v1657 = vpack.c.bf16 %v1529, %v1529
    %v1658 = vpack.c.bf16 %v1530, %v1530
    %v1659 = vpack.c.bf16 %v1531, %v1531
    %v1660 = vpack.c.bf16 %v1532, %v1532
    %v1661 = vpack.c.bf16 %v1533, %v1533
    %v1662 = vpack.c.bf16 %v1534, %v1534
    %v1663 = vpack.c.bf16 %v1535, %v1535
    %v1664 = vpack.c.bf16 %v1536, %v1536
    %v1665 = vpack.c.bf16 %v1537, %v1537
    %v1666 = vpack.c.bf16 %v1538, %v1538
    %v1667 = vpack.c.bf16 %v1539, %v1539
    %v1668 = vpack.c.bf16 %v1540, %v1540
    %v1669 = vpack.c.bf16 %v1541, %v1541
    %v1670 = vpack.c.bf16 %v1542, %v1542
    %v1671 = vpack.c.bf16 %v1543, %v1543
    %v1672 = vpack.c.bf16 %v1544, %v1544
    %v1673 = vpack.c.bf16 %v1545, %v1545
    %v1674 = vpack.c.bf16 %v1546, %v1546
    %v1675 = vpack.c.bf16 %v1547, %v1547
    %v1676 = vpack.c.bf16 %v1548, %v1548
    %v1677 = vpack.c.bf16 %v1549, %v1549
    %v1678 = vpack.c.bf16 %v1550, %v1550
    %v1679 = vpack.c.bf16 %v1551, %v1551
    %v1680 = vpack.c.bf16 %v1552, %v1552
    %v1681 = vpack.c.bf16 %v1553, %v1553
    %v1682 = vpack.c.bf16 %v1554, %v1554
    %v1683 = vpack.c.bf16 %v1555, %v1555
    %v1684 = vpack.c.bf16 %v1556, %v1556
    %v1685 = vpack.c.bf16 %v1557, %v1557
    %v1686 = vpack.c.bf16 %v1558, %v1558
    %v1687 = vpack.c.bf16 %v1559, %v1559
    %v1688 = vpack.c.bf16 %v1560, %v1560
    %v1689 = vpack.c.bf16 %v1561, %v1561
    %v1690 = vpack.c.bf16 %v1562, %v1562
    %v1691 = vpack.c.bf16 %v1563, %v1563
    %v1692 = vpack.c.bf16 %v1564, %v1564
    %v1693 = vpack.c.bf16 %v1565, %v1565
    %v1694 = vpack.c.bf16 %v1566, %v1566
    %v1695 = vpack.c.bf16 %v1567, %v1567
    %v1696 = vpack.c.bf16 %v1568, %v1568
    %v1697 = vpack.c.bf16 %v1569, %v1569
    %v1698 = vpack.c.bf16 %v1570, %v1570
    %v1699 = vpack.c.bf16 %v1571, %v1571
    %v1700 = vpack.c.bf16 %v1572, %v1572
    %v1701 = vpack.c.bf16 %v1573, %v1573
    %v1702 = vtanh.bf16.pop %v1574
    %v1703 = vtanh.bf16.pop %v1575
    %v1704 = vtanh.bf16.pop %v1576
    %v1705 = vtanh.bf16.pop %v1577
    %v1706 = vtanh.bf16.pop %v1578
    %v1707 = vtanh.bf16.pop %v1579
    %v1708 = vtanh.bf16.pop %v1580
    %v1709 = vtanh.bf16.pop %v1581
    %v1710 = vtanh.bf16.pop %v1582
    %v1711 = vtanh.bf16.pop %v1583
    %v1712 = vtanh.bf16.pop %v1584
    %v1713 = vtanh.bf16.pop %v1585
    %v1714 = vtanh.bf16.pop %v1586
    %v1715 = vtanh.bf16.pop %v1587
    %v1716 = vtanh.bf16.pop %v1588
    %v1717 = vtanh.bf16.pop %v1589
    %v1718 = vtanh.bf16.pop %v1590
    %v1719 = vtanh.bf16.pop %v1591
    %v1720 = vtanh.bf16.pop %v1592
    %v1721 = vtanh.bf16.pop %v1593
    %v1722 = vtanh.bf16.pop %v1594
    %v1723 = vtanh.bf16.pop %v1595
    %v1724 = vtanh.bf16.pop %v1596
    %v1725 = vtanh.bf16.pop %v1597
    %v1726 = vtanh.bf16.pop %v1598
    %v1727 = vtanh.bf16.pop %v1599
    %v1728 = vtanh.bf16.pop %v1600
    %v1729 = vtanh.bf16.pop %v1601
    %v1730 = vtanh.bf16.pop %v1602
    %v1731 = vtanh.bf16.pop %v1603
    %v1732 = vtanh.bf16.pop %v1604
    %v1733 = vtanh.bf16.pop %v1605
    %v1734 = vtanh.bf16.pop %v1606
    %v1735 = vtanh.bf16.pop %v1607
    %v1736 = vtanh.bf16.pop %v1608
    %v1737 = vtanh.bf16.pop %v1609
    %v1738 = vtanh.bf16.pop %v1610
    %v1739 = vtanh.bf16.pop %v1611
    %v1740 = vtanh.bf16.pop %v1612
    %v1741 = vtanh.bf16.pop %v1613
    %v1742 = vtanh.bf16.pop %v1614
    %v1743 = vtanh.bf16.pop %v1615
    %v1744 = vtanh.bf16.pop %v1616
    %v1745 = vtanh.bf16.pop %v1617
    %v1746 = vtanh.bf16.pop %v1618
    %v1747 = vtanh.bf16.pop %v1619
    %v1748 = vtanh.bf16.pop %v1620
    %v1749 = vtanh.bf16.pop %v1621
    %v1750 = vtanh.bf16.pop %v1622
    %v1751 = vtanh.bf16.pop %v1623
    %v1752 = vtanh.bf16.pop %v1624
    %v1753 = vtanh.bf16.pop %v1625
    %v1754 = vtanh.bf16.pop %v1626
    %v1755 = vtanh.bf16.pop %v1627
    %v1756 = vtanh.bf16.pop %v1628
    %v1757 = vtanh.bf16.pop %v1629
    %v1758 = vtanh.bf16.pop %v1630
    %v1759 = vtanh.bf16.pop %v1631
    %v1760 = vtanh.bf16.pop %v1632
    %v1761 = vtanh.bf16.pop %v1633
    %v1762 = vtanh.bf16.pop %v1634
    %v1763 = vtanh.bf16.pop %v1635
    %v1764 = vtanh.bf16.pop %v1636
    %v1765 = vtanh.bf16.pop %v1637
    %v1766 = vtanh.bf16.pop %v1638
    %v1767 = vtanh.bf16.pop %v1639
    %v1768 = vtanh.bf16.pop %v1640
    %v1769 = vtanh.bf16.pop %v1641
    %v1770 = vtanh.bf16.pop %v1642
    %v1771 = vtanh.bf16.pop %v1643
    %v1772 = vtanh.bf16.pop %v1644
    %v1773 = vtanh.bf16.pop %v1645
    %v1774 = vtanh.bf16.pop %v1646
    %v1775 = vtanh.bf16.pop %v1647
    %v1776 = vtanh.bf16.pop %v1648
    %v1777 = vtanh.bf16.pop %v1649
    %v1778 = vtanh.bf16.pop %v1650
    %v1779 = vtanh.bf16.pop %v1651
    %v1780 = vtanh.bf16.pop %v1652
    %v1781 = vtanh.bf16.pop %v1653
    %v1782 = vtanh.bf16.pop %v1654
    %v1783 = vtanh.bf16.pop %v1655
    %v1784 = vtanh.bf16.pop %v1656
    %v1785 = vtanh.bf16.pop %v1657
    %v1786 = vtanh.bf16.pop %v1658
    %v1787 = vtanh.bf16.pop %v1659
    %v1788 = vtanh.bf16.pop %v1660
    %v1789 = vtanh.bf16.pop %v1661
    %v1790 = vtanh.bf16.pop %v1662
    %v1791 = vtanh.bf16.pop %v1663
    %v1792 = vtanh.bf16.pop %v1664
    %v1793 = vtanh.bf16.pop %v1665
    %v1794 = vtanh.bf16.pop %v1666
    %v1795 = vtanh.bf16.pop %v1667
    %v1796 = vtanh.bf16.pop %v1668
    %v1797 = vtanh.bf16.pop %v1669
    %v1798 = vtanh.bf16.pop %v1670
    %v1799 = vtanh.bf16.pop %v1671
    %v1800 = vtanh.bf16.pop %v1672
    %v1801 = vtanh.bf16.pop %v1673
    %v1802 = vtanh.bf16.pop %v1674
    %v1803 = vtanh.bf16.pop %v1675
    %v1804 = vtanh.bf16.pop %v1676
    %v1805 = vtanh.bf16.pop %v1677
    %v1806 = vtanh.bf16.pop %v1678
    %v1807 = vtanh.bf16.pop %v1679
    %v1808 = vtanh.bf16.pop %v1680
    %v1809 = vtanh.bf16.pop %v1681
    %v1810 = vtanh.bf16.pop %v1682
    %v1811 = vtanh.bf16.pop %v1683
    %v1812 = vtanh.bf16.pop %v1684
    %v1813 = vtanh.bf16.pop %v1685
    %v1814 = vtanh.bf16.pop %v1686
    %v1815 = vtanh.bf16.pop %v1687
    %v1816 = vtanh.bf16.pop %v1688
    %v1817 = vtanh.bf16.pop %v1689
    %v1818 = vtanh.bf16.pop %v1690
    %v1819 = vtanh.bf16.pop %v1691
    %v1820 = vtanh.bf16.pop %v1692
    %v1821 = vtanh.bf16.pop %v1693
    %v1822 = vtanh.bf16.pop %v1694
    %v1823 = vtanh.bf16.pop %v1695
    %v1824 = vtanh.bf16.pop %v1696
    %v1825 = vtanh.bf16.pop %v1697
    %v1826 = vtanh.bf16.pop %v1698
    %v1827 = vtanh.bf16.pop %v1699
    %v1828 = vtanh.bf16.pop %v1700
    %v1829 = vtanh.bf16.pop %v1701
    %v1830 = vld [vmem:[%s5] sm:$0x1]
    %v1831 = vpack.c.bf16 %v1830, %v1830
    %v1833 = vpack.i.b16 %v1831, %v1831
    %v1835 = vlaneseq
    %v1836 = vshrl.u32 %v1835, 7
    %v1837 = vsub.s32 0, %v1836
    %v1838 = vrot.slane %v1833, %v1837
    %v1839 = vmul.bf16 %v1702, %v1838
    %v1840 = vmul.bf16 %v1703, %v1838
    %v1841 = vmul.bf16 %v1704, %v1838
    %v1842 = vmul.bf16 %v1705, %v1838
    %v1843 = vmul.bf16 %v1706, %v1838
    %v1844 = vmul.bf16 %v1707, %v1838
    %v1845 = vmul.bf16 %v1708, %v1838
    %v1846 = vmul.bf16 %v1709, %v1838
    %v1847 = vmul.bf16 %v1710, %v1838
    %v1848 = vmul.bf16 %v1711, %v1838
    %v1849 = vmul.bf16 %v1712, %v1838
    %v1850 = vmul.bf16 %v1713, %v1838
    %v1851 = vmul.bf16 %v1714, %v1838
    %v1852 = vmul.bf16 %v1715, %v1838
    %v1853 = vmul.bf16 %v1716, %v1838
    %v1854 = vmul.bf16 %v1717, %v1838
    %v1855 = vmul.bf16 %v1718, %v1838
    %v1856 = vmul.bf16 %v1719, %v1838
    %v1857 = vmul.bf16 %v1720, %v1838
    %v1858 = vmul.bf16 %v1721, %v1838
    %v1859 = vmul.bf16 %v1722, %v1838
    %v1860 = vmul.bf16 %v1723, %v1838
    %v1861 = vmul.bf16 %v1724, %v1838
    %v1862 = vmul.bf16 %v1725, %v1838
    %v1863 = vmul.bf16 %v1726, %v1838
    %v1864 = vmul.bf16 %v1727, %v1838
    %v1865 = vmul.bf16 %v1728, %v1838
    %v1866 = vmul.bf16 %v1729, %v1838
    %v1867 = vmul.bf16 %v1730, %v1838
    %v1868 = vmul.bf16 %v1731, %v1838
    %v1869 = vmul.bf16 %v1732, %v1838
    %v1870 = vmul.bf16 %v1733, %v1838
    %v1871 = vmul.bf16 %v1734, %v1838
    %v1872 = vmul.bf16 %v1735, %v1838
    %v1873 = vmul.bf16 %v1736, %v1838
    %v1874 = vmul.bf16 %v1737, %v1838
    %v1875 = vmul.bf16 %v1738, %v1838
    %v1876 = vmul.bf16 %v1739, %v1838
    %v1877 = vmul.bf16 %v1740, %v1838
    %v1878 = vmul.bf16 %v1741, %v1838
    %v1879 = vmul.bf16 %v1742, %v1838
    %v1880 = vmul.bf16 %v1743, %v1838
    %v1881 = vmul.bf16 %v1744, %v1838
    %v1882 = vmul.bf16 %v1745, %v1838
    %v1883 = vmul.bf16 %v1746, %v1838
    %v1884 = vmul.bf16 %v1747, %v1838
    %v1885 = vmul.bf16 %v1748, %v1838
    %v1886 = vmul.bf16 %v1749, %v1838
    %v1887 = vmul.bf16 %v1750, %v1838
    %v1888 = vmul.bf16 %v1751, %v1838
    %v1889 = vmul.bf16 %v1752, %v1838
    %v1890 = vmul.bf16 %v1753, %v1838
    %v1891 = vmul.bf16 %v1754, %v1838
    %v1892 = vmul.bf16 %v1755, %v1838
    %v1893 = vmul.bf16 %v1756, %v1838
    %v1894 = vmul.bf16 %v1757, %v1838
    %v1895 = vmul.bf16 %v1758, %v1838
    %v1896 = vmul.bf16 %v1759, %v1838
    %v1897 = vmul.bf16 %v1760, %v1838
    %v1898 = vmul.bf16 %v1761, %v1838
    %v1899 = vmul.bf16 %v1762, %v1838
    %v1900 = vmul.bf16 %v1763, %v1838
    %v1901 = vmul.bf16 %v1764, %v1838
    %v1902 = vmul.bf16 %v1765, %v1838
    %v1903 = vmul.bf16 %v1766, %v1838
    %v1904 = vmul.bf16 %v1767, %v1838
    %v1905 = vmul.bf16 %v1768, %v1838
    %v1906 = vmul.bf16 %v1769, %v1838
    %v1907 = vmul.bf16 %v1770, %v1838
    %v1908 = vmul.bf16 %v1771, %v1838
    %v1909 = vmul.bf16 %v1772, %v1838
    %v1910 = vmul.bf16 %v1773, %v1838
    %v1911 = vmul.bf16 %v1774, %v1838
    %v1912 = vmul.bf16 %v1775, %v1838
    %v1913 = vmul.bf16 %v1776, %v1838
    %v1914 = vmul.bf16 %v1777, %v1838
    %v1915 = vmul.bf16 %v1778, %v1838
    %v1916 = vmul.bf16 %v1779, %v1838
    %v1917 = vmul.bf16 %v1780, %v1838
    %v1918 = vmul.bf16 %v1781, %v1838
    %v1919 = vmul.bf16 %v1782, %v1838
    %v1920 = vmul.bf16 %v1783, %v1838
    %v1921 = vmul.bf16 %v1784, %v1838
    %v1922 = vmul.bf16 %v1785, %v1838
    %v1923 = vmul.bf16 %v1786, %v1838
    %v1924 = vmul.bf16 %v1787, %v1838
    %v1925 = vmul.bf16 %v1788, %v1838
    %v1926 = vmul.bf16 %v1789, %v1838
    %v1927 = vmul.bf16 %v1790, %v1838
    %v1928 = vmul.bf16 %v1791, %v1838
    %v1929 = vmul.bf16 %v1792, %v1838
    %v1930 = vmul.bf16 %v1793, %v1838
    %v1931 = vmul.bf16 %v1794, %v1838
    %v1932 = vmul.bf16 %v1795, %v1838
    %v1933 = vmul.bf16 %v1796, %v1838
    %v1934 = vmul.bf16 %v1797, %v1838
    %v1935 = vmul.bf16 %v1798, %v1838
    %v1936 = vmul.bf16 %v1799, %v1838
    %v1937 = vmul.bf16 %v1800, %v1838
    %v1938 = vmul.bf16 %v1801, %v1838
    %v1939 = vmul.bf16 %v1802, %v1838
    %v1940 = vmul.bf16 %v1803, %v1838
    %v1941 = vmul.bf16 %v1804, %v1838
    %v1942 = vmul.bf16 %v1805, %v1838
    %v1943 = vmul.bf16 %v1806, %v1838
    %v1944 = vmul.bf16 %v1807, %v1838
    %v1945 = vmul.bf16 %v1808, %v1838
    %v1946 = vmul.bf16 %v1809, %v1838
    %v1947 = vmul.bf16 %v1810, %v1838
    %v1948 = vmul.bf16 %v1811, %v1838
    %v1949 = vmul.bf16 %v1812, %v1838
    %v1950 = vmul.bf16 %v1813, %v1838
    %v1951 = vmul.bf16 %v1814, %v1838
    %v1952 = vmul.bf16 %v1815, %v1838
    %v1953 = vmul.bf16 %v1816, %v1838
    %v1954 = vmul.bf16 %v1817, %v1838
    %v1955 = vmul.bf16 %v1818, %v1838
    %v1956 = vmul.bf16 %v1819, %v1838
    %v1957 = vmul.bf16 %v1820, %v1838
    %v1958 = vmul.bf16 %v1821, %v1838
    %v1959 = vmul.bf16 %v1822, %v1838
    %v1960 = vmul.bf16 %v1823, %v1838
    %v1961 = vmul.bf16 %v1824, %v1838
    %v1962 = vmul.bf16 %v1825, %v1838
    %v1963 = vmul.bf16 %v1826, %v1838
    %v1964 = vmul.bf16 %v1827, %v1838
    %v1965 = vmul.bf16 %v1828, %v1838
    %v1966 = vmul.bf16 %v1829, %v1838
    %v1967 = vunpack.c.l.bf16 %v1839
    %v1968 = vunpack.c.l.bf16 %v1840
    %v1969 = vunpack.c.l.bf16 %v1841
    %v1970 = vunpack.c.l.bf16 %v1842
    %v1971 = vunpack.c.l.bf16 %v1843
    %v1972 = vunpack.c.l.bf16 %v1844
    %v1973 = vunpack.c.l.bf16 %v1845
    %v1974 = vunpack.c.l.bf16 %v1846
    %v1975 = vunpack.c.l.bf16 %v1847
    %v1976 = vunpack.c.l.bf16 %v1848
    %v1977 = vunpack.c.l.bf16 %v1849
    %v1978 = vunpack.c.l.bf16 %v1850
    %v1979 = vunpack.c.l.bf16 %v1851
    %v1980 = vunpack.c.l.bf16 %v1852
    %v1981 = vunpack.c.l.bf16 %v1853
    %v1982 = vunpack.c.l.bf16 %v1854
    %v1983 = vunpack.c.l.bf16 %v1855
    %v1984 = vunpack.c.l.bf16 %v1856
    %v1985 = vunpack.c.l.bf16 %v1857
    %v1986 = vunpack.c.l.bf16 %v1858
    %v1987 = vunpack.c.l.bf16 %v1859
    %v1988 = vunpack.c.l.bf16 %v1860
    %v1989 = vunpack.c.l.bf16 %v1861
    %v1990 = vunpack.c.l.bf16 %v1862
    %v1991 = vunpack.c.l.bf16 %v1863
    %v1992 = vunpack.c.l.bf16 %v1864
    %v1993 = vunpack.c.l.bf16 %v1865
    %v1994 = vunpack.c.l.bf16 %v1866
    %v1995 = vunpack.c.l.bf16 %v1867
    %v1996 = vunpack.c.l.bf16 %v1868
    %v1997 = vunpack.c.l.bf16 %v1869
    %v1998 = vunpack.c.l.bf16 %v1870
    %v1999 = vunpack.c.l.bf16 %v1871
    %v2000 = vunpack.c.l.bf16 %v1872
    %v2001 = vunpack.c.l.bf16 %v1873
    %v2002 = vunpack.c.l.bf16 %v1874
    %v2003 = vunpack.c.l.bf16 %v1875
    %v2004 = vunpack.c.l.bf16 %v1876
    %v2005 = vunpack.c.l.bf16 %v1877
    %v2006 = vunpack.c.l.bf16 %v1878
    %v2007 = vunpack.c.l.bf16 %v1879
    %v2008 = vunpack.c.l.bf16 %v1880
    %v2009 = vunpack.c.l.bf16 %v1881
    %v2010 = vunpack.c.l.bf16 %v1882
    %v2011 = vunpack.c.l.bf16 %v1883
    %v2012 = vunpack.c.l.bf16 %v1884
    %v2013 = vunpack.c.l.bf16 %v1885
    %v2014 = vunpack.c.l.bf16 %v1886
    %v2015 = vunpack.c.l.bf16 %v1887
    %v2016 = vunpack.c.l.bf16 %v1888
    %v2017 = vunpack.c.l.bf16 %v1889
    %v2018 = vunpack.c.l.bf16 %v1890
    %v2019 = vunpack.c.l.bf16 %v1891
    %v2020 = vunpack.c.l.bf16 %v1892
    %v2021 = vunpack.c.l.bf16 %v1893
    %v2022 = vunpack.c.l.bf16 %v1894
    %v2023 = vunpack.c.l.bf16 %v1895
    %v2024 = vunpack.c.l.bf16 %v1896
    %v2025 = vunpack.c.l.bf16 %v1897
    %v2026 = vunpack.c.l.bf16 %v1898
    %v2027 = vunpack.c.l.bf16 %v1899
    %v2028 = vunpack.c.l.bf16 %v1900
    %v2029 = vunpack.c.l.bf16 %v1901
    %v2030 = vunpack.c.l.bf16 %v1902
    %v2031 = vunpack.c.l.bf16 %v1903
    %v2032 = vunpack.c.l.bf16 %v1904
    %v2033 = vunpack.c.l.bf16 %v1905
    %v2034 = vunpack.c.l.bf16 %v1906
    %v2035 = vunpack.c.l.bf16 %v1907
    %v2036 = vunpack.c.l.bf16 %v1908
    %v2037 = vunpack.c.l.bf16 %v1909
    %v2038 = vunpack.c.l.bf16 %v1910
    %v2039 = vunpack.c.l.bf16 %v1911
    %v2040 = vunpack.c.l.bf16 %v1912
    %v2041 = vunpack.c.l.bf16 %v1913
    %v2042 = vunpack.c.l.bf16 %v1914
    %v2043 = vunpack.c.l.bf16 %v1915
    %v2044 = vunpack.c.l.bf16 %v1916
    %v2045 = vunpack.c.l.bf16 %v1917
    %v2046 = vunpack.c.l.bf16 %v1918
    %v2047 = vunpack.c.l.bf16 %v1919
    %v2048 = vunpack.c.l.bf16 %v1920
    %v2049 = vunpack.c.l.bf16 %v1921
    %v2050 = vunpack.c.l.bf16 %v1922
    %v2051 = vunpack.c.l.bf16 %v1923
    %v2052 = vunpack.c.l.bf16 %v1924
    %v2053 = vunpack.c.l.bf16 %v1925
    %v2054 = vunpack.c.l.bf16 %v1926
    %v2055 = vunpack.c.l.bf16 %v1927
    %v2056 = vunpack.c.l.bf16 %v1928
    %v2057 = vunpack.c.l.bf16 %v1929
    %v2058 = vunpack.c.l.bf16 %v1930
    %v2059 = vunpack.c.l.bf16 %v1931
    %v2060 = vunpack.c.l.bf16 %v1932
    %v2061 = vunpack.c.l.bf16 %v1933
    %v2062 = vunpack.c.l.bf16 %v1934
    %v2063 = vunpack.c.l.bf16 %v1935
    %v2064 = vunpack.c.l.bf16 %v1936
    %v2065 = vunpack.c.l.bf16 %v1937
    %v2066 = vunpack.c.l.bf16 %v1938
    %v2067 = vunpack.c.l.bf16 %v1939
    %v2068 = vunpack.c.l.bf16 %v1940
    %v2069 = vunpack.c.l.bf16 %v1941
    %v2070 = vunpack.c.l.bf16 %v1942
    %v2071 = vunpack.c.l.bf16 %v1943
    %v2072 = vunpack.c.l.bf16 %v1944
    %v2073 = vunpack.c.l.bf16 %v1945
    %v2074 = vunpack.c.l.bf16 %v1946
    %v2075 = vunpack.c.l.bf16 %v1947
    %v2076 = vunpack.c.l.bf16 %v1948
    %v2077 = vunpack.c.l.bf16 %v1949
    %v2078 = vunpack.c.l.bf16 %v1950
    %v2079 = vunpack.c.l.bf16 %v1951
    %v2080 = vunpack.c.l.bf16 %v1952
    %v2081 = vunpack.c.l.bf16 %v1953
    %v2082 = vunpack.c.l.bf16 %v1954
    %v2083 = vunpack.c.l.bf16 %v1955
    %v2084 = vunpack.c.l.bf16 %v1956
    %v2085 = vunpack.c.l.bf16 %v1957
    %v2086 = vunpack.c.l.bf16 %v1958
    %v2087 = vunpack.c.l.bf16 %v1959
    %v2088 = vunpack.c.l.bf16 %v1960
    %v2089 = vunpack.c.l.bf16 %v1961
    %v2090 = vunpack.c.l.bf16 %v1962
    %v2091 = vunpack.c.l.bf16 %v1963
    %v2092 = vunpack.c.l.bf16 %v1964
    %v2093 = vunpack.c.l.bf16 %v1965
    %v2094 = vunpack.c.l.bf16 %v1966
    %vm2095 = vcmask 261120
    %v2096 = vsel %vm2095, %v1967, 0.0
    %2097 = vadd.xlane.f32.xlu0 %v2096
    %v2098 = vpop.xlane.xlu0 %2097
    %v2099 = vsel %vm2095, %v1968, 0.0
    %2100 = vadd.xlane.f32.xlu0 %v2099
    %v2101 = vpop.xlane.xlu0 %2100
    %v2102 = vsel %vm2095, %v1969, 0.0
    %2103 = vadd.xlane.f32.xlu0 %v2102
    %v2104 = vpop.xlane.xlu0 %2103
    %v2105 = vsel %vm2095, %v1970, 0.0
    %2106 = vadd.xlane.f32.xlu0 %v2105
    %v2107 = vpop.xlane.xlu0 %2106
    %v2108 = vsel %vm2095, %v1971, 0.0
    %2109 = vadd.xlane.f32.xlu0 %v2108
    %v2110 = vpop.xlane.xlu0 %2109
    %v2111 = vsel %vm2095, %v1972, 0.0
    %2112 = vadd.xlane.f32.xlu0 %v2111
    %v2113 = vpop.xlane.xlu0 %2112
    %v2114 = vsel %vm2095, %v1973, 0.0
    %2115 = vadd.xlane.f32.xlu0 %v2114
    %v2116 = vpop.xlane.xlu0 %2115
    %v2117 = vsel %vm2095, %v1974, 0.0
    %2118 = vadd.xlane.f32.xlu0 %v2117
    %v2119 = vpop.xlane.xlu0 %2118
    %v2120 = vsel %vm2095, %v1975, 0.0
    %2121 = vadd.xlane.f32.xlu0 %v2120
    %v2122 = vpop.xlane.xlu0 %2121
    %v2123 = vsel %vm2095, %v1976, 0.0
    %2124 = vadd.xlane.f32.xlu0 %v2123
    %v2125 = vpop.xlane.xlu0 %2124
    %v2126 = vsel %vm2095, %v1977, 0.0
    %2127 = vadd.xlane.f32.xlu0 %v2126
    %v2128 = vpop.xlane.xlu0 %2127
    %v2129 = vsel %vm2095, %v1978, 0.0
    %2130 = vadd.xlane.f32.xlu0 %v2129
    %v2131 = vpop.xlane.xlu0 %2130
    %v2132 = vsel %vm2095, %v1979, 0.0
    %2133 = vadd.xlane.f32.xlu0 %v2132
    %v2134 = vpop.xlane.xlu0 %2133
    %v2135 = vsel %vm2095, %v1980, 0.0
    %2136 = vadd.xlane.f32.xlu0 %v2135
    %v2137 = vpop.xlane.xlu0 %2136
    %v2138 = vsel %vm2095, %v1981, 0.0
    %2139 = vadd.xlane.f32.xlu0 %v2138
    %v2140 = vpop.xlane.xlu0 %2139
    %v2141 = vsel %vm2095, %v1982, 0.0
    %2142 = vadd.xlane.f32.xlu0 %v2141
    %v2143 = vpop.xlane.xlu0 %2142
    %v2144 = vsel %vm2095, %v1983, 0.0
    %2145 = vadd.xlane.f32.xlu0 %v2144
    %v2146 = vpop.xlane.xlu0 %2145
    %v2147 = vsel %vm2095, %v1984, 0.0
    %2148 = vadd.xlane.f32.xlu0 %v2147
    %v2149 = vpop.xlane.xlu0 %2148
    %v2150 = vsel %vm2095, %v1985, 0.0
    %2151 = vadd.xlane.f32.xlu0 %v2150
    %v2152 = vpop.xlane.xlu0 %2151
    %v2153 = vsel %vm2095, %v1986, 0.0
    %2154 = vadd.xlane.f32.xlu0 %v2153
    %v2155 = vpop.xlane.xlu0 %2154
    %v2156 = vsel %vm2095, %v1987, 0.0
    %2157 = vadd.xlane.f32.xlu0 %v2156
    %v2158 = vpop.xlane.xlu0 %2157
    %v2159 = vsel %vm2095, %v1988, 0.0
    %2160 = vadd.xlane.f32.xlu0 %v2159
    %v2161 = vpop.xlane.xlu0 %2160
    %v2162 = vsel %vm2095, %v1989, 0.0
    %2163 = vadd.xlane.f32.xlu0 %v2162
    %v2164 = vpop.xlane.xlu0 %2163
    %v2165 = vsel %vm2095, %v1990, 0.0
    %2166 = vadd.xlane.f32.xlu0 %v2165
    %v2167 = vpop.xlane.xlu0 %2166
    %v2168 = vsel %vm2095, %v1991, 0.0
    %2169 = vadd.xlane.f32.xlu0 %v2168
    %v2170 = vpop.xlane.xlu0 %2169
    %v2171 = vsel %vm2095, %v1992, 0.0
    %2172 = vadd.xlane.f32.xlu0 %v2171
    %v2173 = vpop.xlane.xlu0 %2172
    %v2174 = vsel %vm2095, %v1993, 0.0
    %2175 = vadd.xlane.f32.xlu0 %v2174
    %v2176 = vpop.xlane.xlu0 %2175
    %v2177 = vsel %vm2095, %v1994, 0.0
    %2178 = vadd.xlane.f32.xlu0 %v2177
    %v2179 = vpop.xlane.xlu0 %2178
    %v2180 = vsel %vm2095, %v1995, 0.0
    %2181 = vadd.xlane.f32.xlu0 %v2180
    %v2182 = vpop.xlane.xlu0 %2181
    %v2183 = vsel %vm2095, %v1996, 0.0
    %2184 = vadd.xlane.f32.xlu0 %v2183
    %v2185 = vpop.xlane.xlu0 %2184
    %v2186 = vsel %vm2095, %v1997, 0.0
    %2187 = vadd.xlane.f32.xlu0 %v2186
    %v2188 = vpop.xlane.xlu0 %2187
    %v2189 = vsel %vm2095, %v1998, 0.0
    %2190 = vadd.xlane.f32.xlu0 %v2189
    %v2191 = vpop.xlane.xlu0 %2190
    %v2192 = vsel %vm2095, %v1999, 0.0
    %2193 = vadd.xlane.f32.xlu0 %v2192
    %v2194 = vpop.xlane.xlu0 %2193
    %v2195 = vsel %vm2095, %v2000, 0.0
    %2196 = vadd.xlane.f32.xlu0 %v2195
    %v2197 = vpop.xlane.xlu0 %2196
    %v2198 = vsel %vm2095, %v2001, 0.0
    %2199 = vadd.xlane.f32.xlu0 %v2198
    %v2200 = vpop.xlane.xlu0 %2199
    %v2201 = vsel %vm2095, %v2002, 0.0
    %2202 = vadd.xlane.f32.xlu0 %v2201
    %v2203 = vpop.xlane.xlu0 %2202
    %v2204 = vsel %vm2095, %v2003, 0.0
    %2205 = vadd.xlane.f32.xlu0 %v2204
    %v2206 = vpop.xlane.xlu0 %2205
    %v2207 = vsel %vm2095, %v2004, 0.0
    %2208 = vadd.xlane.f32.xlu0 %v2207
    %v2209 = vpop.xlane.xlu0 %2208
    %v2210 = vsel %vm2095, %v2005, 0.0
    %2211 = vadd.xlane.f32.xlu0 %v2210
    %v2212 = vpop.xlane.xlu0 %2211
    %v2213 = vsel %vm2095, %v2006, 0.0
    %2214 = vadd.xlane.f32.xlu0 %v2213
    %v2215 = vpop.xlane.xlu0 %2214
    %v2216 = vsel %vm2095, %v2007, 0.0
    %2217 = vadd.xlane.f32.xlu0 %v2216
    %v2218 = vpop.xlane.xlu0 %2217
    %v2219 = vsel %vm2095, %v2008, 0.0
    %2220 = vadd.xlane.f32.xlu0 %v2219
    %v2221 = vpop.xlane.xlu0 %2220
    %v2222 = vsel %vm2095, %v2009, 0.0
    %2223 = vadd.xlane.f32.xlu0 %v2222
    %v2224 = vpop.xlane.xlu0 %2223
    %v2225 = vsel %vm2095, %v2010, 0.0
    %2226 = vadd.xlane.f32.xlu0 %v2225
    %v2227 = vpop.xlane.xlu0 %2226
    %v2228 = vsel %vm2095, %v2011, 0.0
    %2229 = vadd.xlane.f32.xlu0 %v2228
    %v2230 = vpop.xlane.xlu0 %2229
    %v2231 = vsel %vm2095, %v2012, 0.0
    %2232 = vadd.xlane.f32.xlu0 %v2231
    %v2233 = vpop.xlane.xlu0 %2232
    %v2234 = vsel %vm2095, %v2013, 0.0
    %2235 = vadd.xlane.f32.xlu0 %v2234
    %v2236 = vpop.xlane.xlu0 %2235
    %v2237 = vsel %vm2095, %v2014, 0.0
    %2238 = vadd.xlane.f32.xlu0 %v2237
    %v2239 = vpop.xlane.xlu0 %2238
    %v2240 = vsel %vm2095, %v2015, 0.0
    %2241 = vadd.xlane.f32.xlu0 %v2240
    %v2242 = vpop.xlane.xlu0 %2241
    %v2243 = vsel %vm2095, %v2016, 0.0
    %2244 = vadd.xlane.f32.xlu0 %v2243
    %v2245 = vpop.xlane.xlu0 %2244
    %v2246 = vsel %vm2095, %v2017, 0.0
    %2247 = vadd.xlane.f32.xlu0 %v2246
    %v2248 = vpop.xlane.xlu0 %2247
    %v2249 = vsel %vm2095, %v2018, 0.0
    %2250 = vadd.xlane.f32.xlu0 %v2249
    %v2251 = vpop.xlane.xlu0 %2250
    %v2252 = vsel %vm2095, %v2019, 0.0
    %2253 = vadd.xlane.f32.xlu0 %v2252
    %v2254 = vpop.xlane.xlu0 %2253
    %v2255 = vsel %vm2095, %v2020, 0.0
    %2256 = vadd.xlane.f32.xlu0 %v2255
    %v2257 = vpop.xlane.xlu0 %2256
    %v2258 = vsel %vm2095, %v2021, 0.0
    %2259 = vadd.xlane.f32.xlu0 %v2258
    %v2260 = vpop.xlane.xlu0 %2259
    %v2261 = vsel %vm2095, %v2022, 0.0
    %2262 = vadd.xlane.f32.xlu0 %v2261
    %v2263 = vpop.xlane.xlu0 %2262
    %v2264 = vsel %vm2095, %v2023, 0.0
    %2265 = vadd.xlane.f32.xlu0 %v2264
    %v2266 = vpop.xlane.xlu0 %2265
    %v2267 = vsel %vm2095, %v2024, 0.0
    %2268 = vadd.xlane.f32.xlu0 %v2267
    %v2269 = vpop.xlane.xlu0 %2268
    %v2270 = vsel %vm2095, %v2025, 0.0
    %2271 = vadd.xlane.f32.xlu0 %v2270
    %v2272 = vpop.xlane.xlu0 %2271
    %v2273 = vsel %vm2095, %v2026, 0.0
    %2274 = vadd.xlane.f32.xlu0 %v2273
    %v2275 = vpop.xlane.xlu0 %2274
    %v2276 = vsel %vm2095, %v2027, 0.0
    %2277 = vadd.xlane.f32.xlu0 %v2276
    %v2278 = vpop.xlane.xlu0 %2277
    %v2279 = vsel %vm2095, %v2028, 0.0
    %2280 = vadd.xlane.f32.xlu0 %v2279
    %v2281 = vpop.xlane.xlu0 %2280
    %v2282 = vsel %vm2095, %v2029, 0.0
    %2283 = vadd.xlane.f32.xlu0 %v2282
    %v2284 = vpop.xlane.xlu0 %2283
    %v2285 = vsel %vm2095, %v2030, 0.0
    %2286 = vadd.xlane.f32.xlu0 %v2285
    %v2287 = vpop.xlane.xlu0 %2286
    %v2288 = vsel %vm2095, %v2031, 0.0
    %2289 = vadd.xlane.f32.xlu0 %v2288
    %v2290 = vpop.xlane.xlu0 %2289
    %v2291 = vsel %vm2095, %v2032, 0.0
    %2292 = vadd.xlane.f32.xlu0 %v2291
    %v2293 = vpop.xlane.xlu0 %2292
    %v2294 = vsel %vm2095, %v2033, 0.0
    %2295 = vadd.xlane.f32.xlu0 %v2294
    %v2296 = vpop.xlane.xlu0 %2295
    %v2297 = vsel %vm2095, %v2034, 0.0
    %2298 = vadd.xlane.f32.xlu0 %v2297
    %v2299 = vpop.xlane.xlu0 %2298
    %v2300 = vsel %vm2095, %v2035, 0.0
    %2301 = vadd.xlane.f32.xlu0 %v2300
    %v2302 = vpop.xlane.xlu0 %2301
    %v2303 = vsel %vm2095, %v2036, 0.0
    %2304 = vadd.xlane.f32.xlu0 %v2303
    %v2305 = vpop.xlane.xlu0 %2304
    %v2306 = vsel %vm2095, %v2037, 0.0
    %2307 = vadd.xlane.f32.xlu0 %v2306
    %v2308 = vpop.xlane.xlu0 %2307
    %v2309 = vsel %vm2095, %v2038, 0.0
    %2310 = vadd.xlane.f32.xlu0 %v2309
    %v2311 = vpop.xlane.xlu0 %2310
    %v2312 = vsel %vm2095, %v2039, 0.0
    %2313 = vadd.xlane.f32.xlu0 %v2312
    %v2314 = vpop.xlane.xlu0 %2313
    %v2315 = vsel %vm2095, %v2040, 0.0
    %2316 = vadd.xlane.f32.xlu0 %v2315
    %v2317 = vpop.xlane.xlu0 %2316
    %v2318 = vsel %vm2095, %v2041, 0.0
    %2319 = vadd.xlane.f32.xlu0 %v2318
    %v2320 = vpop.xlane.xlu0 %2319
    %v2321 = vsel %vm2095, %v2042, 0.0
    %2322 = vadd.xlane.f32.xlu0 %v2321
    %v2323 = vpop.xlane.xlu0 %2322
    %v2324 = vsel %vm2095, %v2043, 0.0
    %2325 = vadd.xlane.f32.xlu0 %v2324
    %v2326 = vpop.xlane.xlu0 %2325
    %v2327 = vsel %vm2095, %v2044, 0.0
    %2328 = vadd.xlane.f32.xlu0 %v2327
    %v2329 = vpop.xlane.xlu0 %2328
    %v2330 = vsel %vm2095, %v2045, 0.0
    %2331 = vadd.xlane.f32.xlu0 %v2330
    %v2332 = vpop.xlane.xlu0 %2331
    %v2333 = vsel %vm2095, %v2046, 0.0
    %2334 = vadd.xlane.f32.xlu0 %v2333
    %v2335 = vpop.xlane.xlu0 %2334
    %v2336 = vsel %vm2095, %v2047, 0.0
    %2337 = vadd.xlane.f32.xlu0 %v2336
    %v2338 = vpop.xlane.xlu0 %2337
    %v2339 = vsel %vm2095, %v2048, 0.0
    %2340 = vadd.xlane.f32.xlu0 %v2339
    %v2341 = vpop.xlane.xlu0 %2340
    %v2342 = vsel %vm2095, %v2049, 0.0
    %2343 = vadd.xlane.f32.xlu0 %v2342
    %v2344 = vpop.xlane.xlu0 %2343
    %v2345 = vsel %vm2095, %v2050, 0.0
    %2346 = vadd.xlane.f32.xlu0 %v2345
    %v2347 = vpop.xlane.xlu0 %2346
    %v2348 = vsel %vm2095, %v2051, 0.0
    %2349 = vadd.xlane.f32.xlu0 %v2348
    %v2350 = vpop.xlane.xlu0 %2349
    %v2351 = vsel %vm2095, %v2052, 0.0
    %2352 = vadd.xlane.f32.xlu0 %v2351
    %v2353 = vpop.xlane.xlu0 %2352
    %v2354 = vsel %vm2095, %v2053, 0.0
    %2355 = vadd.xlane.f32.xlu0 %v2354
    %v2356 = vpop.xlane.xlu0 %2355
    %v2357 = vsel %vm2095, %v2054, 0.0
    %2358 = vadd.xlane.f32.xlu0 %v2357
    %v2359 = vpop.xlane.xlu0 %2358
    %v2360 = vsel %vm2095, %v2055, 0.0
    %2361 = vadd.xlane.f32.xlu0 %v2360
    %v2362 = vpop.xlane.xlu0 %2361
    %v2363 = vsel %vm2095, %v2056, 0.0
    %2364 = vadd.xlane.f32.xlu0 %v2363
    %v2365 = vpop.xlane.xlu0 %2364
    %v2366 = vsel %vm2095, %v2057, 0.0
    %2367 = vadd.xlane.f32.xlu0 %v2366
    %v2368 = vpop.xlane.xlu0 %2367
    %v2369 = vsel %vm2095, %v2058, 0.0
    %2370 = vadd.xlane.f32.xlu0 %v2369
    %v2371 = vpop.xlane.xlu0 %2370
    %v2372 = vsel %vm2095, %v2059, 0.0
    %2373 = vadd.xlane.f32.xlu0 %v2372
    %v2374 = vpop.xlane.xlu0 %2373
    %v2375 = vsel %vm2095, %v2060, 0.0
    %2376 = vadd.xlane.f32.xlu0 %v2375
    %v2377 = vpop.xlane.xlu0 %2376
    %v2378 = vsel %vm2095, %v2061, 0.0
    %2379 = vadd.xlane.f32.xlu0 %v2378
    %v2380 = vpop.xlane.xlu0 %2379
    %v2381 = vsel %vm2095, %v2062, 0.0
    %2382 = vadd.xlane.f32.xlu0 %v2381
    %v2383 = vpop.xlane.xlu0 %2382
    %v2384 = vsel %vm2095, %v2063, 0.0
    %2385 = vadd.xlane.f32.xlu0 %v2384
    %v2386 = vpop.xlane.xlu0 %2385
    %v2387 = vsel %vm2095, %v2064, 0.0
    %2388 = vadd.xlane.f32.xlu0 %v2387
    %v2389 = vpop.xlane.xlu0 %2388
    %v2390 = vsel %vm2095, %v2065, 0.0
    %2391 = vadd.xlane.f32.xlu0 %v2390
    %v2392 = vpop.xlane.xlu0 %2391
    %v2393 = vsel %vm2095, %v2066, 0.0
    %2394 = vadd.xlane.f32.xlu0 %v2393
    %v2395 = vpop.xlane.xlu0 %2394
    %v2396 = vsel %vm2095, %v2067, 0.0
    %2397 = vadd.xlane.f32.xlu0 %v2396
    %v2398 = vpop.xlane.xlu0 %2397
    %v2399 = vsel %vm2095, %v2068, 0.0
    %2400 = vadd.xlane.f32.xlu0 %v2399
    %v2401 = vpop.xlane.xlu0 %2400
    %v2402 = vsel %vm2095, %v2069, 0.0
    %2403 = vadd.xlane.f32.xlu0 %v2402
    %v2404 = vpop.xlane.xlu0 %2403
    %v2405 = vsel %vm2095, %v2070, 0.0
    %2406 = vadd.xlane.f32.xlu0 %v2405
    %v2407 = vpop.xlane.xlu0 %2406
    %v2408 = vsel %vm2095, %v2071, 0.0
    %2409 = vadd.xlane.f32.xlu0 %v2408
    %v2410 = vpop.xlane.xlu0 %2409
    %v2411 = vsel %vm2095, %v2072, 0.0
    %2412 = vadd.xlane.f32.xlu0 %v2411
    %v2413 = vpop.xlane.xlu0 %2412
    %v2414 = vsel %vm2095, %v2073, 0.0
    %2415 = vadd.xlane.f32.xlu0 %v2414
    %v2416 = vpop.xlane.xlu0 %2415
    %v2417 = vsel %vm2095, %v2074, 0.0
    %2418 = vadd.xlane.f32.xlu0 %v2417
    %v2419 = vpop.xlane.xlu0 %2418
    %v2420 = vsel %vm2095, %v2075, 0.0
    %2421 = vadd.xlane.f32.xlu0 %v2420
    %v2422 = vpop.xlane.xlu0 %2421
    %v2423 = vsel %vm2095, %v2076, 0.0
    %2424 = vadd.xlane.f32.xlu0 %v2423
    %v2425 = vpop.xlane.xlu0 %2424
    %v2426 = vsel %vm2095, %v2077, 0.0
    %2427 = vadd.xlane.f32.xlu0 %v2426
    %v2428 = vpop.xlane.xlu0 %2427
    %v2429 = vsel %vm2095, %v2078, 0.0
    %2430 = vadd.xlane.f32.xlu0 %v2429
    %v2431 = vpop.xlane.xlu0 %2430
    %v2432 = vsel %vm2095, %v2079, 0.0
    %2433 = vadd.xlane.f32.xlu0 %v2432
    %v2434 = vpop.xlane.xlu0 %2433
    %v2435 = vsel %vm2095, %v2080, 0.0
    %2436 = vadd.xlane.f32.xlu0 %v2435
    %v2437 = vpop.xlane.xlu0 %2436
    %v2438 = vsel %vm2095, %v2081, 0.0
    %2439 = vadd.xlane.f32.xlu0 %v2438
    %v2440 = vpop.xlane.xlu0 %2439
    %v2441 = vsel %vm2095, %v2082, 0.0
    %2442 = vadd.xlane.f32.xlu0 %v2441
    %v2443 = vpop.xlane.xlu0 %2442
    %v2444 = vsel %vm2095, %v2083, 0.0
    %2445 = vadd.xlane.f32.xlu0 %v2444
    %v2446 = vpop.xlane.xlu0 %2445
    %v2447 = vsel %vm2095, %v2084, 0.0
    %2448 = vadd.xlane.f32.xlu0 %v2447
    %v2449 = vpop.xlane.xlu0 %2448
    %v2450 = vsel %vm2095, %v2085, 0.0
    %2451 = vadd.xlane.f32.xlu0 %v2450
    %v2452 = vpop.xlane.xlu0 %2451
    %v2453 = vsel %vm2095, %v2086, 0.0
    %2454 = vadd.xlane.f32.xlu0 %v2453
    %v2455 = vpop.xlane.xlu0 %2454
    %v2456 = vsel %vm2095, %v2087, 0.0
    %2457 = vadd.xlane.f32.xlu0 %v2456
    %v2458 = vpop.xlane.xlu0 %2457
    %v2459 = vsel %vm2095, %v2088, 0.0
    %2460 = vadd.xlane.f32.xlu0 %v2459
    %v2461 = vpop.xlane.xlu0 %2460
    %v2462 = vsel %vm2095, %v2089, 0.0
    %2463 = vadd.xlane.f32.xlu0 %v2462
    %v2464 = vpop.xlane.xlu0 %2463
    %v2465 = vsel %vm2095, %v2090, 0.0
    %2466 = vadd.xlane.f32.xlu0 %v2465
    %v2467 = vpop.xlane.xlu0 %2466
    %v2468 = vsel %vm2095, %v2091, 0.0
    %2469 = vadd.xlane.f32.xlu0 %v2468
    %v2470 = vpop.xlane.xlu0 %2469
    %v2471 = vsel %vm2095, %v2092, 0.0
    %2472 = vadd.xlane.f32.xlu0 %v2471
    %v2473 = vpop.xlane.xlu0 %2472
    %v2474 = vsel %vm2095, %v2093, 0.0
    %2475 = vadd.xlane.f32.xlu0 %v2474
    %v2476 = vpop.xlane.xlu0 %2475
    %v2477 = vsel %vm2095, %v2094, 0.0
    %2478 = vadd.xlane.f32.xlu0 %v2477
    %v2479 = vpop.xlane.xlu0 %2478
    %s2480 = smul.u32 0, 128
    %v2609 = vlaneseq
    %v2610 = vand.u32 %v2609, 127
    %v2611 = vlaneseq
    %v2612 = vshrl.u32 %v2611, 7
    %v2613 = vsub.s32 %v2610, %v2612
    %v2614 = vrot.slane %v2098, %v2613
    %v2615 = vlaneseq
    %v2616 = vshrl.u32 %v2615, 7
    %v2617 = vsub.s32 %v2610, %v2616
    %v2618 = vrot.slane %v2101, %v2617
    %v2619 = vlaneseq
    %v2620 = vshrl.u32 %v2619, 7
    %v2621 = vsub.s32 %v2610, %v2620
    %v2622 = vrot.slane %v2104, %v2621
    %v2623 = vlaneseq
    %v2624 = vshrl.u32 %v2623, 7
    %v2625 = vsub.s32 %v2610, %v2624
    %v2626 = vrot.slane %v2107, %v2625
    %v2627 = vlaneseq
    %v2628 = vshrl.u32 %v2627, 7
    %v2629 = vsub.s32 %v2610, %v2628
    %v2630 = vrot.slane %v2110, %v2629
    %v2631 = vlaneseq
    %v2632 = vshrl.u32 %v2631, 7
    %v2633 = vsub.s32 %v2610, %v2632
    %v2634 = vrot.slane %v2113, %v2633
    %v2635 = vlaneseq
    %v2636 = vshrl.u32 %v2635, 7
    %v2637 = vsub.s32 %v2610, %v2636
    %v2638 = vrot.slane %v2116, %v2637
    %v2639 = vlaneseq
    %v2640 = vshrl.u32 %v2639, 7
    %v2641 = vsub.s32 %v2610, %v2640
    %v2642 = vrot.slane %v2119, %v2641
    %v2643 = vlaneseq
    %v2644 = vshrl.u32 %v2643, 7
    %v2645 = vsub.s32 %v2610, %v2644
    %v2646 = vrot.slane %v2122, %v2645
    %v2647 = vlaneseq
    %v2648 = vshrl.u32 %v2647, 7
    %v2649 = vsub.s32 %v2610, %v2648
    %v2650 = vrot.slane %v2125, %v2649
    %v2651 = vlaneseq
    %v2652 = vshrl.u32 %v2651, 7
    %v2653 = vsub.s32 %v2610, %v2652
    %v2654 = vrot.slane %v2128, %v2653
    %v2655 = vlaneseq
    %v2656 = vshrl.u32 %v2655, 7
    %v2657 = vsub.s32 %v2610, %v2656
    %v2658 = vrot.slane %v2131, %v2657
    %v2659 = vlaneseq
    %v2660 = vshrl.u32 %v2659, 7
    %v2661 = vsub.s32 %v2610, %v2660
    %v2662 = vrot.slane %v2134, %v2661
    %v2663 = vlaneseq
    %v2664 = vshrl.u32 %v2663, 7
    %v2665 = vsub.s32 %v2610, %v2664
    %v2666 = vrot.slane %v2137, %v2665
    %v2667 = vlaneseq
    %v2668 = vshrl.u32 %v2667, 7
    %v2669 = vsub.s32 %v2610, %v2668
    %v2670 = vrot.slane %v2140, %v2669
    %v2671 = vlaneseq
    %v2672 = vshrl.u32 %v2671, 7
    %v2673 = vsub.s32 %v2610, %v2672
    %v2674 = vrot.slane %v2143, %v2673
    %v2675 = vlaneseq
    %v2676 = vshrl.u32 %v2675, 7
    %v2677 = vsub.s32 %v2610, %v2676
    %v2678 = vrot.slane %v2146, %v2677
    %v2679 = vlaneseq
    %v2680 = vshrl.u32 %v2679, 7
    %v2681 = vsub.s32 %v2610, %v2680
    %v2682 = vrot.slane %v2149, %v2681
    %v2683 = vlaneseq
    %v2684 = vshrl.u32 %v2683, 7
    %v2685 = vsub.s32 %v2610, %v2684
    %v2686 = vrot.slane %v2152, %v2685
    %v2687 = vlaneseq
    %v2688 = vshrl.u32 %v2687, 7
    %v2689 = vsub.s32 %v2610, %v2688
    %v2690 = vrot.slane %v2155, %v2689
    %v2691 = vlaneseq
    %v2692 = vshrl.u32 %v2691, 7
    %v2693 = vsub.s32 %v2610, %v2692
    %v2694 = vrot.slane %v2158, %v2693
    %v2695 = vlaneseq
    %v2696 = vshrl.u32 %v2695, 7
    %v2697 = vsub.s32 %v2610, %v2696
    %v2698 = vrot.slane %v2161, %v2697
    %v2699 = vlaneseq
    %v2700 = vshrl.u32 %v2699, 7
    %v2701 = vsub.s32 %v2610, %v2700
    %v2702 = vrot.slane %v2164, %v2701
    %v2703 = vlaneseq
    %v2704 = vshrl.u32 %v2703, 7
    %v2705 = vsub.s32 %v2610, %v2704
    %v2706 = vrot.slane %v2167, %v2705
    %v2707 = vlaneseq
    %v2708 = vshrl.u32 %v2707, 7
    %v2709 = vsub.s32 %v2610, %v2708
    %v2710 = vrot.slane %v2170, %v2709
    %v2711 = vlaneseq
    %v2712 = vshrl.u32 %v2711, 7
    %v2713 = vsub.s32 %v2610, %v2712
    %v2714 = vrot.slane %v2173, %v2713
    %v2715 = vlaneseq
    %v2716 = vshrl.u32 %v2715, 7
    %v2717 = vsub.s32 %v2610, %v2716
    %v2718 = vrot.slane %v2176, %v2717
    %v2719 = vlaneseq
    %v2720 = vshrl.u32 %v2719, 7
    %v2721 = vsub.s32 %v2610, %v2720
    %v2722 = vrot.slane %v2179, %v2721
    %v2723 = vlaneseq
    %v2724 = vshrl.u32 %v2723, 7
    %v2725 = vsub.s32 %v2610, %v2724
    %v2726 = vrot.slane %v2182, %v2725
    %v2727 = vlaneseq
    %v2728 = vshrl.u32 %v2727, 7
    %v2729 = vsub.s32 %v2610, %v2728
    %v2730 = vrot.slane %v2185, %v2729
    %v2731 = vlaneseq
    %v2732 = vshrl.u32 %v2731, 7
    %v2733 = vsub.s32 %v2610, %v2732
    %v2734 = vrot.slane %v2188, %v2733
    %v2735 = vlaneseq
    %v2736 = vshrl.u32 %v2735, 7
    %v2737 = vsub.s32 %v2610, %v2736
    %v2738 = vrot.slane %v2191, %v2737
    %v2739 = vlaneseq
    %v2740 = vshrl.u32 %v2739, 7
    %v2741 = vsub.s32 %v2610, %v2740
    %v2742 = vrot.slane %v2194, %v2741
    %v2743 = vlaneseq
    %v2744 = vshrl.u32 %v2743, 7
    %v2745 = vsub.s32 %v2610, %v2744
    %v2746 = vrot.slane %v2197, %v2745
    %v2747 = vlaneseq
    %v2748 = vshrl.u32 %v2747, 7
    %v2749 = vsub.s32 %v2610, %v2748
    %v2750 = vrot.slane %v2200, %v2749
    %v2751 = vlaneseq
    %v2752 = vshrl.u32 %v2751, 7
    %v2753 = vsub.s32 %v2610, %v2752
    %v2754 = vrot.slane %v2203, %v2753
    %v2755 = vlaneseq
    %v2756 = vshrl.u32 %v2755, 7
    %v2757 = vsub.s32 %v2610, %v2756
    %v2758 = vrot.slane %v2206, %v2757
    %v2759 = vlaneseq
    %v2760 = vshrl.u32 %v2759, 7
    %v2761 = vsub.s32 %v2610, %v2760
    %v2762 = vrot.slane %v2209, %v2761
    %v2763 = vlaneseq
    %v2764 = vshrl.u32 %v2763, 7
    %v2765 = vsub.s32 %v2610, %v2764
    %v2766 = vrot.slane %v2212, %v2765
    %v2767 = vlaneseq
    %v2768 = vshrl.u32 %v2767, 7
    %v2769 = vsub.s32 %v2610, %v2768
    %v2770 = vrot.slane %v2215, %v2769
    %v2771 = vlaneseq
    %v2772 = vshrl.u32 %v2771, 7
    %v2773 = vsub.s32 %v2610, %v2772
    %v2774 = vrot.slane %v2218, %v2773
    %v2775 = vlaneseq
    %v2776 = vshrl.u32 %v2775, 7
    %v2777 = vsub.s32 %v2610, %v2776
    %v2778 = vrot.slane %v2221, %v2777
    %v2779 = vlaneseq
    %v2780 = vshrl.u32 %v2779, 7
    %v2781 = vsub.s32 %v2610, %v2780
    %v2782 = vrot.slane %v2224, %v2781
    %v2783 = vlaneseq
    %v2784 = vshrl.u32 %v2783, 7
    %v2785 = vsub.s32 %v2610, %v2784
    %v2786 = vrot.slane %v2227, %v2785
    %v2787 = vlaneseq
    %v2788 = vshrl.u32 %v2787, 7
    %v2789 = vsub.s32 %v2610, %v2788
    %v2790 = vrot.slane %v2230, %v2789
    %v2791 = vlaneseq
    %v2792 = vshrl.u32 %v2791, 7
    %v2793 = vsub.s32 %v2610, %v2792
    %v2794 = vrot.slane %v2233, %v2793
    %v2795 = vlaneseq
    %v2796 = vshrl.u32 %v2795, 7
    %v2797 = vsub.s32 %v2610, %v2796
    %v2798 = vrot.slane %v2236, %v2797
    %v2799 = vlaneseq
    %v2800 = vshrl.u32 %v2799, 7
    %v2801 = vsub.s32 %v2610, %v2800
    %v2802 = vrot.slane %v2239, %v2801
    %v2803 = vlaneseq
    %v2804 = vshrl.u32 %v2803, 7
    %v2805 = vsub.s32 %v2610, %v2804
    %v2806 = vrot.slane %v2242, %v2805
    %v2807 = vlaneseq
    %v2808 = vshrl.u32 %v2807, 7
    %v2809 = vsub.s32 %v2610, %v2808
    %v2810 = vrot.slane %v2245, %v2809
    %v2811 = vlaneseq
    %v2812 = vshrl.u32 %v2811, 7
    %v2813 = vsub.s32 %v2610, %v2812
    %v2814 = vrot.slane %v2248, %v2813
    %v2815 = vlaneseq
    %v2816 = vshrl.u32 %v2815, 7
    %v2817 = vsub.s32 %v2610, %v2816
    %v2818 = vrot.slane %v2251, %v2817
    %v2819 = vlaneseq
    %v2820 = vshrl.u32 %v2819, 7
    %v2821 = vsub.s32 %v2610, %v2820
    %v2822 = vrot.slane %v2254, %v2821
    %v2823 = vlaneseq
    %v2824 = vshrl.u32 %v2823, 7
    %v2825 = vsub.s32 %v2610, %v2824
    %v2826 = vrot.slane %v2257, %v2825
    %v2827 = vlaneseq
    %v2828 = vshrl.u32 %v2827, 7
    %v2829 = vsub.s32 %v2610, %v2828
    %v2830 = vrot.slane %v2260, %v2829
    %v2831 = vlaneseq
    %v2832 = vshrl.u32 %v2831, 7
    %v2833 = vsub.s32 %v2610, %v2832
    %v2834 = vrot.slane %v2263, %v2833
    %v2835 = vlaneseq
    %v2836 = vshrl.u32 %v2835, 7
    %v2837 = vsub.s32 %v2610, %v2836
    %v2838 = vrot.slane %v2266, %v2837
    %v2839 = vlaneseq
    %v2840 = vshrl.u32 %v2839, 7
    %v2841 = vsub.s32 %v2610, %v2840
    %v2842 = vrot.slane %v2269, %v2841
    %v2843 = vlaneseq
    %v2844 = vshrl.u32 %v2843, 7
    %v2845 = vsub.s32 %v2610, %v2844
    %v2846 = vrot.slane %v2272, %v2845
    %v2847 = vlaneseq
    %v2848 = vshrl.u32 %v2847, 7
    %v2849 = vsub.s32 %v2610, %v2848
    %v2850 = vrot.slane %v2275, %v2849
    %v2851 = vlaneseq
    %v2852 = vshrl.u32 %v2851, 7
    %v2853 = vsub.s32 %v2610, %v2852
    %v2854 = vrot.slane %v2278, %v2853
    %v2855 = vlaneseq
    %v2856 = vshrl.u32 %v2855, 7
    %v2857 = vsub.s32 %v2610, %v2856
    %v2858 = vrot.slane %v2281, %v2857
    %v2859 = vlaneseq
    %v2860 = vshrl.u32 %v2859, 7
    %v2861 = vsub.s32 %v2610, %v2860
    %v2862 = vrot.slane %v2284, %v2861
    %v2863 = vlaneseq
    %v2864 = vshrl.u32 %v2863, 7
    %v2865 = vsub.s32 %v2610, %v2864
    %v2866 = vrot.slane %v2287, %v2865
    %v2867 = vlaneseq
    %v2868 = vshrl.u32 %v2867, 7
    %v2869 = vsub.s32 %v2610, %v2868
    %v2870 = vrot.slane %v2290, %v2869
    %v2871 = vlaneseq
    %v2872 = vshrl.u32 %v2871, 7
    %v2873 = vsub.s32 %v2610, %v2872
    %v2874 = vrot.slane %v2293, %v2873
    %v2875 = vlaneseq
    %v2876 = vshrl.u32 %v2875, 7
    %v2877 = vsub.s32 %v2610, %v2876
    %v2878 = vrot.slane %v2296, %v2877
    %v2879 = vlaneseq
    %v2880 = vshrl.u32 %v2879, 7
    %v2881 = vsub.s32 %v2610, %v2880
    %v2882 = vrot.slane %v2299, %v2881
    %v2883 = vlaneseq
    %v2884 = vshrl.u32 %v2883, 7
    %v2885 = vsub.s32 %v2610, %v2884
    %v2886 = vrot.slane %v2302, %v2885
    %v2887 = vlaneseq
    %v2888 = vshrl.u32 %v2887, 7
    %v2889 = vsub.s32 %v2610, %v2888
    %v2890 = vrot.slane %v2305, %v2889
    %v2891 = vlaneseq
    %v2892 = vshrl.u32 %v2891, 7
    %v2893 = vsub.s32 %v2610, %v2892
    %v2894 = vrot.slane %v2308, %v2893
    %v2895 = vlaneseq
    %v2896 = vshrl.u32 %v2895, 7
    %v2897 = vsub.s32 %v2610, %v2896
    %v2898 = vrot.slane %v2311, %v2897
    %v2899 = vlaneseq
    %v2900 = vshrl.u32 %v2899, 7
    %v2901 = vsub.s32 %v2610, %v2900
    %v2902 = vrot.slane %v2314, %v2901
    %v2903 = vlaneseq
    %v2904 = vshrl.u32 %v2903, 7
    %v2905 = vsub.s32 %v2610, %v2904
    %v2906 = vrot.slane %v2317, %v2905
    %v2907 = vlaneseq
    %v2908 = vshrl.u32 %v2907, 7
    %v2909 = vsub.s32 %v2610, %v2908
    %v2910 = vrot.slane %v2320, %v2909
    %v2911 = vlaneseq
    %v2912 = vshrl.u32 %v2911, 7
    %v2913 = vsub.s32 %v2610, %v2912
    %v2914 = vrot.slane %v2323, %v2913
    %v2915 = vlaneseq
    %v2916 = vshrl.u32 %v2915, 7
    %v2917 = vsub.s32 %v2610, %v2916
    %v2918 = vrot.slane %v2326, %v2917
    %v2919 = vlaneseq
    %v2920 = vshrl.u32 %v2919, 7
    %v2921 = vsub.s32 %v2610, %v2920
    %v2922 = vrot.slane %v2329, %v2921
    %v2923 = vlaneseq
    %v2924 = vshrl.u32 %v2923, 7
    %v2925 = vsub.s32 %v2610, %v2924
    %v2926 = vrot.slane %v2332, %v2925
    %v2927 = vlaneseq
    %v2928 = vshrl.u32 %v2927, 7
    %v2929 = vsub.s32 %v2610, %v2928
    %v2930 = vrot.slane %v2335, %v2929
    %v2931 = vlaneseq
    %v2932 = vshrl.u32 %v2931, 7
    %v2933 = vsub.s32 %v2610, %v2932
    %v2934 = vrot.slane %v2338, %v2933
    %v2935 = vlaneseq
    %v2936 = vshrl.u32 %v2935, 7
    %v2937 = vsub.s32 %v2610, %v2936
    %v2938 = vrot.slane %v2341, %v2937
    %v2939 = vlaneseq
    %v2940 = vshrl.u32 %v2939, 7
    %v2941 = vsub.s32 %v2610, %v2940
    %v2942 = vrot.slane %v2344, %v2941
    %v2943 = vlaneseq
    %v2944 = vshrl.u32 %v2943, 7
    %v2945 = vsub.s32 %v2610, %v2944
    %v2946 = vrot.slane %v2347, %v2945
    %v2947 = vlaneseq
    %v2948 = vshrl.u32 %v2947, 7
    %v2949 = vsub.s32 %v2610, %v2948
    %v2950 = vrot.slane %v2350, %v2949
    %v2951 = vlaneseq
    %v2952 = vshrl.u32 %v2951, 7
    %v2953 = vsub.s32 %v2610, %v2952
    %v2954 = vrot.slane %v2353, %v2953
    %v2955 = vlaneseq
    %v2956 = vshrl.u32 %v2955, 7
    %v2957 = vsub.s32 %v2610, %v2956
    %v2958 = vrot.slane %v2356, %v2957
    %v2959 = vlaneseq
    %v2960 = vshrl.u32 %v2959, 7
    %v2961 = vsub.s32 %v2610, %v2960
    %v2962 = vrot.slane %v2359, %v2961
    %v2963 = vlaneseq
    %v2964 = vshrl.u32 %v2963, 7
    %v2965 = vsub.s32 %v2610, %v2964
    %v2966 = vrot.slane %v2362, %v2965
    %v2967 = vlaneseq
    %v2968 = vshrl.u32 %v2967, 7
    %v2969 = vsub.s32 %v2610, %v2968
    %v2970 = vrot.slane %v2365, %v2969
    %v2971 = vlaneseq
    %v2972 = vshrl.u32 %v2971, 7
    %v2973 = vsub.s32 %v2610, %v2972
    %v2974 = vrot.slane %v2368, %v2973
    %v2975 = vlaneseq
    %v2976 = vshrl.u32 %v2975, 7
    %v2977 = vsub.s32 %v2610, %v2976
    %v2978 = vrot.slane %v2371, %v2977
    %v2979 = vlaneseq
    %v2980 = vshrl.u32 %v2979, 7
    %v2981 = vsub.s32 %v2610, %v2980
    %v2982 = vrot.slane %v2374, %v2981
    %v2983 = vlaneseq
    %v2984 = vshrl.u32 %v2983, 7
    %v2985 = vsub.s32 %v2610, %v2984
    %v2986 = vrot.slane %v2377, %v2985
    %v2987 = vlaneseq
    %v2988 = vshrl.u32 %v2987, 7
    %v2989 = vsub.s32 %v2610, %v2988
    %v2990 = vrot.slane %v2380, %v2989
    %v2991 = vlaneseq
    %v2992 = vshrl.u32 %v2991, 7
    %v2993 = vsub.s32 %v2610, %v2992
    %v2994 = vrot.slane %v2383, %v2993
    %v2995 = vlaneseq
    %v2996 = vshrl.u32 %v2995, 7
    %v2997 = vsub.s32 %v2610, %v2996
    %v2998 = vrot.slane %v2386, %v2997
    %v2999 = vlaneseq
    %v3000 = vshrl.u32 %v2999, 7
    %v3001 = vsub.s32 %v2610, %v3000
    %v3002 = vrot.slane %v2389, %v3001
    %v3003 = vlaneseq
    %v3004 = vshrl.u32 %v3003, 7
    %v3005 = vsub.s32 %v2610, %v3004
    %v3006 = vrot.slane %v2392, %v3005
    %v3007 = vlaneseq
    %v3008 = vshrl.u32 %v3007, 7
    %v3009 = vsub.s32 %v2610, %v3008
    %v3010 = vrot.slane %v2395, %v3009
    %v3011 = vlaneseq
    %v3012 = vshrl.u32 %v3011, 7
    %v3013 = vsub.s32 %v2610, %v3012
    %v3014 = vrot.slane %v2398, %v3013
    %v3015 = vlaneseq
    %v3016 = vshrl.u32 %v3015, 7
    %v3017 = vsub.s32 %v2610, %v3016
    %v3018 = vrot.slane %v2401, %v3017
    %v3019 = vlaneseq
    %v3020 = vshrl.u32 %v3019, 7
    %v3021 = vsub.s32 %v2610, %v3020
    %v3022 = vrot.slane %v2404, %v3021
    %v3023 = vlaneseq
    %v3024 = vshrl.u32 %v3023, 7
    %v3025 = vsub.s32 %v2610, %v3024
    %v3026 = vrot.slane %v2407, %v3025
    %v3027 = vlaneseq
    %v3028 = vshrl.u32 %v3027, 7
    %v3029 = vsub.s32 %v2610, %v3028
    %v3030 = vrot.slane %v2410, %v3029
    %v3031 = vlaneseq
    %v3032 = vshrl.u32 %v3031, 7
    %v3033 = vsub.s32 %v2610, %v3032
    %v3034 = vrot.slane %v2413, %v3033
    %v3035 = vlaneseq
    %v3036 = vshrl.u32 %v3035, 7
    %v3037 = vsub.s32 %v2610, %v3036
    %v3038 = vrot.slane %v2416, %v3037
    %v3039 = vlaneseq
    %v3040 = vshrl.u32 %v3039, 7
    %v3041 = vsub.s32 %v2610, %v3040
    %v3042 = vrot.slane %v2419, %v3041
    %v3043 = vlaneseq
    %v3044 = vshrl.u32 %v3043, 7
    %v3045 = vsub.s32 %v2610, %v3044
    %v3046 = vrot.slane %v2422, %v3045
    %v3047 = vlaneseq
    %v3048 = vshrl.u32 %v3047, 7
    %v3049 = vsub.s32 %v2610, %v3048
    %v3050 = vrot.slane %v2425, %v3049
    %v3051 = vlaneseq
    %v3052 = vshrl.u32 %v3051, 7
    %v3053 = vsub.s32 %v2610, %v3052
    %v3054 = vrot.slane %v2428, %v3053
    %v3055 = vlaneseq
    %v3056 = vshrl.u32 %v3055, 7
    %v3057 = vsub.s32 %v2610, %v3056
    %v3058 = vrot.slane %v2431, %v3057
    %v3059 = vlaneseq
    %v3060 = vshrl.u32 %v3059, 7
    %v3061 = vsub.s32 %v2610, %v3060
    %v3062 = vrot.slane %v2434, %v3061
    %v3063 = vlaneseq
    %v3064 = vshrl.u32 %v3063, 7
    %v3065 = vsub.s32 %v2610, %v3064
    %v3066 = vrot.slane %v2437, %v3065
    %v3067 = vlaneseq
    %v3068 = vshrl.u32 %v3067, 7
    %v3069 = vsub.s32 %v2610, %v3068
    %v3070 = vrot.slane %v2440, %v3069
    %v3071 = vlaneseq
    %v3072 = vshrl.u32 %v3071, 7
    %v3073 = vsub.s32 %v2610, %v3072
    %v3074 = vrot.slane %v2443, %v3073
    %v3075 = vlaneseq
    %v3076 = vshrl.u32 %v3075, 7
    %v3077 = vsub.s32 %v2610, %v3076
    %v3078 = vrot.slane %v2446, %v3077
    %v3079 = vlaneseq
    %v3080 = vshrl.u32 %v3079, 7
    %v3081 = vsub.s32 %v2610, %v3080
    %v3082 = vrot.slane %v2449, %v3081
    %v3083 = vlaneseq
    %v3084 = vshrl.u32 %v3083, 7
    %v3085 = vsub.s32 %v2610, %v3084
    %v3086 = vrot.slane %v2452, %v3085
    %v3087 = vlaneseq
    %v3088 = vshrl.u32 %v3087, 7
    %v3089 = vsub.s32 %v2610, %v3088
    %v3090 = vrot.slane %v2455, %v3089
    %v3091 = vlaneseq
    %v3092 = vshrl.u32 %v3091, 7
    %v3093 = vsub.s32 %v2610, %v3092
    %v3094 = vrot.slane %v2458, %v3093
    %v3095 = vlaneseq
    %v3096 = vshrl.u32 %v3095, 7
    %v3097 = vsub.s32 %v2610, %v3096
    %v3098 = vrot.slane %v2461, %v3097
    %v3099 = vlaneseq
    %v3100 = vshrl.u32 %v3099, 7
    %v3101 = vsub.s32 %v2610, %v3100
    %v3102 = vrot.slane %v2464, %v3101
    %v3103 = vlaneseq
    %v3104 = vshrl.u32 %v3103, 7
    %v3105 = vsub.s32 %v2610, %v3104
    %v3106 = vrot.slane %v2467, %v3105
    %v3107 = vlaneseq
    %v3108 = vshrl.u32 %v3107, 7
    %v3109 = vsub.s32 %v2610, %v3108
    %v3110 = vrot.slane %v2470, %v3109
    %v3111 = vlaneseq
    %v3112 = vshrl.u32 %v3111, 7
    %v3113 = vsub.s32 %v2610, %v3112
    %v3114 = vrot.slane %v2473, %v3113
    %v3115 = vlaneseq
    %v3116 = vshrl.u32 %v3115, 7
    %v3117 = vsub.s32 %v2610, %v3116
    %v3118 = vrot.slane %v2476, %v3117
    %v3119 = vlaneseq
    %v3120 = vshrl.u32 %v3119, 7
    %v3121 = vsub.s32 %v2610, %v3120
    %v3122 = vrot.slane %v2479, %v3121
    %vm3123 = vcmask 1041409
    %v3124 = vsel %vm3123, %v2618, %v2614
    %vm3125 = vcmask 1042434
    %v3126 = vsel %vm3125, %v2622, %v3124
    %vm3127 = vcmask 1043459
    %v3128 = vsel %vm3127, %v2626, %v3126
    %vm3129 = vcmask 1044484
    %v3130 = vsel %vm3129, %v2630, %v3128
    %vm3131 = vcmask 1045509
    %v3132 = vsel %vm3131, %v2634, %v3130
    %vm3133 = vcmask 1046534
    %v3134 = vsel %vm3133, %v2638, %v3132
    %vm3135 = vcmask 1047559
    %v3136 = vsel %vm3135, %v2642, %v3134
    %v3137 = vsel %vm3123, %v2650, %v2646
    %v3138 = vsel %vm3125, %v2654, %v3137
    %v3139 = vsel %vm3127, %v2658, %v3138
    %v3140 = vsel %vm3129, %v2662, %v3139
    %v3141 = vsel %vm3131, %v2666, %v3140
    %v3142 = vsel %vm3133, %v2670, %v3141
    %v3143 = vsel %vm3135, %v2674, %v3142
    %v3144 = vsel %vm3123, %v2682, %v2678
    %v3145 = vsel %vm3125, %v2686, %v3144
    %v3146 = vsel %vm3127, %v2690, %v3145
    %v3147 = vsel %vm3129, %v2694, %v3146
    %v3148 = vsel %vm3131, %v2698, %v3147
    %v3149 = vsel %vm3133, %v2702, %v3148
    %v3150 = vsel %vm3135, %v2706, %v3149
    %v3151 = vsel %vm3123, %v2714, %v2710
    %v3152 = vsel %vm3125, %v2718, %v3151
    %v3153 = vsel %vm3127, %v2722, %v3152
    %v3154 = vsel %vm3129, %v2726, %v3153
    %v3155 = vsel %vm3131, %v2730, %v3154
    %v3156 = vsel %vm3133, %v2734, %v3155
    %v3157 = vsel %vm3135, %v2738, %v3156
    %v3158 = vsel %vm3123, %v2746, %v2742
    %v3159 = vsel %vm3125, %v2750, %v3158
    %v3160 = vsel %vm3127, %v2754, %v3159
    %v3161 = vsel %vm3129, %v2758, %v3160
    %v3162 = vsel %vm3131, %v2762, %v3161
    %v3163 = vsel %vm3133, %v2766, %v3162
    %v3164 = vsel %vm3135, %v2770, %v3163
    %v3165 = vsel %vm3123, %v2778, %v2774
    %v3166 = vsel %vm3125, %v2782, %v3165
    %v3167 = vsel %vm3127, %v2786, %v3166
    %v3168 = vsel %vm3129, %v2790, %v3167
    %v3169 = vsel %vm3131, %v2794, %v3168
    %v3170 = vsel %vm3133, %v2798, %v3169
    %v3171 = vsel %vm3135, %v2802, %v3170
    %v3172 = vsel %vm3123, %v2810, %v2806
    %v3173 = vsel %vm3125, %v2814, %v3172
    %v3174 = vsel %vm3127, %v2818, %v3173
    %v3175 = vsel %vm3129, %v2822, %v3174
    %v3176 = vsel %vm3131, %v2826, %v3175
    %v3177 = vsel %vm3133, %v2830, %v3176
    %v3178 = vsel %vm3135, %v2834, %v3177
    %v3179 = vsel %vm3123, %v2842, %v2838
    %v3180 = vsel %vm3125, %v2846, %v3179
    %v3181 = vsel %vm3127, %v2850, %v3180
    %v3182 = vsel %vm3129, %v2854, %v3181
    %v3183 = vsel %vm3131, %v2858, %v3182
    %v3184 = vsel %vm3133, %v2862, %v3183
    %v3185 = vsel %vm3135, %v2866, %v3184
    %v3186 = vsel %vm3123, %v2874, %v2870
    %v3187 = vsel %vm3125, %v2878, %v3186
    %v3188 = vsel %vm3127, %v2882, %v3187
    %v3189 = vsel %vm3129, %v2886, %v3188
    %v3190 = vsel %vm3131, %v2890, %v3189
    %v3191 = vsel %vm3133, %v2894, %v3190
    %v3192 = vsel %vm3135, %v2898, %v3191
    %v3193 = vsel %vm3123, %v2906, %v2902
    %v3194 = vsel %vm3125, %v2910, %v3193
    %v3195 = vsel %vm3127, %v2914, %v3194
    %v3196 = vsel %vm3129, %v2918, %v3195
    %v3197 = vsel %vm3131, %v2922, %v3196
    %v3198 = vsel %vm3133, %v2926, %v3197
    %v3199 = vsel %vm3135, %v2930, %v3198
    %v3200 = vsel %vm3123, %v2938, %v2934
    %v3201 = vsel %vm3125, %v2942, %v3200
    %v3202 = vsel %vm3127, %v2946, %v3201
    %v3203 = vsel %vm3129, %v2950, %v3202
    %v3204 = vsel %vm3131, %v2954, %v3203
    %v3205 = vsel %vm3133, %v2958, %v3204
    %v3206 = vsel %vm3135, %v2962, %v3205
    %v3207 = vsel %vm3123, %v2970, %v2966
    %v3208 = vsel %vm3125, %v2974, %v3207
    %v3209 = vsel %vm3127, %v2978, %v3208
    %v3210 = vsel %vm3129, %v2982, %v3209
    %v3211 = vsel %vm3131, %v2986, %v3210
    %v3212 = vsel %vm3133, %v2990, %v3211
    %v3213 = vsel %vm3135, %v2994, %v3212
    %v3214 = vsel %vm3123, %v3002, %v2998
    %v3215 = vsel %vm3125, %v3006, %v3214
    %v3216 = vsel %vm3127, %v3010, %v3215
    %v3217 = vsel %vm3129, %v3014, %v3216
    %v3218 = vsel %vm3131, %v3018, %v3217
    %v3219 = vsel %vm3133, %v3022, %v3218
    %v3220 = vsel %vm3135, %v3026, %v3219
    %v3221 = vsel %vm3123, %v3034, %v3030
    %v3222 = vsel %vm3125, %v3038, %v3221
    %v3223 = vsel %vm3127, %v3042, %v3222
    %v3224 = vsel %vm3129, %v3046, %v3223
    %v3225 = vsel %vm3131, %v3050, %v3224
    %v3226 = vsel %vm3133, %v3054, %v3225
    %v3227 = vsel %vm3135, %v3058, %v3226
    %v3228 = vsel %vm3123, %v3066, %v3062
    %v3229 = vsel %vm3125, %v3070, %v3228
    %v3230 = vsel %vm3127, %v3074, %v3229
    %v3231 = vsel %vm3129, %v3078, %v3230
    %v3232 = vsel %vm3131, %v3082, %v3231
    %v3233 = vsel %vm3133, %v3086, %v3232
    %v3234 = vsel %vm3135, %v3090, %v3233
    %v3235 = vsel %vm3123, %v3098, %v3094
    %v3236 = vsel %vm3125, %v3102, %v3235
    %v3237 = vsel %vm3127, %v3106, %v3236
    %v3238 = vsel %vm3129, %v3110, %v3237
    %v3239 = vsel %vm3131, %v3114, %v3238
    %v3240 = vsel %vm3133, %v3118, %v3239
    %v3241 = vsel %vm3135, %v3122, %v3240
    %3258 = vxpose.xlu0.b32.start [1/16] %v3136, 128
    %3259 = vxpose.xlu0.b32.cont [2/16] %v3143, 128
    %3260 = vxpose.xlu0.b32.cont [3/16] %v3150, 128
    %3261 = vxpose.xlu0.b32.cont [4/16] %v3157, 128
    %3262 = vxpose.xlu0.b32.cont [5/16] %v3164, 128
    %3263 = vxpose.xlu0.b32.cont [6/16] %v3171, 128
    %3264 = vxpose.xlu0.b32.cont [7/16] %v3178, 128
    %3265 = vxpose.xlu0.b32.cont [8/16] %v3185, 128
    %3266 = vxpose.xlu0.b32.cont [9/16] %v3192, 128
    %3267 = vxpose.xlu0.b32.cont [10/16] %v3199, 128
    %3268 = vxpose.xlu0.b32.cont [11/16] %v3206, 128
    %3269 = vxpose.xlu0.b32.cont [12/16] %v3213, 128
    %3270 = vxpose.xlu0.b32.cont [13/16] %v3220, 128
    %3271 = vxpose.xlu0.b32.cont [14/16] %v3227, 128
    %3272 = vxpose.xlu0.b32.cont [15/16] %v3234, 128
    %3273 = vxpose.xlu0.b32.end [16/16] %v3241, 128
    %v3274 = vpop.trf.xlu0
    %v3275 = vpop.trf.xlu0
    %v3276 = vpop.trf.xlu0
    %v3277 = vpop.trf.xlu0
    %v3278 = vpop.trf.xlu0
    %v3279 = vpop.trf.xlu0
    %v3280 = vpop.trf.xlu0
    %v3281 = vpop.trf.xlu0
    %v3282 = vpop.trf.xlu0
    %v3283 = vpop.trf.xlu0
    %v3284 = vpop.trf.xlu0
    %v3285 = vpop.trf.xlu0
    %v3286 = vpop.trf.xlu0
    %v3287 = vpop.trf.xlu0
    %v3288 = vpop.trf.xlu0
    %v3289 = vpop.trf.xlu0
    %s3290 = sshra.s32 %s2480, 7
    %s3291 = sand.u32 %s2480, 127
    %s3292 = scalar_lea.vmem [#allocation3], %s3290
    %3293 = vst [vmem:[%s3292] sm:$0xff] %v3274
    // Predicated region
    $region30: #{tpu_custom_call.1} parent=1 // pred_check
      %p3294 = pneg %p25
    $region31: #{tpu_custom_call.1} parent=1 // pred_check_branch
      %3296 = sbr.rel (%p3294) target = $region33
    $region32: #{tpu_custom_call.1} parent=1 // pred_region
      %v3297 = vld [vmem:[#allocation3] sm:$0xff]
      %vm3298 = vcmp.lt.s32.totalorder %v2610, 8
      %v3299 = vsel %vm3298, %v3297, -inf
      %3300 = vmax.xlane.f32.xlu0 %v3299
      %v3301 = vpop.xlane.xlu0 %3300
      %v3302 = vsub.f32 %v3299, %v3301
      %v3303 = vmul.f32 %v3302, 1.442695
      %v3304 = vpow.pop %v3303
      %3305 = vadd.xlane.f32.xlu0 %v3304
      %v3306 = vpop.xlane.xlu0 %3305
      %v3307 = vrcp.pop %v3306
      %v3308 = vmul.f32 %v3304, %v3307
      %3309 = vst [vmem:[#allocation4] sm:$0xff] %v3308
    $region33: #{tpu_custom_call.1} parent=1 // pred_fallthru
      _
    // Predicated region
    $region34: #{tpu_custom_call.1} parent=1 // pred_check
      _
    $region35: #{tpu_custom_call.1} parent=1 // pred_check_branch
      %3311 = sbr.rel (0) target = $region37
    $region36: #{tpu_custom_call.1} parent=1 // pred_region
      %s3313 = ssub.s32 128, 128
      %3314 = vsyncadd [#allocation5], %s3313
      %s3316 = sshll.u32 [#allocation4], 4
      %s3317 = int_to_ptr.vmem [resolvable:$true] %s3316
      %3319 = dma.vmem_to_hbm [thread:$0]  %s3317, 128, %s6, [#allocation5]
    $region37: #{tpu_custom_call.1} parent=1 // pred_fallthru
      _
    // Predicated region
    $region38: #{tpu_custom_call.1} parent=1 // pred_check
      _
    $region39: #{tpu_custom_call.1} parent=1 // pred_check_branch
      %3321 = sbr.rel (0) target = $region41
    $region40: #{tpu_custom_call.1} parent=1 // pred_region
      %3322 = dma.done [#allocation5], 128
    $region41: #{tpu_custom_call.1} parent=1 // pred_fallthru
      _
    %3323 = vsyncpa [#allocation5], 1

// kernel: tpu_custom_call.1
$region0: #{tpu_custom_call.1}
  #allocation0 [shape = 'u32[]', space=smem, size = 0x4, offset = 0x4, fixed_abs, tag = 'smem constant byte address 0x4 - core index']
  #allocation1 [shape = 'u32[144,128]{1,0:T(1,128)}', space=vmem, size = 0x12000, scoped, tag = 'internal scratch']
  #allocation2 [shape = 'f32[8,32]{1,0:T(8,128)}', space=vmem, size = 0x1000, scoped, tag = 'scratch operand']
  #allocation3 [shape = 'f32[8,128]{1,0:T(8,128)}', space=vmem, size = 0x1000, scoped, tag = 'scratch operand']
  %s0 = inlined_call_operand.vmem [shape: f32[8,32], index: 0, kind: input, shape index: {}]
  %s1 = inlined_call_operand.vmem [shape: f32[128,8,64], index: 1, kind: input, shape index: {}]
  %s2 = inlined_call_operand.vmem [shape: bf16[32,32], index: 2, kind: input, shape index: {}]
  %s3 = inlined_call_operand.vmem [shape: bf16[64,32], index: 3, kind: input, shape index: {}]
  %s4 = inlined_call_operand.vmem [shape: f32[1,32], index: 4, kind: input, shape index: {}]
  %s5 = inlined_call_operand.vmem [shape: f32[1,32], index: 5, kind: input, shape index: {}]
  %s6 = inlined_call_operand.hbm [shape: f32[8,128], index: 6, kind: output, shape index: {}]
  %s7 = sld [smem:[#allocation0]]
  $region42: #{tpu_custom_call.1} parent=0
    _
  %s9 = ssub.s32 1, %s7
  %s10 = scalar_select 0, %s9, %s7
  $region1: #{tpu_custom_call.1} parent=0
    #allocation4 [shape = 'u8[4096]{0}', space=vmem, size = 0x1000, scoped, tag = 'output window, operand 0, single buffered']
    #allocation5 [shape = 's32[1]{0}', space=sflag, size = 0x4, scoped, tag = 'scoped memory for tpu_custom_call.1']
    %11 = vsyncpa [#allocation5], 0
    // Predicated region
    $region2: #{tpu_custom_call.1} parent=1 // pred_check
      _
    $region3: #{tpu_custom_call.1} parent=1 // pred_check_branch
      %13 = sbr.rel (0) target = $region5
    $region4: #{tpu_custom_call.1} parent=1 // pred_region
      _
    $region5: #{tpu_custom_call.1} parent=1 // pred_fallthru
      _
    // Predicated region
    $region6: #{tpu_custom_call.1} parent=1 // pred_check
      _
    $region7: #{tpu_custom_call.1} parent=1 // pred_check_branch
      %15 = sbr.rel (0) target = $region9
    $region8: #{tpu_custom_call.1} parent=1 // pred_region
      _
    $region9: #{tpu_custom_call.1} parent=1 // pred_fallthru
      _
    // Predicated region
    $region10: #{tpu_custom_call.1} parent=1 // pred_check
      _
    $region11: #{tpu_custom_call.1} parent=1 // pred_check_branch
      %17 = sbr.rel (0) target = $region13
    $region12: #{tpu_custom_call.1} parent=1 // pred_region
      _
    $region13: #{tpu_custom_call.1} parent=1 // pred_fallthru
      _
    // Predicated region
    $region14: #{tpu_custom_call.1} parent=1 // pred_check
      _
    $region15: #{tpu_custom_call.1} parent=1 // pred_check_branch
      %19 = sbr.rel (0) target = $region17
    $region16: #{tpu_custom_call.1} parent=1 // pred_region
      _
    $region17: #{tpu_custom_call.1} parent=1 // pred_fallthru
      _
    // Predicated region
    $region18: #{tpu_custom_call.1} parent=1 // pred_check
      _
    $region19: #{tpu_custom_call.1} parent=1 // pred_check_branch
      %21 = sbr.rel (0) target = $region21
    $region20: #{tpu_custom_call.1} parent=1 // pred_region
      _
    $region21: #{tpu_custom_call.1} parent=1 // pred_fallthru
      _
    // Predicated region
    $region22: #{tpu_custom_call.1} parent=1 // pred_check
      _
    $region23: #{tpu_custom_call.1} parent=1 // pred_check_branch
      %23 = sbr.rel (0) target = $region25
    $region24: #{tpu_custom_call.1} parent=1 // pred_region
      _
    $region25: #{tpu_custom_call.1} parent=1 // pred_fallthru
      _
    %p25 = scmp.eq.s32.totalorder 0, 0
    // Predicated region
    $region26: #{tpu_custom_call.1} parent=1 // pred_check
      %p26 = pneg %p25
    $region27: #{tpu_custom_call.1} parent=1 // pred_check_branch
      %28 = sbr.rel (%p26) target = $region29
    $region28: #{tpu_custom_call.1} parent=1 // pred_region
      %v29 = vld [vmem:[%s0] sm:$0xff]
      %v30 = vpack.c.bf16 %v29, %v29
      %v31 = vld [vmem:[%s2] sm:$0xf]
      %v32 = vld [vmem:[%s2 + $0x4] sm:$0xf]
      %v33 = vld [vmem:[%s2 + $0x8] sm:$0xf]
      %v34 = vld [vmem:[%s2 + $0xc] sm:$0xf]
      %v35 = vld [vmem:[%s4] sm:$0x1]
      %v37 = vlaneseq
      %v38 = vshrl.u32 %v37, 7
      %v39 = vsub.s32 0, %v38
      %v40 = vrot.slane %v35, %v39
      %v46 = vunpack.c.l.b16 %v31
      %v47 = vunpack.c.l.b16 %v32
      %v48 = vunpack.c.l.b16 %v33
      %v49 = vunpack.c.l.b16 %v34
      %v50 = vpack.c.b16 %v47, %v46
      %v51 = vpack.c.b16 %v49, %v48
      %vm54 = vcmask 261120
      %v56 = vsel %vm54, %v30, 0
      %58 = vmatprep.subr.bf16.mxu0 0
      %59 = vmatpush1.bf16.msra.mxu0 0
      %60 = vmatprep.subr.bf16.mxu0 0
      %61 = vmatpush1.bf16.msra.mxu0 0
      %62 = vmatprep.subr.bf16.mxu0 0
      %63 = vmatpush1.bf16.msra.mxu0 0
      %64 = vmatprep.subr.bf16.mxu0 0
      %65 = vmatpush1.bf16.msra.mxu0 0
      %66 = vmatprep.subr.bf16.mxu0 0
      %67 = vmatpush1.bf16.msra.mxu0 0
      %68 = vmatprep.subr.bf16.mxu0 0
      %69 = vmatpush1.bf16.msra.mxu0 0
      %70 = vmatprep.subr.bf16.mxu0 0
      %71 = vmatpush1.bf16.msra.mxu0 %v51
      %72 = vmatprep.subr.bf16.mxu0 0
      %73 = vmatpush1.bf16.msra.mxu0 %v50
      %74 = vmatprep.subr.bf16.mxu0 0
      %75 = vmatpush2.bf16.msra.mxu0 0
      %76 = vmatprep.subr.bf16.mxu0 0
      %77 = vmatpush2.bf16.msra.mxu0 0
      %78 = vmatprep.subr.bf16.mxu0 0
      %79 = vmatpush2.bf16.msra.mxu0 0
      %80 = vmatprep.subr.bf16.mxu0 0
      %81 = vmatpush2.bf16.msra.mxu0 0
      %82 = vmatprep.subr.bf16.mxu0 0
      %83 = vmatpush2.bf16.msra.mxu0 0
      %84 = vmatprep.subr.bf16.mxu0 0
      %85 = vmatpush2.bf16.msra.mxu0 0
      %86 = vmatprep.subr.bf16.mxu0 0
      %87 = vmatpush2.bf16.msra.mxu0 0
      %88 = vmatprep.subr.bf16.mxu0 0
      %89 = vmatpush2.bf16.msra.mxu0 0
      %90 = vmatprep.mubr.bf16.mxu0 0
      %91 = vmatmul.mubr.bf16.gmra.mxu0 %v56
      %v92 = vpop.f32.mrf.mxu0
      %v93 = vadd.f32 %v40, %v92
      %v94 = vpop.f32.mrf.mxu0
      %v95 = vpop.f32.mrf.mxu0
      %v96 = vpop.f32.mrf.mxu0
      %97 = vdwg.mxu0
      %98 = vst.msk [vmem:[#allocation2] sm:$0xff] %vm54, %v93
    $region29: #{tpu_custom_call.1} parent=1 // pred_fallthru
      _
    %v99 = vld [vmem:[%s1] sm:$0xff]
    %v100 = vld [vmem:[%s1 + $0x8] sm:$0xff]
    %v101 = vld [vmem:[%s1 + $0x10] sm:$0xff]
    %v102 = vld [vmem:[%s1 + $0x18] sm:$0xff]
    %v103 = vld [vmem:[%s1 + $0x20] sm:$0xff]
    %v104 = vld [vmem:[%s1 + $0x28] sm:$0xff]
    %v105 = vld [vmem:[%s1 + $0x30] sm:$0xff]
    %v106 = vld [vmem:[%s1 + $0x38] sm:$0xff]
    %v107 = vld [vmem:[%s1 + $0x40] sm:$0xff]
    %v108 = vld [vmem:[%s1 + $0x48] sm:$0xff]
    %v109 = vld [vmem:[%s1 + $0x50] sm:$0xff]
    %v110 = vld [vmem:[%s1 + $0x58] sm:$0xff]
    %v111 = vld [vmem:[%s1 + $0x60] sm:$0xff]
    %v112 = vld [vmem:[%s1 + $0x68] sm:$0xff]
    %v113 = vld [vmem:[%s1 + $0x70] sm:$0xff]
    %v114 = vld [vmem:[%s1 + $0x78] sm:$0xff]
    %v115 = vld [vmem:[%s1 + $0x80] sm:$0xff]
    %v116 = vld [vmem:[%s1 + $0x88] sm:$0xff]
    %v117 = vld [vmem:[%s1 + $0x90] sm:$0xff]
    %v118 = vld [vmem:[%s1 + $0x98] sm:$0xff]
    %v119 = vld [vmem:[%s1 + $0xa0] sm:$0xff]
    %v120 = vld [vmem:[%s1 + $0xa8] sm:$0xff]
    %v121 = vld [vmem:[%s1 + $0xb0] sm:$0xff]
    %v122 = vld [vmem:[%s1 + $0xb8] sm:$0xff]
    %v123 = vld [vmem:[%s1 + $0xc0] sm:$0xff]
    %v124 = vld [vmem:[%s1 + $0xc8] sm:$0xff]
    %v125 = vld [vmem:[%s1 + $0xd0] sm:$0xff]
    %v126 = vld [vmem:[%s1 + $0xd8] sm:$0xff]
    %v127 = vld [vmem:[%s1 + $0xe0] sm:$0xff]
    %v128 = vld [vmem:[%s1 + $0xe8] sm:$0xff]
    %v129 = vld [vmem:[%s1 + $0xf0] sm:$0xff]
    %v130 = vld [vmem:[%s1 + $0xf8] sm:$0xff]
    %v131 = vld [vmem:[%s1 + $0x100] sm:$0xff]
    %v132 = vld [vmem:[%s1 + $0x108] sm:$0xff]
    %v133 = vld [vmem:[%s1 + $0x110] sm:$0xff]
    %v134 = vld [vmem:[%s1 + $0x118] sm:$0xff]
    %v135 = vld [vmem:[%s1 + $0x120] sm:$0xff]
    %v136 = vld [vmem:[%s1 + $0x128] sm:$0xff]
    %v137 = vld [vmem:[%s1 + $0x130] sm:$0xff]
    %v138 = vld [vmem:[%s1 + $0x138] sm:$0xff]
    %v139 = vld [vmem:[%s1 + $0x140] sm:$0xff]
    %v140 = vld [vmem:[%s1 + $0x148] sm:$0xff]
    %v141 = vld [vmem:[%s1 + $0x150] sm:$0xff]
    %v142 = vld [vmem:[%s1 + $0x158] sm:$0xff]
    %v143 = vld [vmem:[%s1 + $0x160] sm:$0xff]
    %v144 = vld [vmem:[%s1 + $0x168] sm:$0xff]
    %v145 = vld [vmem:[%s1 + $0x170] sm:$0xff]
    %v146 = vld [vmem:[%s1 + $0x178] sm:$0xff]
    %v147 = vld [vmem:[%s1 + $0x180] sm:$0xff]
    %v148 = vld [vmem:[%s1 + $0x188] sm:$0xff]
    %v149 = vld [vmem:[%s1 + $0x190] sm:$0xff]
    %v150 = vld [vmem:[%s1 + $0x198] sm:$0xff]
    %v151 = vld [vmem:[%s1 + $0x1a0] sm:$0xff]
    %v152 = vld [vmem:[%s1 + $0x1a8] sm:$0xff]
    %v153 = vld [vmem:[%s1 + $0x1b0] sm:$0xff]
    %v154 = vld [vmem:[%s1 + $0x1b8] sm:$0xff]
    %v155 = vld [vmem:[%s1 + $0x1c0] sm:$0xff]
    %v156 = vld [vmem:[%s1 + $0x1c8] sm:$0xff]
    %v157 = vld [vmem:[%s1 + $0x1d0] sm:$0xff]
    %v158 = vld [vmem:[%s1 + $0x1d8] sm:$0xff]
    %v159 = vld [vmem:[%s1 + $0x1e0] sm:$0xff]
    %v160 = vld [vmem:[%s1 + $0x1e8] sm:$0xff]
    %v161 = vld [vmem:[%s1 + $0x1f0] sm:$0xff]
    %v162 = vld [vmem:[%s1 + $0x1f8] sm:$0xff]
    %v163 = vld [vmem:[%s1 + $0x200] sm:$0xff]
    %v164 = vld [vmem:[%s1 + $0x208] sm:$0xff]
    %v165 = vld [vmem:[%s1 + $0x210] sm:$0xff]
    %v166 = vld [vmem:[%s1 + $0x218] sm:$0xff]
    %v167 = vld [vmem:[%s1 + $0x220] sm:$0xff]
    %v168 = vld [vmem:[%s1 + $0x228] sm:$0xff]
    %v169 = vld [vmem:[%s1 + $0x230] sm:$0xff]
    %v170 = vld [vmem:[%s1 + $0x238] sm:$0xff]
    %v171 = vld [vmem:[%s1 + $0x240] sm:$0xff]
    %v172 = vld [vmem:[%s1 + $0x248] sm:$0xff]
    %v173 = vld [vmem:[%s1 + $0x250] sm:$0xff]
    %v174 = vld [vmem:[%s1 + $0x258] sm:$0xff]
    %v175 = vld [vmem:[%s1 + $0x260] sm:$0xff]
    %v176 = vld [vmem:[%s1 + $0x268] sm:$0xff]
    %v177 = vld [vmem:[%s1 + $0x270] sm:$0xff]
    %v178 = vld [vmem:[%s1 + $0x278] sm:$0xff]
    %v179 = vld [vmem:[%s1 + $0x280] sm:$0xff]
    %v180 = vld [vmem:[%s1 + $0x288] sm:$0xff]
    %v181 = vld [vmem:[%s1 + $0x290] sm:$0xff]
    %v182 = vld [vmem:[%s1 + $0x298] sm:$0xff]
    %v183 = vld [vmem:[%s1 + $0x2a0] sm:$0xff]
    %v184 = vld [vmem:[%s1 + $0x2a8] sm:$0xff]
    %v185 = vld [vmem:[%s1 + $0x2b0] sm:$0xff]
    %v186 = vld [vmem:[%s1 + $0x2b8] sm:$0xff]
    %v187 = vld [vmem:[%s1 + $0x2c0] sm:$0xff]
    %v188 = vld [vmem:[%s1 + $0x2c8] sm:$0xff]
    %v189 = vld [vmem:[%s1 + $0x2d0] sm:$0xff]
    %v190 = vld [vmem:[%s1 + $0x2d8] sm:$0xff]
    %v191 = vld [vmem:[%s1 + $0x2e0] sm:$0xff]
    %v192 = vld [vmem:[%s1 + $0x2e8] sm:$0xff]
    %v193 = vld [vmem:[%s1 + $0x2f0] sm:$0xff]
    %v194 = vld [vmem:[%s1 + $0x2f8] sm:$0xff]
    %v195 = vld [vmem:[%s1 + $0x300] sm:$0xff]
    %v196 = vld [vmem:[%s1 + $0x308] sm:$0xff]
    %v197 = vld [vmem:[%s1 + $0x310] sm:$0xff]
    %v198 = vld [vmem:[%s1 + $0x318] sm:$0xff]
    %v199 = vld [vmem:[%s1 + $0x320] sm:$0xff]
    %v200 = vld [vmem:[%s1 + $0x328] sm:$0xff]
    %v201 = vld [vmem:[%s1 + $0x330] sm:$0xff]
    %v202 = vld [vmem:[%s1 + $0x338] sm:$0xff]
    %v203 = vld [vmem:[%s1 + $0x340] sm:$0xff]
    %v204 = vld [vmem:[%s1 + $0x348] sm:$0xff]
    %v205 = vld [vmem:[%s1 + $0x350] sm:$0xff]
    %v206 = vld [vmem:[%s1 + $0x358] sm:$0xff]
    %v207 = vld [vmem:[%s1 + $0x360] sm:$0xff]
    %v208 = vld [vmem:[%s1 + $0x368] sm:$0xff]
    %v209 = vld [vmem:[%s1 + $0x370] sm:$0xff]
    %v210 = vld [vmem:[%s1 + $0x378] sm:$0xff]
    %v211 = vld [vmem:[%s1 + $0x380] sm:$0xff]
    %v212 = vld [vmem:[%s1 + $0x388] sm:$0xff]
    %v213 = vld [vmem:[%s1 + $0x390] sm:$0xff]
    %v214 = vld [vmem:[%s1 + $0x398] sm:$0xff]
    %v215 = vld [vmem:[%s1 + $0x3a0] sm:$0xff]
    %v216 = vld [vmem:[%s1 + $0x3a8] sm:$0xff]
    %v217 = vld [vmem:[%s1 + $0x3b0] sm:$0xff]
    %v218 = vld [vmem:[%s1 + $0x3b8] sm:$0xff]
    %v219 = vld [vmem:[%s1 + $0x3c0] sm:$0xff]
    %v220 = vld [vmem:[%s1 + $0x3c8] sm:$0xff]
    %v221 = vld [vmem:[%s1 + $0x3d0] sm:$0xff]
    %v222 = vld [vmem:[%s1 + $0x3d8] sm:$0xff]
    %v223 = vld [vmem:[%s1 + $0x3e0] sm:$0xff]
    %v224 = vld [vmem:[%s1 + $0x3e8] sm:$0xff]
    %v225 = vld [vmem:[%s1 + $0x3f0] sm:$0xff]
    %v226 = vld [vmem:[%s1 + $0x3f8] sm:$0xff]
    %v227 = vpack.c.bf16 %v99, %v99
    %v228 = vpack.c.bf16 %v100, %v100
    %v229 = vpack.c.bf16 %v101, %v101
    %v230 = vpack.c.bf16 %v102, %v102
    %v231 = vpack.c.bf16 %v103, %v103
    %v232 = vpack.c.bf16 %v104, %v104
    %v233 = vpack.c.bf16 %v105, %v105
    %v234 = vpack.c.bf16 %v106, %v106
    %v235 = vpack.c.bf16 %v107, %v107
    %v236 = vpack.c.bf16 %v108, %v108
    %v237 = vpack.c.bf16 %v109, %v109
    %v238 = vpack.c.bf16 %v110, %v110
    %v239 = vpack.c.bf16 %v111, %v111
    %v240 = vpack.c.bf16 %v112, %v112
    %v241 = vpack.c.bf16 %v113, %v113
    %v242 = vpack.c.bf16 %v114, %v114
    %v243 = vpack.c.bf16 %v115, %v115
    %v244 = vpack.c.bf16 %v116, %v116
    %v245 = vpack.c.bf16 %v117, %v117
    %v246 = vpack.c.bf16 %v118, %v118
    %v247 = vpack.c.bf16 %v119, %v119
    %v248 = vpack.c.bf16 %v120, %v120
    %v249 = vpack.c.bf16 %v121, %v121
    %v250 = vpack.c.bf16 %v122, %v122
    %v251 = vpack.c.bf16 %v123, %v123
    %v252 = vpack.c.bf16 %v124, %v124
    %v253 = vpack.c.bf16 %v125, %v125
    %v254 = vpack.c.bf16 %v126, %v126
    %v255 = vpack.c.bf16 %v127, %v127
    %v256 = vpack.c.bf16 %v128, %v128
    %v257 = vpack.c.bf16 %v129, %v129
    %v258 = vpack.c.bf16 %v130, %v130
    %v259 = vpack.c.bf16 %v131, %v131
    %v260 = vpack.c.bf16 %v132, %v132
    %v261 = vpack.c.bf16 %v133, %v133
    %v262 = vpack.c.bf16 %v134, %v134
    %v263 = vpack.c.bf16 %v135, %v135
    %v264 = vpack.c.bf16 %v136, %v136
    %v265 = vpack.c.bf16 %v137, %v137
    %v266 = vpack.c.bf16 %v138, %v138
    %v267 = vpack.c.bf16 %v139, %v139
    %v268 = vpack.c.bf16 %v140, %v140
    %v269 = vpack.c.bf16 %v141, %v141
    %v270 = vpack.c.bf16 %v142, %v142
    %v271 = vpack.c.bf16 %v143, %v143
    %v272 = vpack.c.bf16 %v144, %v144
    %v273 = vpack.c.bf16 %v145, %v145
    %v274 = vpack.c.bf16 %v146, %v146
    %v275 = vpack.c.bf16 %v147, %v147
    %v276 = vpack.c.bf16 %v148, %v148
    %v277 = vpack.c.bf16 %v149, %v149
    %v278 = vpack.c.bf16 %v150, %v150
    %v279 = vpack.c.bf16 %v151, %v151
    %v280 = vpack.c.bf16 %v152, %v152
    %v281 = vpack.c.bf16 %v153, %v153
    %v282 = vpack.c.bf16 %v154, %v154
    %v283 = vpack.c.bf16 %v155, %v155
    %v284 = vpack.c.bf16 %v156, %v156
    %v285 = vpack.c.bf16 %v157, %v157
    %v286 = vpack.c.bf16 %v158, %v158
    %v287 = vpack.c.bf16 %v159, %v159
    %v288 = vpack.c.bf16 %v160, %v160
    %v289 = vpack.c.bf16 %v161, %v161
    %v290 = vpack.c.bf16 %v162, %v162
    %v291 = vpack.c.bf16 %v163, %v163
    %v292 = vpack.c.bf16 %v164, %v164
    %v293 = vpack.c.bf16 %v165, %v165
    %v294 = vpack.c.bf16 %v166, %v166
    %v295 = vpack.c.bf16 %v167, %v167
    %v296 = vpack.c.bf16 %v168, %v168
    %v297 = vpack.c.bf16 %v169, %v169
    %v298 = vpack.c.bf16 %v170, %v170
    %v299 = vpack.c.bf16 %v171, %v171
    %v300 = vpack.c.bf16 %v172, %v172
    %v301 = vpack.c.bf16 %v173, %v173
    %v302 = vpack.c.bf16 %v174, %v174
    %v303 = vpack.c.bf16 %v175, %v175
    %v304 = vpack.c.bf16 %v176, %v176
    %v305 = vpack.c.bf16 %v177, %v177
    %v306 = vpack.c.bf16 %v178, %v178
    %v307 = vpack.c.bf16 %v179, %v179
    %v308 = vpack.c.bf16 %v180, %v180
    %v309 = vpack.c.bf16 %v181, %v181
    %v310 = vpack.c.bf16 %v182, %v182
    %v311 = vpack.c.bf16 %v183, %v183
    %v312 = vpack.c.bf16 %v184, %v184
    %v313 = vpack.c.bf16 %v185, %v185
    %v314 = vpack.c.bf16 %v186, %v186
    %v315 = vpack.c.bf16 %v187, %v187
    %v316 = vpack.c.bf16 %v188, %v188
    %v317 = vpack.c.bf16 %v189, %v189
    %v318 = vpack.c.bf16 %v190, %v190
    %v319 = vpack.c.bf16 %v191, %v191
    %v320 = vpack.c.bf16 %v192, %v192
    %v321 = vpack.c.bf16 %v193, %v193
    %v322 = vpack.c.bf16 %v194, %v194
    %v323 = vpack.c.bf16 %v195, %v195
    %v324 = vpack.c.bf16 %v196, %v196
    %v325 = vpack.c.bf16 %v197, %v197
    %v326 = vpack.c.bf16 %v198, %v198
    %v327 = vpack.c.bf16 %v199, %v199
    %v328 = vpack.c.bf16 %v200, %v200
    %v329 = vpack.c.bf16 %v201, %v201
    %v330 = vpack.c.bf16 %v202, %v202
    %v331 = vpack.c.bf16 %v203, %v203
    %v332 = vpack.c.bf16 %v204, %v204
    %v333 = vpack.c.bf16 %v205, %v205
    %v334 = vpack.c.bf16 %v206, %v206
    %v335 = vpack.c.bf16 %v207, %v207
    %v336 = vpack.c.bf16 %v208, %v208
    %v337 = vpack.c.bf16 %v209, %v209
    %v338 = vpack.c.bf16 %v210, %v210
    %v339 = vpack.c.bf16 %v211, %v211
    %v340 = vpack.c.bf16 %v212, %v212
    %v341 = vpack.c.bf16 %v213, %v213
    %v342 = vpack.c.bf16 %v214, %v214
    %v343 = vpack.c.bf16 %v215, %v215
    %v344 = vpack.c.bf16 %v216, %v216
    %v345 = vpack.c.bf16 %v217, %v217
    %v346 = vpack.c.bf16 %v218, %v218
    %v347 = vpack.c.bf16 %v219, %v219
    %v348 = vpack.c.bf16 %v220, %v220
    %v349 = vpack.c.bf16 %v221, %v221
    %v350 = vpack.c.bf16 %v222, %v222
    %v351 = vpack.c.bf16 %v223, %v223
    %v352 = vpack.c.bf16 %v224, %v224
    %v353 = vpack.c.bf16 %v225, %v225
    %v354 = vpack.c.bf16 %v226, %v226
    %v355 = vld [vmem:[%s3] sm:$0xf]
    %v356 = vld [vmem:[%s3 + $0x4] sm:$0xf]
    %v357 = vld [vmem:[%s3 + $0x8] sm:$0xf]
    %v358 = vld [vmem:[%s3 + $0xc] sm:$0xf]
    %v359 = vld [vmem:[%s3 + $0x10] sm:$0xf]
    %v360 = vld [vmem:[%s3 + $0x14] sm:$0xf]
    %v361 = vld [vmem:[%s3 + $0x18] sm:$0xf]
    %v362 = vld [vmem:[%s3 + $0x1c] sm:$0xf]
    %v491 = vunpack.c.l.b16 %v227
    %v492 = vunpack.c.l.b16 %v228
    %v493 = vunpack.c.l.b16 %v229
    %v494 = vunpack.c.l.b16 %v230
    %v495 = vunpack.c.l.b16 %v231
    %v496 = vunpack.c.l.b16 %v232
    %v497 = vunpack.c.l.b16 %v233
    %v498 = vunpack.c.l.b16 %v234
    %v499 = vunpack.c.l.b16 %v235
    %v500 = vunpack.c.l.b16 %v236
    %v501 = vunpack.c.l.b16 %v237
    %v502 = vunpack.c.l.b16 %v238
    %v503 = vunpack.c.l.b16 %v239
    %v504 = vunpack.c.l.b16 %v240
    %v505 = vunpack.c.l.b16 %v241
    %v506 = vunpack.c.l.b16 %v242
    %v507 = vunpack.c.l.b16 %v243
    %v508 = vunpack.c.l.b16 %v244
    %v509 = vunpack.c.l.b16 %v245
    %v510 = vunpack.c.l.b16 %v246
    %v511 = vunpack.c.l.b16 %v247
    %v512 = vunpack.c.l.b16 %v248
    %v513 = vunpack.c.l.b16 %v249
    %v514 = vunpack.c.l.b16 %v250
    %v515 = vunpack.c.l.b16 %v251
    %v516 = vunpack.c.l.b16 %v252
    %v517 = vunpack.c.l.b16 %v253
    %v518 = vunpack.c.l.b16 %v254
    %v519 = vunpack.c.l.b16 %v255
    %v520 = vunpack.c.l.b16 %v256
    %v521 = vunpack.c.l.b16 %v257
    %v522 = vunpack.c.l.b16 %v258
    %v523 = vunpack.c.l.b16 %v259
    %v524 = vunpack.c.l.b16 %v260
    %v525 = vunpack.c.l.b16 %v261
    %v526 = vunpack.c.l.b16 %v262
    %v527 = vunpack.c.l.b16 %v263
    %v528 = vunpack.c.l.b16 %v264
    %v529 = vunpack.c.l.b16 %v265
    %v530 = vunpack.c.l.b16 %v266
    %v531 = vunpack.c.l.b16 %v267
    %v532 = vunpack.c.l.b16 %v268
    %v533 = vunpack.c.l.b16 %v269
    %v534 = vunpack.c.l.b16 %v270
    %v535 = vunpack.c.l.b16 %v271
    %v536 = vunpack.c.l.b16 %v272
    %v537 = vunpack.c.l.b16 %v273
    %v538 = vunpack.c.l.b16 %v274
    %v539 = vunpack.c.l.b16 %v275
    %v540 = vunpack.c.l.b16 %v276
    %v541 = vunpack.c.l.b16 %v277
    %v542 = vunpack.c.l.b16 %v278
    %v543 = vunpack.c.l.b16 %v279
    %v544 = vunpack.c.l.b16 %v280
    %v545 = vunpack.c.l.b16 %v281
    %v546 = vunpack.c.l.b16 %v282
    %v547 = vunpack.c.l.b16 %v283
    %v548 = vunpack.c.l.b16 %v284
    %v549 = vunpack.c.l.b16 %v285
    %v550 = vunpack.c.l.b16 %v286
    %v551 = vunpack.c.l.b16 %v287
    %v552 = vunpack.c.l.b16 %v288
    %v553 = vunpack.c.l.b16 %v289
    %v554 = vunpack.c.l.b16 %v290
    %v555 = vunpack.c.l.b16 %v291
    %v556 = vunpack.c.l.b16 %v292
    %v557 = vunpack.c.l.b16 %v293
    %v558 = vunpack.c.l.b16 %v294
    %v559 = vunpack.c.l.b16 %v295
    %v560 = vunpack.c.l.b16 %v296
    %v561 = vunpack.c.l.b16 %v297
    %v562 = vunpack.c.l.b16 %v298
    %v563 = vunpack.c.l.b16 %v299
    %v564 = vunpack.c.l.b16 %v300
    %v565 = vunpack.c.l.b16 %v301
    %v566 = vunpack.c.l.b16 %v302
    %v567 = vunpack.c.l.b16 %v303
    %v568 = vunpack.c.l.b16 %v304
    %v569 = vunpack.c.l.b16 %v305
    %v570 = vunpack.c.l.b16 %v306
    %v571 = vunpack.c.l.b16 %v307
    %v572 = vunpack.c.l.b16 %v308
    %v573 = vunpack.c.l.b16 %v309
    %v574 = vunpack.c.l.b16 %v310
    %v575 = vunpack.c.l.b16 %v311
    %v576 = vunpack.c.l.b16 %v312
    %v577 = vunpack.c.l.b16 %v313
    %v578 = vunpack.c.l.b16 %v314
    %v579 = vunpack.c.l.b16 %v315
    %v580 = vunpack.c.l.b16 %v316
    %v581 = vunpack.c.l.b16 %v317
    %v582 = vunpack.c.l.b16 %v318
    %v583 = vunpack.c.l.b16 %v319
    %v584 = vunpack.c.l.b16 %v320
    %v585 = vunpack.c.l.b16 %v321
    %v586 = vunpack.c.l.b16 %v322
    %v587 = vunpack.c.l.b16 %v323
    %v588 = vunpack.c.l.b16 %v324
    %v589 = vunpack.c.l.b16 %v325
    %v590 = vunpack.c.l.b16 %v326
    %v591 = vunpack.c.l.b16 %v327
    %v592 = vunpack.c.l.b16 %v328
    %v593 = vunpack.c.l.b16 %v329
    %v594 = vunpack.c.l.b16 %v330
    %v595 = vunpack.c.l.b16 %v331
    %v596 = vunpack.c.l.b16 %v332
    %v597 = vunpack.c.l.b16 %v333
    %v598 = vunpack.c.l.b16 %v334
    %v599 = vunpack.c.l.b16 %v335
    %v600 = vunpack.c.l.b16 %v336
    %v601 = vunpack.c.l.b16 %v337
    %v602 = vunpack.c.l.b16 %v338
    %v603 = vunpack.c.l.b16 %v339
    %v604 = vunpack.c.l.b16 %v340
    %v605 = vunpack.c.l.b16 %v341
    %v606 = vunpack.c.l.b16 %v342
    %v607 = vunpack.c.l.b16 %v343
    %v608 = vunpack.c.l.b16 %v344
    %v609 = vunpack.c.l.b16 %v345
    %v610 = vunpack.c.l.b16 %v346
    %v611 = vunpack.c.l.b16 %v347
    %v612 = vunpack.c.l.b16 %v348
    %v613 = vunpack.c.l.b16 %v349
    %v614 = vunpack.c.l.b16 %v350
    %v615 = vunpack.c.l.b16 %v351
    %v616 = vunpack.c.l.b16 %v352
    %v617 = vunpack.c.l.b16 %v353
    %v618 = vunpack.c.l.b16 %v354
    %v619 = vpack.c.b16 %v492, %v491
    %v620 = vpack.c.b16 %v494, %v493
    %v621 = vpack.c.b16 %v496, %v495
    %v622 = vpack.c.b16 %v498, %v497
    %v623 = vpack.c.b16 %v500, %v499
    %v624 = vpack.c.b16 %v502, %v501
    %v625 = vpack.c.b16 %v504, %v503
    %v626 = vpack.c.b16 %v506, %v505
    %v627 = vpack.c.b16 %v508, %v507
    %v628 = vpack.c.b16 %v510, %v509
    %v629 = vpack.c.b16 %v512, %v511
    %v630 = vpack.c.b16 %v514, %v513
    %v631 = vpack.c.b16 %v516, %v515
    %v632 = vpack.c.b16 %v518, %v517
    %v633 = vpack.c.b16 %v520, %v519
    %v634 = vpack.c.b16 %v522, %v521
    %v635 = vpack.c.b16 %v524, %v523
    %v636 = vpack.c.b16 %v526, %v525
    %v637 = vpack.c.b16 %v528, %v527
    %v638 = vpack.c.b16 %v530, %v529
    %v639 = vpack.c.b16 %v532, %v531
    %v640 = vpack.c.b16 %v534, %v533
    %v641 = vpack.c.b16 %v536, %v535
    %v642 = vpack.c.b16 %v538, %v537
    %v643 = vpack.c.b16 %v540, %v539
    %v644 = vpack.c.b16 %v542, %v541
    %v645 = vpack.c.b16 %v544, %v543
    %v646 = vpack.c.b16 %v546, %v545
    %v647 = vpack.c.b16 %v548, %v547
    %v648 = vpack.c.b16 %v550, %v549
    %v649 = vpack.c.b16 %v552, %v551
    %v650 = vpack.c.b16 %v554, %v553
    %v651 = vpack.c.b16 %v556, %v555
    %v652 = vpack.c.b16 %v558, %v557
    %v653 = vpack.c.b16 %v560, %v559
    %v654 = vpack.c.b16 %v562, %v561
    %v655 = vpack.c.b16 %v564, %v563
    %v656 = vpack.c.b16 %v566, %v565
    %v657 = vpack.c.b16 %v568, %v567
    %v658 = vpack.c.b16 %v570, %v569
    %v659 = vpack.c.b16 %v572, %v571
    %v660 = vpack.c.b16 %v574, %v573
    %v661 = vpack.c.b16 %v576, %v575
    %v662 = vpack.c.b16 %v578, %v577
    %v663 = vpack.c.b16 %v580, %v579
    %v664 = vpack.c.b16 %v582, %v581
    %v665 = vpack.c.b16 %v584, %v583
    %v666 = vpack.c.b16 %v586, %v585
    %v667 = vpack.c.b16 %v588, %v587
    %v668 = vpack.c.b16 %v590, %v589
    %v669 = vpack.c.b16 %v592, %v591
    %v670 = vpack.c.b16 %v594, %v593
    %v671 = vpack.c.b16 %v596, %v595
    %v672 = vpack.c.b16 %v598, %v597
    %v673 = vpack.c.b16 %v600, %v599
    %v674 = vpack.c.b16 %v602, %v601
    %v675 = vpack.c.b16 %v604, %v603
    %v676 = vpack.c.b16 %v606, %v605
    %v677 = vpack.c.b16 %v608, %v607
    %v678 = vpack.c.b16 %v610, %v609
    %v679 = vpack.c.b16 %v612, %v611
    %v680 = vpack.c.b16 %v614, %v613
    %v681 = vpack.c.b16 %v616, %v615
    %v682 = vpack.c.b16 %v618, %v617
    %v691 = vunpack.c.l.b16 %v355
    %v692 = vunpack.c.l.b16 %v356
    %v693 = vunpack.c.l.b16 %v357
    %v694 = vunpack.c.l.b16 %v358
    %v695 = vunpack.c.l.b16 %v359
    %v696 = vunpack.c.l.b16 %v360
    %v697 = vunpack.c.l.b16 %v361
    %v698 = vunpack.c.l.b16 %v362
    %v699 = vpack.c.b16 %v692, %v691
    %v700 = vpack.c.b16 %v694, %v693
    %v701 = vpack.c.b16 %v696, %v695
    %v702 = vpack.c.b16 %v698, %v697
    %vm707 = vcmask 523264
    %v709 = vsel %vm707, %v619, 0
    %v712 = vsel %vm707, %v620, 0
    %v715 = vsel %vm707, %v621, 0
    %v718 = vsel %vm707, %v622, 0
    %v721 = vsel %vm707, %v623, 0
    %v724 = vsel %vm707, %v624, 0
    %v727 = vsel %vm707, %v625, 0
    %v730 = vsel %vm707, %v626, 0
    %v733 = vsel %vm707, %v627, 0
    %v736 = vsel %vm707, %v628, 0
    %v739 = vsel %vm707, %v629, 0
    %v742 = vsel %vm707, %v630, 0
    %v745 = vsel %vm707, %v631, 0
    %v748 = vsel %vm707, %v632, 0
    %v751 = vsel %vm707, %v633, 0
    %v754 = vsel %vm707, %v634, 0
    %v757 = vsel %vm707, %v635, 0
    %v760 = vsel %vm707, %v636, 0
    %v763 = vsel %vm707, %v637, 0
    %v766 = vsel %vm707, %v638, 0
    %v769 = vsel %vm707, %v639, 0
    %v772 = vsel %vm707, %v640, 0
    %v775 = vsel %vm707, %v641, 0
    %v778 = vsel %vm707, %v642, 0
    %v781 = vsel %vm707, %v643, 0
    %v784 = vsel %vm707, %v644, 0
    %v787 = vsel %vm707, %v645, 0
    %v790 = vsel %vm707, %v646, 0
    %v793 = vsel %vm707, %v647, 0
    %v796 = vsel %vm707, %v648, 0
    %v799 = vsel %vm707, %v649, 0
    %v802 = vsel %vm707, %v650, 0
    %v805 = vsel %vm707, %v651, 0
    %v808 = vsel %vm707, %v652, 0
    %v811 = vsel %vm707, %v653, 0
    %v814 = vsel %vm707, %v654, 0
    %v817 = vsel %vm707, %v655, 0
    %v820 = vsel %vm707, %v656, 0
    %v823 = vsel %vm707, %v657, 0
    %v826 = vsel %vm707, %v658, 0
    %v829 = vsel %vm707, %v659, 0
    %v832 = vsel %vm707, %v660, 0
    %v835 = vsel %vm707, %v661, 0
    %v838 = vsel %vm707, %v662, 0
    %v841 = vsel %vm707, %v663, 0
    %v844 = vsel %vm707, %v664, 0
    %v847 = vsel %vm707, %v665, 0
    %v850 = vsel %vm707, %v666, 0
    %v853 = vsel %vm707, %v667, 0
    %v856 = vsel %vm707, %v668, 0
    %v859 = vsel %vm707, %v669, 0
    %v862 = vsel %vm707, %v670, 0
    %v865 = vsel %vm707, %v671, 0
    %v868 = vsel %vm707, %v672, 0
    %v871 = vsel %vm707, %v673, 0
    %v874 = vsel %vm707, %v674, 0
    %v877 = vsel %vm707, %v675, 0
    %v880 = vsel %vm707, %v676, 0
    %v883 = vsel %vm707, %v677, 0
    %v886 = vsel %vm707, %v678, 0
    %v889 = vsel %vm707, %v679, 0
    %v892 = vsel %vm707, %v680, 0
    %v895 = vsel %vm707, %v681, 0
    %v898 = vsel %vm707, %v682, 0
    %900 = vmatprep.subr.bf16.mxu0 0
    %901 = vmatpush1.bf16.msra.mxu0 0
    %902 = vmatprep.subr.bf16.mxu0 0
    %903 = vmatpush1.bf16.msra.mxu0 0
    %904 = vmatprep.subr.bf16.mxu0 0
    %905 = vmatpush1.bf16.msra.mxu0 0
    %906 = vmatprep.subr.bf16.mxu0 0
    %907 = vmatpush1.bf16.msra.mxu0 0
    %908 = vmatprep.subr.bf16.mxu0 0
    %909 = vmatpush1.bf16.msra.mxu0 %v702
    %910 = vmatprep.subr.bf16.mxu0 0
    %911 = vmatpush1.bf16.msra.mxu0 %v701
    %912 = vmatprep.subr.bf16.mxu0 0
    %913 = vmatpush1.bf16.msra.mxu0 %v700
    %914 = vmatprep.subr.bf16.mxu0 0
    %915 = vmatpush1.bf16.msra.mxu0 %v699
    %916 = vmatprep.subr.bf16.mxu0 0
    %917 = vmatpush2.bf16.msra.mxu0 0
    %918 = vmatprep.subr.bf16.mxu0 0
    %919 = vmatpush2.bf16.msra.mxu0 0
    %920 = vmatprep.subr.bf16.mxu0 0
    %921 = vmatpush2.bf16.msra.mxu0 0
    %922 = vmatprep.subr.bf16.mxu0 0
    %923 = vmatpush2.bf16.msra.mxu0 0
    %924 = vmatprep.subr.bf16.mxu0 0
    %925 = vmatpush2.bf16.msra.mxu0 0
    %926 = vmatprep.subr.bf16.mxu0 0
    %927 = vmatpush2.bf16.msra.mxu0 0
    %928 = vmatprep.subr.bf16.mxu0 0
    %929 = vmatpush2.bf16.msra.mxu0 0
    %930 = vmatprep.subr.bf16.mxu0 0
    %931 = vmatpush2.bf16.msra.mxu0 0
    %932 = vmatprep.mubr.bf16.mxu0 0
    %933 = vmatmul.mubr.bf16.gmra.mxu0 %v709
    %v934 = vpop.f32.mrf.mxu0
    %v935 = vadd.f32 0.0, %v934
    %v936 = vpop.f32.mrf.mxu0
    %v937 = vpop.f32.mrf.mxu0
    %v938 = vadd.f32 0.0, %v937
    %v939 = vpop.f32.mrf.mxu0
    %940 = vmatprep.mubr.bf16.mxu0 0
    %941 = vmatmul.mubr.bf16.gmra.mxu0 %v712
    %v942 = vpop.f32.mrf.mxu0
    %v943 = vadd.f32 0.0, %v942
    %v944 = vpop.f32.mrf.mxu0
    %v945 = vpop.f32.mrf.mxu0
    %v946 = vadd.f32 0.0, %v945
    %v947 = vpop.f32.mrf.mxu0
    %948 = vmatprep.mubr.bf16.mxu0 0
    %949 = vmatmul.mubr.bf16.gmra.mxu0 %v715
    %v950 = vpop.f32.mrf.mxu0
    %v951 = vadd.f32 0.0, %v950
    %v952 = vpop.f32.mrf.mxu0
    %v953 = vpop.f32.mrf.mxu0
    %v954 = vadd.f32 0.0, %v953
    %v955 = vpop.f32.mrf.mxu0
    %956 = vmatprep.mubr.bf16.mxu0 0
    %957 = vmatmul.mubr.bf16.gmra.mxu0 %v718
    %v958 = vpop.f32.mrf.mxu0
    %v959 = vadd.f32 0.0, %v958
    %v960 = vpop.f32.mrf.mxu0
    %v961 = vpop.f32.mrf.mxu0
    %v962 = vadd.f32 0.0, %v961
    %v963 = vpop.f32.mrf.mxu0
    %964 = vmatprep.mubr.bf16.mxu0 0
    %965 = vmatmul.mubr.bf16.gmra.mxu0 %v721
    %v966 = vpop.f32.mrf.mxu0
    %v967 = vadd.f32 0.0, %v966
    %v968 = vpop.f32.mrf.mxu0
    %v969 = vpop.f32.mrf.mxu0
    %v970 = vadd.f32 0.0, %v969
    %v971 = vpop.f32.mrf.mxu0
    %972 = vmatprep.mubr.bf16.mxu0 0
    %973 = vmatmul.mubr.bf16.gmra.mxu0 %v724
    %v974 = vpop.f32.mrf.mxu0
    %v975 = vadd.f32 0.0, %v974
    %v976 = vpop.f32.mrf.mxu0
    %v977 = vpop.f32.mrf.mxu0
    %v978 = vadd.f32 0.0, %v977
    %v979 = vpop.f32.mrf.mxu0
    %980 = vmatprep.mubr.bf16.mxu0 0
    %981 = vmatmul.mubr.bf16.gmra.mxu0 %v727
    %v982 = vpop.f32.mrf.mxu0
    %v983 = vadd.f32 0.0, %v982
    %v984 = vpop.f32.mrf.mxu0
    %v985 = vpop.f32.mrf.mxu0
    %v986 = vadd.f32 0.0, %v985
    %v987 = vpop.f32.mrf.mxu0
    %988 = vmatprep.mubr.bf16.mxu0 0
    %989 = vmatmul.mubr.bf16.gmra.mxu0 %v730
    %v990 = vpop.f32.mrf.mxu0
    %v991 = vadd.f32 0.0, %v990
    %v992 = vpop.f32.mrf.mxu0
    %v993 = vpop.f32.mrf.mxu0
    %v994 = vadd.f32 0.0, %v993
    %v995 = vpop.f32.mrf.mxu0
    %996 = vmatprep.mubr.bf16.mxu0 0
    %997 = vmatmul.mubr.bf16.gmra.mxu0 %v733
    %v998 = vpop.f32.mrf.mxu0
    %v999 = vadd.f32 0.0, %v998
    %v1000 = vpop.f32.mrf.mxu0
    %v1001 = vpop.f32.mrf.mxu0
    %v1002 = vadd.f32 0.0, %v1001
    %v1003 = vpop.f32.mrf.mxu0
    %1004 = vmatprep.mubr.bf16.mxu0 0
    %1005 = vmatmul.mubr.bf16.gmra.mxu0 %v736
    %v1006 = vpop.f32.mrf.mxu0
    %v1007 = vadd.f32 0.0, %v1006
    %v1008 = vpop.f32.mrf.mxu0
    %v1009 = vpop.f32.mrf.mxu0
    %v1010 = vadd.f32 0.0, %v1009
    %v1011 = vpop.f32.mrf.mxu0
    %1012 = vmatprep.mubr.bf16.mxu0 0
    %1013 = vmatmul.mubr.bf16.gmra.mxu0 %v739
    %v1014 = vpop.f32.mrf.mxu0
    %v1015 = vadd.f32 0.0, %v1014
    %v1016 = vpop.f32.mrf.mxu0
    %v1017 = vpop.f32.mrf.mxu0
    %v1018 = vadd.f32 0.0, %v1017
    %v1019 = vpop.f32.mrf.mxu0
    %1020 = vmatprep.mubr.bf16.mxu0 0
    %1021 = vmatmul.mubr.bf16.gmra.mxu0 %v742
    %v1022 = vpop.f32.mrf.mxu0
    %v1023 = vadd.f32 0.0, %v1022
    %v1024 = vpop.f32.mrf.mxu0
    %v1025 = vpop.f32.mrf.mxu0
    %v1026 = vadd.f32 0.0, %v1025
    %v1027 = vpop.f32.mrf.mxu0
    %1028 = vmatprep.mubr.bf16.mxu0 0
    %1029 = vmatmul.mubr.bf16.gmra.mxu0 %v745
    %v1030 = vpop.f32.mrf.mxu0
    %v1031 = vadd.f32 0.0, %v1030
    %v1032 = vpop.f32.mrf.mxu0
    %v1033 = vpop.f32.mrf.mxu0
    %v1034 = vadd.f32 0.0, %v1033
    %v1035 = vpop.f32.mrf.mxu0
    %1036 = vmatprep.mubr.bf16.mxu0 0
    %1037 = vmatmul.mubr.bf16.gmra.mxu0 %v748
    %v1038 = vpop.f32.mrf.mxu0
    %v1039 = vadd.f32 0.0, %v1038
    %v1040 = vpop.f32.mrf.mxu0
    %v1041 = vpop.f32.mrf.mxu0
    %v1042 = vadd.f32 0.0, %v1041
    %v1043 = vpop.f32.mrf.mxu0
    %1044 = vmatprep.mubr.bf16.mxu0 0
    %1045 = vmatmul.mubr.bf16.gmra.mxu0 %v751
    %v1046 = vpop.f32.mrf.mxu0
    %v1047 = vadd.f32 0.0, %v1046
    %v1048 = vpop.f32.mrf.mxu0
    %v1049 = vpop.f32.mrf.mxu0
    %v1050 = vadd.f32 0.0, %v1049
    %v1051 = vpop.f32.mrf.mxu0
    %1052 = vmatprep.mubr.bf16.mxu0 0
    %1053 = vmatmul.mubr.bf16.gmra.mxu0 %v754
    %v1054 = vpop.f32.mrf.mxu0
    %v1055 = vadd.f32 0.0, %v1054
    %v1056 = vpop.f32.mrf.mxu0
    %v1057 = vpop.f32.mrf.mxu0
    %v1058 = vadd.f32 0.0, %v1057
    %v1059 = vpop.f32.mrf.mxu0
    %1060 = vmatprep.mubr.bf16.mxu0 0
    %1061 = vmatmul.mubr.bf16.gmra.mxu0 %v757
    %v1062 = vpop.f32.mrf.mxu0
    %v1063 = vadd.f32 0.0, %v1062
    %v1064 = vpop.f32.mrf.mxu0
    %v1065 = vpop.f32.mrf.mxu0
    %v1066 = vadd.f32 0.0, %v1065
    %v1067 = vpop.f32.mrf.mxu0
    %1068 = vmatprep.mubr.bf16.mxu0 0
    %1069 = vmatmul.mubr.bf16.gmra.mxu0 %v760
    %v1070 = vpop.f32.mrf.mxu0
    %v1071 = vadd.f32 0.0, %v1070
    %v1072 = vpop.f32.mrf.mxu0
    %v1073 = vpop.f32.mrf.mxu0
    %v1074 = vadd.f32 0.0, %v1073
    %v1075 = vpop.f32.mrf.mxu0
    %1076 = vmatprep.mubr.bf16.mxu0 0
    %1077 = vmatmul.mubr.bf16.gmra.mxu0 %v763
    %v1078 = vpop.f32.mrf.mxu0
    %v1079 = vadd.f32 0.0, %v1078
    %v1080 = vpop.f32.mrf.mxu0
    %v1081 = vpop.f32.mrf.mxu0
    %v1082 = vadd.f32 0.0, %v1081
    %v1083 = vpop.f32.mrf.mxu0
    %1084 = vmatprep.mubr.bf16.mxu0 0
    %1085 = vmatmul.mubr.bf16.gmra.mxu0 %v766
    %v1086 = vpop.f32.mrf.mxu0
    %v1087 = vadd.f32 0.0, %v1086
    %v1088 = vpop.f32.mrf.mxu0
    %v1089 = vpop.f32.mrf.mxu0
    %v1090 = vadd.f32 0.0, %v1089
    %v1091 = vpop.f32.mrf.mxu0
    %1092 = vmatprep.mubr.bf16.mxu0 0
    %1093 = vmatmul.mubr.bf16.gmra.mxu0 %v769
    %v1094 = vpop.f32.mrf.mxu0
    %v1095 = vadd.f32 0.0, %v1094
    %v1096 = vpop.f32.mrf.mxu0
    %v1097 = vpop.f32.mrf.mxu0
    %v1098 = vadd.f32 0.0, %v1097
    %v1099 = vpop.f32.mrf.mxu0
    %1100 = vmatprep.mubr.bf16.mxu0 0
    %1101 = vmatmul.mubr.bf16.gmra.mxu0 %v772
    %v1102 = vpop.f32.mrf.mxu0
    %v1103 = vadd.f32 0.0, %v1102
    %v1104 = vpop.f32.mrf.mxu0
    %v1105 = vpop.f32.mrf.mxu0
    %v1106 = vadd.f32 0.0, %v1105
    %v1107 = vpop.f32.mrf.mxu0
    %1108 = vmatprep.mubr.bf16.mxu0 0
    %1109 = vmatmul.mubr.bf16.gmra.mxu0 %v775
    %v1110 = vpop.f32.mrf.mxu0
    %v1111 = vadd.f32 0.0, %v1110
    %v1112 = vpop.f32.mrf.mxu0
    %v1113 = vpop.f32.mrf.mxu0
    %v1114 = vadd.f32 0.0, %v1113
    %v1115 = vpop.f32.mrf.mxu0
    %1116 = vmatprep.mubr.bf16.mxu0 0
    %1117 = vmatmul.mubr.bf16.gmra.mxu0 %v778
    %v1118 = vpop.f32.mrf.mxu0
    %v1119 = vadd.f32 0.0, %v1118
    %v1120 = vpop.f32.mrf.mxu0
    %v1121 = vpop.f32.mrf.mxu0
    %v1122 = vadd.f32 0.0, %v1121
    %v1123 = vpop.f32.mrf.mxu0
    %1124 = vmatprep.mubr.bf16.mxu0 0
    %1125 = vmatmul.mubr.bf16.gmra.mxu0 %v781
    %v1126 = vpop.f32.mrf.mxu0
    %v1127 = vadd.f32 0.0, %v1126
    %v1128 = vpop.f32.mrf.mxu0
    %v1129 = vpop.f32.mrf.mxu0
    %v1130 = vadd.f32 0.0, %v1129
    %v1131 = vpop.f32.mrf.mxu0
    %1132 = vmatprep.mubr.bf16.mxu0 0
    %1133 = vmatmul.mubr.bf16.gmra.mxu0 %v784
    %v1134 = vpop.f32.mrf.mxu0
    %v1135 = vadd.f32 0.0, %v1134
    %v1136 = vpop.f32.mrf.mxu0
    %v1137 = vpop.f32.mrf.mxu0
    %v1138 = vadd.f32 0.0, %v1137
    %v1139 = vpop.f32.mrf.mxu0
    %1140 = vmatprep.mubr.bf16.mxu0 0
    %1141 = vmatmul.mubr.bf16.gmra.mxu0 %v787
    %v1142 = vpop.f32.mrf.mxu0
    %v1143 = vadd.f32 0.0, %v1142
    %v1144 = vpop.f32.mrf.mxu0
    %v1145 = vpop.f32.mrf.mxu0
    %v1146 = vadd.f32 0.0, %v1145
    %v1147 = vpop.f32.mrf.mxu0
    %1148 = vmatprep.mubr.bf16.mxu0 0
    %1149 = vmatmul.mubr.bf16.gmra.mxu0 %v790
    %v1150 = vpop.f32.mrf.mxu0
    %v1151 = vadd.f32 0.0, %v1150
    %v1152 = vpop.f32.mrf.mxu0
    %v1153 = vpop.f32.mrf.mxu0
    %v1154 = vadd.f32 0.0, %v1153
    %v1155 = vpop.f32.mrf.mxu0
    %1156 = vmatprep.mubr.bf16.mxu0 0
    %1157 = vmatmul.mubr.bf16.gmra.mxu0 %v793
    %v1158 = vpop.f32.mrf.mxu0
    %v1159 = vadd.f32 0.0, %v1158
    %v1160 = vpop.f32.mrf.mxu0
    %v1161 = vpop.f32.mrf.mxu0
    %v1162 = vadd.f32 0.0, %v1161
    %v1163 = vpop.f32.mrf.mxu0
    %1164 = vmatprep.mubr.bf16.mxu0 0
    %1165 = vmatmul.mubr.bf16.gmra.mxu0 %v796
    %v1166 = vpop.f32.mrf.mxu0
    %v1167 = vadd.f32 0.0, %v1166
    %v1168 = vpop.f32.mrf.mxu0
    %v1169 = vpop.f32.mrf.mxu0
    %v1170 = vadd.f32 0.0, %v1169
    %v1171 = vpop.f32.mrf.mxu0
    %1172 = vmatprep.mubr.bf16.mxu0 0
    %1173 = vmatmul.mubr.bf16.gmra.mxu0 %v799
    %v1174 = vpop.f32.mrf.mxu0
    %v1175 = vadd.f32 0.0, %v1174
    %v1176 = vpop.f32.mrf.mxu0
    %v1177 = vpop.f32.mrf.mxu0
    %v1178 = vadd.f32 0.0, %v1177
    %v1179 = vpop.f32.mrf.mxu0
    %1180 = vmatprep.mubr.bf16.mxu0 0
    %1181 = vmatmul.mubr.bf16.gmra.mxu0 %v802
    %v1182 = vpop.f32.mrf.mxu0
    %v1183 = vadd.f32 0.0, %v1182
    %v1184 = vpop.f32.mrf.mxu0
    %v1185 = vpop.f32.mrf.mxu0
    %v1186 = vadd.f32 0.0, %v1185
    %v1187 = vpop.f32.mrf.mxu0
    %1188 = vmatprep.mubr.bf16.mxu0 0
    %1189 = vmatmul.mubr.bf16.gmra.mxu0 %v805
    %v1190 = vpop.f32.mrf.mxu0
    %v1191 = vadd.f32 0.0, %v1190
    %v1192 = vpop.f32.mrf.mxu0
    %v1193 = vpop.f32.mrf.mxu0
    %v1194 = vadd.f32 0.0, %v1193
    %v1195 = vpop.f32.mrf.mxu0
    %1196 = vmatprep.mubr.bf16.mxu0 0
    %1197 = vmatmul.mubr.bf16.gmra.mxu0 %v808
    %v1198 = vpop.f32.mrf.mxu0
    %v1199 = vadd.f32 0.0, %v1198
    %v1200 = vpop.f32.mrf.mxu0
    %v1201 = vpop.f32.mrf.mxu0
    %v1202 = vadd.f32 0.0, %v1201
    %v1203 = vpop.f32.mrf.mxu0
    %1204 = vmatprep.mubr.bf16.mxu0 0
    %1205 = vmatmul.mubr.bf16.gmra.mxu0 %v811
    %v1206 = vpop.f32.mrf.mxu0
    %v1207 = vadd.f32 0.0, %v1206
    %v1208 = vpop.f32.mrf.mxu0
    %v1209 = vpop.f32.mrf.mxu0
    %v1210 = vadd.f32 0.0, %v1209
    %v1211 = vpop.f32.mrf.mxu0
    %1212 = vmatprep.mubr.bf16.mxu0 0
    %1213 = vmatmul.mubr.bf16.gmra.mxu0 %v814
    %v1214 = vpop.f32.mrf.mxu0
    %v1215 = vadd.f32 0.0, %v1214
    %v1216 = vpop.f32.mrf.mxu0
    %v1217 = vpop.f32.mrf.mxu0
    %v1218 = vadd.f32 0.0, %v1217
    %v1219 = vpop.f32.mrf.mxu0
    %1220 = vmatprep.mubr.bf16.mxu0 0
    %1221 = vmatmul.mubr.bf16.gmra.mxu0 %v817
    %v1222 = vpop.f32.mrf.mxu0
    %v1223 = vadd.f32 0.0, %v1222
    %v1224 = vpop.f32.mrf.mxu0
    %v1225 = vpop.f32.mrf.mxu0
    %v1226 = vadd.f32 0.0, %v1225
    %v1227 = vpop.f32.mrf.mxu0
    %1228 = vmatprep.mubr.bf16.mxu0 0
    %1229 = vmatmul.mubr.bf16.gmra.mxu0 %v820
    %v1230 = vpop.f32.mrf.mxu0
    %v1231 = vadd.f32 0.0, %v1230
    %v1232 = vpop.f32.mrf.mxu0
    %v1233 = vpop.f32.mrf.mxu0
    %v1234 = vadd.f32 0.0, %v1233
    %v1235 = vpop.f32.mrf.mxu0
    %1236 = vmatprep.mubr.bf16.mxu0 0
    %1237 = vmatmul.mubr.bf16.gmra.mxu0 %v823
    %v1238 = vpop.f32.mrf.mxu0
    %v1239 = vadd.f32 0.0, %v1238
    %v1240 = vpop.f32.mrf.mxu0
    %v1241 = vpop.f32.mrf.mxu0
    %v1242 = vadd.f32 0.0, %v1241
    %v1243 = vpop.f32.mrf.mxu0
    %1244 = vmatprep.mubr.bf16.mxu0 0
    %1245 = vmatmul.mubr.bf16.gmra.mxu0 %v826
    %v1246 = vpop.f32.mrf.mxu0
    %v1247 = vadd.f32 0.0, %v1246
    %v1248 = vpop.f32.mrf.mxu0
    %v1249 = vpop.f32.mrf.mxu0
    %v1250 = vadd.f32 0.0, %v1249
    %v1251 = vpop.f32.mrf.mxu0
    %1252 = vmatprep.mubr.bf16.mxu0 0
    %1253 = vmatmul.mubr.bf16.gmra.mxu0 %v829
    %v1254 = vpop.f32.mrf.mxu0
    %v1255 = vadd.f32 0.0, %v1254
    %v1256 = vpop.f32.mrf.mxu0
    %v1257 = vpop.f32.mrf.mxu0
    %v1258 = vadd.f32 0.0, %v1257
    %v1259 = vpop.f32.mrf.mxu0
    %1260 = vmatprep.mubr.bf16.mxu0 0
    %1261 = vmatmul.mubr.bf16.gmra.mxu0 %v832
    %v1262 = vpop.f32.mrf.mxu0
    %v1263 = vadd.f32 0.0, %v1262
    %v1264 = vpop.f32.mrf.mxu0
    %v1265 = vpop.f32.mrf.mxu0
    %v1266 = vadd.f32 0.0, %v1265
    %v1267 = vpop.f32.mrf.mxu0
    %1268 = vmatprep.mubr.bf16.mxu0 0
    %1269 = vmatmul.mubr.bf16.gmra.mxu0 %v835
    %v1270 = vpop.f32.mrf.mxu0
    %v1271 = vadd.f32 0.0, %v1270
    %v1272 = vpop.f32.mrf.mxu0
    %v1273 = vpop.f32.mrf.mxu0
    %v1274 = vadd.f32 0.0, %v1273
    %v1275 = vpop.f32.mrf.mxu0
    %1276 = vmatprep.mubr.bf16.mxu0 0
    %1277 = vmatmul.mubr.bf16.gmra.mxu0 %v838
    %v1278 = vpop.f32.mrf.mxu0
    %v1279 = vadd.f32 0.0, %v1278
    %v1280 = vpop.f32.mrf.mxu0
    %v1281 = vpop.f32.mrf.mxu0
    %v1282 = vadd.f32 0.0, %v1281
    %v1283 = vpop.f32.mrf.mxu0
    %1284 = vmatprep.mubr.bf16.mxu0 0
    %1285 = vmatmul.mubr.bf16.gmra.mxu0 %v841
    %v1286 = vpop.f32.mrf.mxu0
    %v1287 = vadd.f32 0.0, %v1286
    %v1288 = vpop.f32.mrf.mxu0
    %v1289 = vpop.f32.mrf.mxu0
    %v1290 = vadd.f32 0.0, %v1289
    %v1291 = vpop.f32.mrf.mxu0
    %1292 = vmatprep.mubr.bf16.mxu0 0
    %1293 = vmatmul.mubr.bf16.gmra.mxu0 %v844
    %v1294 = vpop.f32.mrf.mxu0
    %v1295 = vadd.f32 0.0, %v1294
    %v1296 = vpop.f32.mrf.mxu0
    %v1297 = vpop.f32.mrf.mxu0
    %v1298 = vadd.f32 0.0, %v1297
    %v1299 = vpop.f32.mrf.mxu0
    %1300 = vmatprep.mubr.bf16.mxu0 0
    %1301 = vmatmul.mubr.bf16.gmra.mxu0 %v847
    %v1302 = vpop.f32.mrf.mxu0
    %v1303 = vadd.f32 0.0, %v1302
    %v1304 = vpop.f32.mrf.mxu0
    %v1305 = vpop.f32.mrf.mxu0
    %v1306 = vadd.f32 0.0, %v1305
    %v1307 = vpop.f32.mrf.mxu0
    %1308 = vmatprep.mubr.bf16.mxu0 0
    %1309 = vmatmul.mubr.bf16.gmra.mxu0 %v850
    %v1310 = vpop.f32.mrf.mxu0
    %v1311 = vadd.f32 0.0, %v1310
    %v1312 = vpop.f32.mrf.mxu0
    %v1313 = vpop.f32.mrf.mxu0
    %v1314 = vadd.f32 0.0, %v1313
    %v1315 = vpop.f32.mrf.mxu0
    %1316 = vmatprep.mubr.bf16.mxu0 0
    %1317 = vmatmul.mubr.bf16.gmra.mxu0 %v853
    %v1318 = vpop.f32.mrf.mxu0
    %v1319 = vadd.f32 0.0, %v1318
    %v1320 = vpop.f32.mrf.mxu0
    %v1321 = vpop.f32.mrf.mxu0
    %v1322 = vadd.f32 0.0, %v1321
    %v1323 = vpop.f32.mrf.mxu0
    %1324 = vmatprep.mubr.bf16.mxu0 0
    %1325 = vmatmul.mubr.bf16.gmra.mxu0 %v856
    %v1326 = vpop.f32.mrf.mxu0
    %v1327 = vadd.f32 0.0, %v1326
    %v1328 = vpop.f32.mrf.mxu0
    %v1329 = vpop.f32.mrf.mxu0
    %v1330 = vadd.f32 0.0, %v1329
    %v1331 = vpop.f32.mrf.mxu0
    %1332 = vmatprep.mubr.bf16.mxu0 0
    %1333 = vmatmul.mubr.bf16.gmra.mxu0 %v859
    %v1334 = vpop.f32.mrf.mxu0
    %v1335 = vadd.f32 0.0, %v1334
    %v1336 = vpop.f32.mrf.mxu0
    %v1337 = vpop.f32.mrf.mxu0
    %v1338 = vadd.f32 0.0, %v1337
    %v1339 = vpop.f32.mrf.mxu0
    %1340 = vmatprep.mubr.bf16.mxu0 0
    %1341 = vmatmul.mubr.bf16.gmra.mxu0 %v862
    %v1342 = vpop.f32.mrf.mxu0
    %v1343 = vadd.f32 0.0, %v1342
    %v1344 = vpop.f32.mrf.mxu0
    %v1345 = vpop.f32.mrf.mxu0
    %v1346 = vadd.f32 0.0, %v1345
    %v1347 = vpop.f32.mrf.mxu0
    %1348 = vmatprep.mubr.bf16.mxu0 0
    %1349 = vmatmul.mubr.bf16.gmra.mxu0 %v865
    %v1350 = vpop.f32.mrf.mxu0
    %v1351 = vadd.f32 0.0, %v1350
    %v1352 = vpop.f32.mrf.mxu0
    %v1353 = vpop.f32.mrf.mxu0
    %v1354 = vadd.f32 0.0, %v1353
    %v1355 = vpop.f32.mrf.mxu0
    %1356 = vmatprep.mubr.bf16.mxu0 0
    %1357 = vmatmul.mubr.bf16.gmra.mxu0 %v868
    %v1358 = vpop.f32.mrf.mxu0
    %v1359 = vadd.f32 0.0, %v1358
    %v1360 = vpop.f32.mrf.mxu0
    %v1361 = vpop.f32.mrf.mxu0
    %v1362 = vadd.f32 0.0, %v1361
    %v1363 = vpop.f32.mrf.mxu0
    %1364 = vmatprep.mubr.bf16.mxu0 0
    %1365 = vmatmul.mubr.bf16.gmra.mxu0 %v871
    %v1366 = vpop.f32.mrf.mxu0
    %v1367 = vadd.f32 0.0, %v1366
    %v1368 = vpop.f32.mrf.mxu0
    %v1369 = vpop.f32.mrf.mxu0
    %v1370 = vadd.f32 0.0, %v1369
    %v1371 = vpop.f32.mrf.mxu0
    %1372 = vmatprep.mubr.bf16.mxu0 0
    %1373 = vmatmul.mubr.bf16.gmra.mxu0 %v874
    %v1374 = vpop.f32.mrf.mxu0
    %v1375 = vadd.f32 0.0, %v1374
    %v1376 = vpop.f32.mrf.mxu0
    %v1377 = vpop.f32.mrf.mxu0
    %v1378 = vadd.f32 0.0, %v1377
    %v1379 = vpop.f32.mrf.mxu0
    %1380 = vmatprep.mubr.bf16.mxu0 0
    %1381 = vmatmul.mubr.bf16.gmra.mxu0 %v877
    %v1382 = vpop.f32.mrf.mxu0
    %v1383 = vadd.f32 0.0, %v1382
    %v1384 = vpop.f32.mrf.mxu0
    %v1385 = vpop.f32.mrf.mxu0
    %v1386 = vadd.f32 0.0, %v1385
    %v1387 = vpop.f32.mrf.mxu0
    %1388 = vmatprep.mubr.bf16.mxu0 0
    %1389 = vmatmul.mubr.bf16.gmra.mxu0 %v880
    %v1390 = vpop.f32.mrf.mxu0
    %v1391 = vadd.f32 0.0, %v1390
    %v1392 = vpop.f32.mrf.mxu0
    %v1393 = vpop.f32.mrf.mxu0
    %v1394 = vadd.f32 0.0, %v1393
    %v1395 = vpop.f32.mrf.mxu0
    %1396 = vmatprep.mubr.bf16.mxu0 0
    %1397 = vmatmul.mubr.bf16.gmra.mxu0 %v883
    %v1398 = vpop.f32.mrf.mxu0
    %v1399 = vadd.f32 0.0, %v1398
    %v1400 = vpop.f32.mrf.mxu0
    %v1401 = vpop.f32.mrf.mxu0
    %v1402 = vadd.f32 0.0, %v1401
    %v1403 = vpop.f32.mrf.mxu0
    %1404 = vmatprep.mubr.bf16.mxu0 0
    %1405 = vmatmul.mubr.bf16.gmra.mxu0 %v886
    %v1406 = vpop.f32.mrf.mxu0
    %v1407 = vadd.f32 0.0, %v1406
    %v1408 = vpop.f32.mrf.mxu0
    %v1409 = vpop.f32.mrf.mxu0
    %v1410 = vadd.f32 0.0, %v1409
    %v1411 = vpop.f32.mrf.mxu0
    %1412 = vmatprep.mubr.bf16.mxu0 0
    %1413 = vmatmul.mubr.bf16.gmra.mxu0 %v889
    %v1414 = vpop.f32.mrf.mxu0
    %v1415 = vadd.f32 0.0, %v1414
    %v1416 = vpop.f32.mrf.mxu0
    %v1417 = vpop.f32.mrf.mxu0
    %v1418 = vadd.f32 0.0, %v1417
    %v1419 = vpop.f32.mrf.mxu0
    %1420 = vmatprep.mubr.bf16.mxu0 0
    %1421 = vmatmul.mubr.bf16.gmra.mxu0 %v892
    %v1422 = vpop.f32.mrf.mxu0
    %v1423 = vadd.f32 0.0, %v1422
    %v1424 = vpop.f32.mrf.mxu0
    %v1425 = vpop.f32.mrf.mxu0
    %v1426 = vadd.f32 0.0, %v1425
    %v1427 = vpop.f32.mrf.mxu0
    %1428 = vmatprep.mubr.bf16.mxu0 0
    %1429 = vmatmul.mubr.bf16.gmra.mxu0 %v895
    %v1430 = vpop.f32.mrf.mxu0
    %v1431 = vadd.f32 0.0, %v1430
    %v1432 = vpop.f32.mrf.mxu0
    %v1433 = vpop.f32.mrf.mxu0
    %v1434 = vadd.f32 0.0, %v1433
    %v1435 = vpop.f32.mrf.mxu0
    %1436 = vmatprep.mubr.bf16.mxu0 0
    %1437 = vmatmul.mubr.bf16.gmra.mxu0 %v898
    %v1438 = vpop.f32.mrf.mxu0
    %v1439 = vadd.f32 0.0, %v1438
    %v1440 = vpop.f32.mrf.mxu0
    %v1441 = vpop.f32.mrf.mxu0
    %v1442 = vadd.f32 0.0, %v1441
    %v1443 = vpop.f32.mrf.mxu0
    %1444 = vdwg.mxu0
    %v1445 = vld [vmem:[#allocation2] sm:$0xff]
    %v1446 = vadd.f32 %v935, %v1445
    %v1447 = vadd.f32 %v938, %v1445
    %v1448 = vadd.f32 %v943, %v1445
    %v1449 = vadd.f32 %v946, %v1445
    %v1450 = vadd.f32 %v951, %v1445
    %v1451 = vadd.f32 %v954, %v1445
    %v1452 = vadd.f32 %v959, %v1445
    %v1453 = vadd.f32 %v962, %v1445
    %v1454 = vadd.f32 %v967, %v1445
    %v1455 = vadd.f32 %v970, %v1445
    %v1456 = vadd.f32 %v975, %v1445
    %v1457 = vadd.f32 %v978, %v1445
    %v1458 = vadd.f32 %v983, %v1445
    %v1459 = vadd.f32 %v986, %v1445
    %v1460 = vadd.f32 %v991, %v1445
    %v1461 = vadd.f32 %v994, %v1445
    %v1462 = vadd.f32 %v999, %v1445
    %v1463 = vadd.f32 %v1002, %v1445
    %v1464 = vadd.f32 %v1007, %v1445
    %v1465 = vadd.f32 %v1010, %v1445
    %v1466 = vadd.f32 %v1015, %v1445
    %v1467 = vadd.f32 %v1018, %v1445
    %v1468 = vadd.f32 %v1023, %v1445
    %v1469 = vadd.f32 %v1026, %v1445
    %v1470 = vadd.f32 %v1031, %v1445
    %v1471 = vadd.f32 %v1034, %v1445
    %v1472 = vadd.f32 %v1039, %v1445
    %v1473 = vadd.f32 %v1042, %v1445
    %v1474 = vadd.f32 %v1047, %v1445
    %v1475 = vadd.f32 %v1050, %v1445
    %v1476 = vadd.f32 %v1055, %v1445
    %v1477 = vadd.f32 %v1058, %v1445
    %v1478 = vadd.f32 %v1063, %v1445
    %v1479 = vadd.f32 %v1066, %v1445
    %v1480 = vadd.f32 %v1071, %v1445
    %v1481 = vadd.f32 %v1074, %v1445
    %v1482 = vadd.f32 %v1079, %v1445
    %v1483 = vadd.f32 %v1082, %v1445
    %v1484 = vadd.f32 %v1087, %v1445
    %v1485 = vadd.f32 %v1090, %v1445
    %v1486 = vadd.f32 %v1095, %v1445
    %v1487 = vadd.f32 %v1098, %v1445
    %v1488 = vadd.f32 %v1103, %v1445
    %v1489 = vadd.f32 %v1106, %v1445
    %v1490 = vadd.f32 %v1111, %v1445
    %v1491 = vadd.f32 %v1114, %v1445
    %v1492 = vadd.f32 %v1119, %v1445
    %v1493 = vadd.f32 %v1122, %v1445
    %v1494 = vadd.f32 %v1127, %v1445
    %v1495 = vadd.f32 %v1130, %v1445
    %v1496 = vadd.f32 %v1135, %v1445
    %v1497 = vadd.f32 %v1138, %v1445
    %v1498 = vadd.f32 %v1143, %v1445
    %v1499 = vadd.f32 %v1146, %v1445
    %v1500 = vadd.f32 %v1151, %v1445
    %v1501 = vadd.f32 %v1154, %v1445
    %v1502 = vadd.f32 %v1159, %v1445
    %v1503 = vadd.f32 %v1162, %v1445
    %v1504 = vadd.f32 %v1167, %v1445
    %v1505 = vadd.f32 %v1170, %v1445
    %v1506 = vadd.f32 %v1175, %v1445
    %v1507 = vadd.f32 %v1178, %v1445
    %v1508 = vadd.f32 %v1183, %v1445
    %v1509 = vadd.f32 %v1186, %v1445
    %v1510 = vadd.f32 %v1191, %v1445
    %v1511 = vadd.f32 %v1194, %v1445
    %v1512 = vadd.f32 %v1199, %v1445
    %v1513 = vadd.f32 %v1202, %v1445
    %v1514 = vadd.f32 %v1207, %v1445
    %v1515 = vadd.f32 %v1210, %v1445
    %v1516 = vadd.f32 %v1215, %v1445
    %v1517 = vadd.f32 %v1218, %v1445
    %v1518 = vadd.f32 %v1223, %v1445
    %v1519 = vadd.f32 %v1226, %v1445
    %v1520 = vadd.f32 %v1231, %v1445
    %v1521 = vadd.f32 %v1234, %v1445
    %v1522 = vadd.f32 %v1239, %v1445
    %v1523 = vadd.f32 %v1242, %v1445
    %v1524 = vadd.f32 %v1247, %v1445
    %v1525 = vadd.f32 %v1250, %v1445
    %v1526 = vadd.f32 %v1255, %v1445
    %v1527 = vadd.f32 %v1258, %v1445
    %v1528 = vadd.f32 %v1263, %v1445
    %v1529 = vadd.f32 %v1266, %v1445
    %v1530 = vadd.f32 %v1271, %v1445
    %v1531 = vadd.f32 %v1274, %v1445
    %v1532 = vadd.f32 %v1279, %v1445
    %v1533 = vadd.f32 %v1282, %v1445
    %v1534 = vadd.f32 %v1287, %v1445
    %v1535 = vadd.f32 %v1290, %v1445
    %v1536 = vadd.f32 %v1295, %v1445
    %v1537 = vadd.f32 %v1298, %v1445
    %v1538 = vadd.f32 %v1303, %v1445
    %v1539 = vadd.f32 %v1306, %v1445
    %v1540 = vadd.f32 %v1311, %v1445
    %v1541 = vadd.f32 %v1314, %v1445
    %v1542 = vadd.f32 %v1319, %v1445
    %v1543 = vadd.f32 %v1322, %v1445
    %v1544 = vadd.f32 %v1327, %v1445
    %v1545 = vadd.f32 %v1330, %v1445
    %v1546 = vadd.f32 %v1335, %v1445
    %v1547 = vadd.f32 %v1338, %v1445
    %v1548 = vadd.f32 %v1343, %v1445
    %v1549 = vadd.f32 %v1346, %v1445
    %v1550 = vadd.f32 %v1351, %v1445
    %v1551 = vadd.f32 %v1354, %v1445
    %v1552 = vadd.f32 %v1359, %v1445
    %v1553 = vadd.f32 %v1362, %v1445
    %v1554 = vadd.f32 %v1367, %v1445
    %v1555 = vadd.f32 %v1370, %v1445
    %v1556 = vadd.f32 %v1375, %v1445
    %v1557 = vadd.f32 %v1378, %v1445
    %v1558 = vadd.f32 %v1383, %v1445
    %v1559 = vadd.f32 %v1386, %v1445
    %v1560 = vadd.f32 %v1391, %v1445
    %v1561 = vadd.f32 %v1394, %v1445
    %v1562 = vadd.f32 %v1399, %v1445
    %v1563 = vadd.f32 %v1402, %v1445
    %v1564 = vadd.f32 %v1407, %v1445
    %v1565 = vadd.f32 %v1410, %v1445
    %v1566 = vadd.f32 %v1415, %v1445
    %v1567 = vadd.f32 %v1418, %v1445
    %v1568 = vadd.f32 %v1423, %v1445
    %v1569 = vadd.f32 %v1426, %v1445
    %v1570 = vadd.f32 %v1431, %v1445
    %v1571 = vadd.f32 %v1434, %v1445
    %v1572 = vadd.f32 %v1439, %v1445
    %v1573 = vadd.f32 %v1442, %v1445
    %v1574 = vpack.c.bf16 %v1446, %v1446
    %v1575 = vpack.c.bf16 %v1447, %v1447
    %v1576 = vpack.c.bf16 %v1448, %v1448
    %v1577 = vpack.c.bf16 %v1449, %v1449
    %v1578 = vpack.c.bf16 %v1450, %v1450
    %v1579 = vpack.c.bf16 %v1451, %v1451
    %v1580 = vpack.c.bf16 %v1452, %v1452
    %v1581 = vpack.c.bf16 %v1453, %v1453
    %v1582 = vpack.c.bf16 %v1454, %v1454
    %v1583 = vpack.c.bf16 %v1455, %v1455
    %v1584 = vpack.c.bf16 %v1456, %v1456
    %v1585 = vpack.c.bf16 %v1457, %v1457
    %v1586 = vpack.c.bf16 %v1458, %v1458
    %v1587 = vpack.c.bf16 %v1459, %v1459
    %v1588 = vpack.c.bf16 %v1460, %v1460
    %v1589 = vpack.c.bf16 %v1461, %v1461
    %v1590 = vpack.c.bf16 %v1462, %v1462
    %v1591 = vpack.c.bf16 %v1463, %v1463
    %v1592 = vpack.c.bf16 %v1464, %v1464
    %v1593 = vpack.c.bf16 %v1465, %v1465
    %v1594 = vpack.c.bf16 %v1466, %v1466
    %v1595 = vpack.c.bf16 %v1467, %v1467
    %v1596 = vpack.c.bf16 %v1468, %v1468
    %v1597 = vpack.c.bf16 %v1469, %v1469
    %v1598 = vpack.c.bf16 %v1470, %v1470
    %v1599 = vpack.c.bf16 %v1471, %v1471
    %v1600 = vpack.c.bf16 %v1472, %v1472
    %v1601 = vpack.c.bf16 %v1473, %v1473
    %v1602 = vpack.c.bf16 %v1474, %v1474
    %v1603 = vpack.c.bf16 %v1475, %v1475
    %v1604 = vpack.c.bf16 %v1476, %v1476
    %v1605 = vpack.c.bf16 %v1477, %v1477
    %v1606 = vpack.c.bf16 %v1478, %v1478
    %v1607 = vpack.c.bf16 %v1479, %v1479
    %v1608 = vpack.c.bf16 %v1480, %v1480
    %v1609 = vpack.c.bf16 %v1481, %v1481
    %v1610 = vpack.c.bf16 %v1482, %v1482
    %v1611 = vpack.c.bf16 %v1483, %v1483
    %v1612 = vpack.c.bf16 %v1484, %v1484
    %v1613 = vpack.c.bf16 %v1485, %v1485
    %v1614 = vpack.c.bf16 %v1486, %v1486
    %v1615 = vpack.c.bf16 %v1487, %v1487
    %v1616 = vpack.c.bf16 %v1488, %v1488
    %v1617 = vpack.c.bf16 %v1489, %v1489
    %v1618 = vpack.c.bf16 %v1490, %v1490
    %v1619 = vpack.c.bf16 %v1491, %v1491
    %v1620 = vpack.c.bf16 %v1492, %v1492
    %v1621 = vpack.c.bf16 %v1493, %v1493
    %v1622 = vpack.c.bf16 %v1494, %v1494
    %v1623 = vpack.c.bf16 %v1495, %v1495
    %v1624 = vpack.c.bf16 %v1496, %v1496
    %v1625 = vpack.c.bf16 %v1497, %v1497
    %v1626 = vpack.c.bf16 %v1498, %v1498
    %v1627 = vpack.c.bf16 %v1499, %v1499
    %v1628 = vpack.c.bf16 %v1500, %v1500
    %v1629 = vpack.c.bf16 %v1501, %v1501
    %v1630 = vpack.c.bf16 %v1502, %v1502
    %v1631 = vpack.c.bf16 %v1503, %v1503
    %v1632 = vpack.c.bf16 %v1504, %v1504
    %v1633 = vpack.c.bf16 %v1505, %v1505
    %v1634 = vpack.c.bf16 %v1506, %v1506
    %v1635 = vpack.c.bf16 %v1507, %v1507
    %v1636 = vpack.c.bf16 %v1508, %v1508
    %v1637 = vpack.c.bf16 %v1509, %v1509
    %v1638 = vpack.c.bf16 %v1510, %v1510
    %v1639 = vpack.c.bf16 %v1511, %v1511
    %v1640 = vpack.c.bf16 %v1512, %v1512
    %v1641 = vpack.c.bf16 %v1513, %v1513
    %v1642 = vpack.c.bf16 %v1514, %v1514
    %v1643 = vpack.c.bf16 %v1515, %v1515
    %v1644 = vpack.c.bf16 %v1516, %v1516
    %v1645 = vpack.c.bf16 %v1517, %v1517
    %v1646 = vpack.c.bf16 %v1518, %v1518
    %v1647 = vpack.c.bf16 %v1519, %v1519
    %v1648 = vpack.c.bf16 %v1520, %v1520
    %v1649 = vpack.c.bf16 %v1521, %v1521
    %v1650 = vpack.c.bf16 %v1522, %v1522
    %v1651 = vpack.c.bf16 %v1523, %v1523
    %v1652 = vpack.c.bf16 %v1524, %v1524
    %v1653 = vpack.c.bf16 %v1525, %v1525
    %v1654 = vpack.c.bf16 %v1526, %v1526
    %v1655 = vpack.c.bf16 %v1527, %v1527
    %v1656 = vpack.c.bf16 %v1528, %v1528
    %v1657 = vpack.c.bf16 %v1529, %v1529
    %v1658 = vpack.c.bf16 %v1530, %v1530
    %v1659 = vpack.c.bf16 %v1531, %v1531
    %v1660 = vpack.c.bf16 %v1532, %v1532
    %v1661 = vpack.c.bf16 %v1533, %v1533
    %v1662 = vpack.c.bf16 %v1534, %v1534
    %v1663 = vpack.c.bf16 %v1535, %v1535
    %v1664 = vpack.c.bf16 %v1536, %v1536
    %v1665 = vpack.c.bf16 %v1537, %v1537
    %v1666 = vpack.c.bf16 %v1538, %v1538
    %v1667 = vpack.c.bf16 %v1539, %v1539
    %v1668 = vpack.c.bf16 %v1540, %v1540
    %v1669 = vpack.c.bf16 %v1541, %v1541
    %v1670 = vpack.c.bf16 %v1542, %v1542
    %v1671 = vpack.c.bf16 %v1543, %v1543
    %v1672 = vpack.c.bf16 %v1544, %v1544
    %v1673 = vpack.c.bf16 %v1545, %v1545
    %v1674 = vpack.c.bf16 %v1546, %v1546
    %v1675 = vpack.c.bf16 %v1547, %v1547
    %v1676 = vpack.c.bf16 %v1548, %v1548
    %v1677 = vpack.c.bf16 %v1549, %v1549
    %v1678 = vpack.c.bf16 %v1550, %v1550
    %v1679 = vpack.c.bf16 %v1551, %v1551
    %v1680 = vpack.c.bf16 %v1552, %v1552
    %v1681 = vpack.c.bf16 %v1553, %v1553
    %v1682 = vpack.c.bf16 %v1554, %v1554
    %v1683 = vpack.c.bf16 %v1555, %v1555
    %v1684 = vpack.c.bf16 %v1556, %v1556
    %v1685 = vpack.c.bf16 %v1557, %v1557
    %v1686 = vpack.c.bf16 %v1558, %v1558
    %v1687 = vpack.c.bf16 %v1559, %v1559
    %v1688 = vpack.c.bf16 %v1560, %v1560
    %v1689 = vpack.c.bf16 %v1561, %v1561
    %v1690 = vpack.c.bf16 %v1562, %v1562
    %v1691 = vpack.c.bf16 %v1563, %v1563
    %v1692 = vpack.c.bf16 %v1564, %v1564
    %v1693 = vpack.c.bf16 %v1565, %v1565
    %v1694 = vpack.c.bf16 %v1566, %v1566
    %v1695 = vpack.c.bf16 %v1567, %v1567
    %v1696 = vpack.c.bf16 %v1568, %v1568
    %v1697 = vpack.c.bf16 %v1569, %v1569
    %v1698 = vpack.c.bf16 %v1570, %v1570
    %v1699 = vpack.c.bf16 %v1571, %v1571
    %v1700 = vpack.c.bf16 %v1572, %v1572
    %v1701 = vpack.c.bf16 %v1573, %v1573
    %v1702 = vtanh.bf16.pop %v1574
    %v1703 = vtanh.bf16.pop %v1575
    %v1704 = vtanh.bf16.pop %v1576
    %v1705 = vtanh.bf16.pop %v1577
    %v1706 = vtanh.bf16.pop %v1578
    %v1707 = vtanh.bf16.pop %v1579
    %v1708 = vtanh.bf16.pop %v1580
    %v1709 = vtanh.bf16.pop %v1581
    %v1710 = vtanh.bf16.pop %v1582
    %v1711 = vtanh.bf16.pop %v1583
    %v1712 = vtanh.bf16.pop %v1584
    %v1713 = vtanh.bf16.pop %v1585
    %v1714 = vtanh.bf16.pop %v1586
    %v1715 = vtanh.bf16.pop %v1587
    %v1716 = vtanh.bf16.pop %v1588
    %v1717 = vtanh.bf16.pop %v1589
    %v1718 = vtanh.bf16.pop %v1590
    %v1719 = vtanh.bf16.pop %v1591
    %v1720 = vtanh.bf16.pop %v1592
    %v1721 = vtanh.bf16.pop %v1593
    %v1722 = vtanh.bf16.pop %v1594
    %v1723 = vtanh.bf16.pop %v1595
    %v1724 = vtanh.bf16.pop %v1596
    %v1725 = vtanh.bf16.pop %v1597
    %v1726 = vtanh.bf16.pop %v1598
    %v1727 = vtanh.bf16.pop %v1599
    %v1728 = vtanh.bf16.pop %v1600
    %v1729 = vtanh.bf16.pop %v1601
    %v1730 = vtanh.bf16.pop %v1602
    %v1731 = vtanh.bf16.pop %v1603
    %v1732 = vtanh.bf16.pop %v1604
    %v1733 = vtanh.bf16.pop %v1605
    %v1734 = vtanh.bf16.pop %v1606
    %v1735 = vtanh.bf16.pop %v1607
    %v1736 = vtanh.bf16.pop %v1608
    %v1737 = vtanh.bf16.pop %v1609
    %v1738 = vtanh.bf16.pop %v1610
    %v1739 = vtanh.bf16.pop %v1611
    %v1740 = vtanh.bf16.pop %v1612
    %v1741 = vtanh.bf16.pop %v1613
    %v1742 = vtanh.bf16.pop %v1614
    %v1743 = vtanh.bf16.pop %v1615
    %v1744 = vtanh.bf16.pop %v1616
    %v1745 = vtanh.bf16.pop %v1617
    %v1746 = vtanh.bf16.pop %v1618
    %v1747 = vtanh.bf16.pop %v1619
    %v1748 = vtanh.bf16.pop %v1620
    %v1749 = vtanh.bf16.pop %v1621
    %v1750 = vtanh.bf16.pop %v1622
    %v1751 = vtanh.bf16.pop %v1623
    %v1752 = vtanh.bf16.pop %v1624
    %v1753 = vtanh.bf16.pop %v1625
    %v1754 = vtanh.bf16.pop %v1626
    %v1755 = vtanh.bf16.pop %v1627
    %v1756 = vtanh.bf16.pop %v1628
    %v1757 = vtanh.bf16.pop %v1629
    %v1758 = vtanh.bf16.pop %v1630
    %v1759 = vtanh.bf16.pop %v1631
    %v1760 = vtanh.bf16.pop %v1632
    %v1761 = vtanh.bf16.pop %v1633
    %v1762 = vtanh.bf16.pop %v1634
    %v1763 = vtanh.bf16.pop %v1635
    %v1764 = vtanh.bf16.pop %v1636
    %v1765 = vtanh.bf16.pop %v1637
    %v1766 = vtanh.bf16.pop %v1638
    %v1767 = vtanh.bf16.pop %v1639
    %v1768 = vtanh.bf16.pop %v1640
    %v1769 = vtanh.bf16.pop %v1641
    %v1770 = vtanh.bf16.pop %v1642
    %v1771 = vtanh.bf16.pop %v1643
    %v1772 = vtanh.bf16.pop %v1644
    %v1773 = vtanh.bf16.pop %v1645
    %v1774 = vtanh.bf16.pop %v1646
    %v1775 = vtanh.bf16.pop %v1647
    %v1776 = vtanh.bf16.pop %v1648
    %v1777 = vtanh.bf16.pop %v1649
    %v1778 = vtanh.bf16.pop %v1650
    %v1779 = vtanh.bf16.pop %v1651
    %v1780 = vtanh.bf16.pop %v1652
    %v1781 = vtanh.bf16.pop %v1653
    %v1782 = vtanh.bf16.pop %v1654
    %v1783 = vtanh.bf16.pop %v1655
    %v1784 = vtanh.bf16.pop %v1656
    %v1785 = vtanh.bf16.pop %v1657
    %v1786 = vtanh.bf16.pop %v1658
    %v1787 = vtanh.bf16.pop %v1659
    %v1788 = vtanh.bf16.pop %v1660
    %v1789 = vtanh.bf16.pop %v1661
    %v1790 = vtanh.bf16.pop %v1662
    %v1791 = vtanh.bf16.pop %v1663
    %v1792 = vtanh.bf16.pop %v1664
    %v1793 = vtanh.bf16.pop %v1665
    %v1794 = vtanh.bf16.pop %v1666
    %v1795 = vtanh.bf16.pop %v1667
    %v1796 = vtanh.bf16.pop %v1668
    %v1797 = vtanh.bf16.pop %v1669
    %v1798 = vtanh.bf16.pop %v1670
    %v1799 = vtanh.bf16.pop %v1671
    %v1800 = vtanh.bf16.pop %v1672
    %v1801 = vtanh.bf16.pop %v1673
    %v1802 = vtanh.bf16.pop %v1674
    %v1803 = vtanh.bf16.pop %v1675
    %v1804 = vtanh.bf16.pop %v1676
    %v1805 = vtanh.bf16.pop %v1677
    %v1806 = vtanh.bf16.pop %v1678
    %v1807 = vtanh.bf16.pop %v1679
    %v1808 = vtanh.bf16.pop %v1680
    %v1809 = vtanh.bf16.pop %v1681
    %v1810 = vtanh.bf16.pop %v1682
    %v1811 = vtanh.bf16.pop %v1683
    %v1812 = vtanh.bf16.pop %v1684
    %v1813 = vtanh.bf16.pop %v1685
    %v1814 = vtanh.bf16.pop %v1686
    %v1815 = vtanh.bf16.pop %v1687
    %v1816 = vtanh.bf16.pop %v1688
    %v1817 = vtanh.bf16.pop %v1689
    %v1818 = vtanh.bf16.pop %v1690
    %v1819 = vtanh.bf16.pop %v1691
    %v1820 = vtanh.bf16.pop %v1692
    %v1821 = vtanh.bf16.pop %v1693
    %v1822 = vtanh.bf16.pop %v1694
    %v1823 = vtanh.bf16.pop %v1695
    %v1824 = vtanh.bf16.pop %v1696
    %v1825 = vtanh.bf16.pop %v1697
    %v1826 = vtanh.bf16.pop %v1698
    %v1827 = vtanh.bf16.pop %v1699
    %v1828 = vtanh.bf16.pop %v1700
    %v1829 = vtanh.bf16.pop %v1701
    %v1830 = vld [vmem:[%s5] sm:$0x1]
    %v1831 = vpack.c.bf16 %v1830, %v1830
    %v1833 = vpack.i.b16 %v1831, %v1831
    %v1835 = vlaneseq
    %v1836 = vshrl.u32 %v1835, 7
    %v1837 = vsub.s32 0, %v1836
    %v1838 = vrot.slane %v1833, %v1837
    %v1839 = vmul.bf16 %v1702, %v1838
    %v1840 = vmul.bf16 %v1703, %v1838
    %v1841 = vmul.bf16 %v1704, %v1838
    %v1842 = vmul.bf16 %v1705, %v1838
    %v1843 = vmul.bf16 %v1706, %v1838
    %v1844 = vmul.bf16 %v1707, %v1838
    %v1845 = vmul.bf16 %v1708, %v1838
    %v1846 = vmul.bf16 %v1709, %v1838
    %v1847 = vmul.bf16 %v1710, %v1838
    %v1848 = vmul.bf16 %v1711, %v1838
    %v1849 = vmul.bf16 %v1712, %v1838
    %v1850 = vmul.bf16 %v1713, %v1838
    %v1851 = vmul.bf16 %v1714, %v1838
    %v1852 = vmul.bf16 %v1715, %v1838
    %v1853 = vmul.bf16 %v1716, %v1838
    %v1854 = vmul.bf16 %v1717, %v1838
    %v1855 = vmul.bf16 %v1718, %v1838
    %v1856 = vmul.bf16 %v1719, %v1838
    %v1857 = vmul.bf16 %v1720, %v1838
    %v1858 = vmul.bf16 %v1721, %v1838
    %v1859 = vmul.bf16 %v1722, %v1838
    %v1860 = vmul.bf16 %v1723, %v1838
    %v1861 = vmul.bf16 %v1724, %v1838
    %v1862 = vmul.bf16 %v1725, %v1838
    %v1863 = vmul.bf16 %v1726, %v1838
    %v1864 = vmul.bf16 %v1727, %v1838
    %v1865 = vmul.bf16 %v1728, %v1838
    %v1866 = vmul.bf16 %v1729, %v1838
    %v1867 = vmul.bf16 %v1730, %v1838
    %v1868 = vmul.bf16 %v1731, %v1838
    %v1869 = vmul.bf16 %v1732, %v1838
    %v1870 = vmul.bf16 %v1733, %v1838
    %v1871 = vmul.bf16 %v1734, %v1838
    %v1872 = vmul.bf16 %v1735, %v1838
    %v1873 = vmul.bf16 %v1736, %v1838
    %v1874 = vmul.bf16 %v1737, %v1838
    %v1875 = vmul.bf16 %v1738, %v1838
    %v1876 = vmul.bf16 %v1739, %v1838
    %v1877 = vmul.bf16 %v1740, %v1838
    %v1878 = vmul.bf16 %v1741, %v1838
    %v1879 = vmul.bf16 %v1742, %v1838
    %v1880 = vmul.bf16 %v1743, %v1838
    %v1881 = vmul.bf16 %v1744, %v1838
    %v1882 = vmul.bf16 %v1745, %v1838
    %v1883 = vmul.bf16 %v1746, %v1838
    %v1884 = vmul.bf16 %v1747, %v1838
    %v1885 = vmul.bf16 %v1748, %v1838
    %v1886 = vmul.bf16 %v1749, %v1838
    %v1887 = vmul.bf16 %v1750, %v1838
    %v1888 = vmul.bf16 %v1751, %v1838
    %v1889 = vmul.bf16 %v1752, %v1838
    %v1890 = vmul.bf16 %v1753, %v1838
    %v1891 = vmul.bf16 %v1754, %v1838
    %v1892 = vmul.bf16 %v1755, %v1838
    %v1893 = vmul.bf16 %v1756, %v1838
    %v1894 = vmul.bf16 %v1757, %v1838
    %v1895 = vmul.bf16 %v1758, %v1838
    %v1896 = vmul.bf16 %v1759, %v1838
    %v1897 = vmul.bf16 %v1760, %v1838
    %v1898 = vmul.bf16 %v1761, %v1838
    %v1899 = vmul.bf16 %v1762, %v1838
    %v1900 = vmul.bf16 %v1763, %v1838
    %v1901 = vmul.bf16 %v1764, %v1838
    %v1902 = vmul.bf16 %v1765, %v1838
    %v1903 = vmul.bf16 %v1766, %v1838
    %v1904 = vmul.bf16 %v1767, %v1838
    %v1905 = vmul.bf16 %v1768, %v1838
    %v1906 = vmul.bf16 %v1769, %v1838
    %v1907 = vmul.bf16 %v1770, %v1838
    %v1908 = vmul.bf16 %v1771, %v1838
    %v1909 = vmul.bf16 %v1772, %v1838
    %v1910 = vmul.bf16 %v1773, %v1838
    %v1911 = vmul.bf16 %v1774, %v1838
    %v1912 = vmul.bf16 %v1775, %v1838
    %v1913 = vmul.bf16 %v1776, %v1838
    %v1914 = vmul.bf16 %v1777, %v1838
    %v1915 = vmul.bf16 %v1778, %v1838
    %v1916 = vmul.bf16 %v1779, %v1838
    %v1917 = vmul.bf16 %v1780, %v1838
    %v1918 = vmul.bf16 %v1781, %v1838
    %v1919 = vmul.bf16 %v1782, %v1838
    %v1920 = vmul.bf16 %v1783, %v1838
    %v1921 = vmul.bf16 %v1784, %v1838
    %v1922 = vmul.bf16 %v1785, %v1838
    %v1923 = vmul.bf16 %v1786, %v1838
    %v1924 = vmul.bf16 %v1787, %v1838
    %v1925 = vmul.bf16 %v1788, %v1838
    %v1926 = vmul.bf16 %v1789, %v1838
    %v1927 = vmul.bf16 %v1790, %v1838
    %v1928 = vmul.bf16 %v1791, %v1838
    %v1929 = vmul.bf16 %v1792, %v1838
    %v1930 = vmul.bf16 %v1793, %v1838
    %v1931 = vmul.bf16 %v1794, %v1838
    %v1932 = vmul.bf16 %v1795, %v1838
    %v1933 = vmul.bf16 %v1796, %v1838
    %v1934 = vmul.bf16 %v1797, %v1838
    %v1935 = vmul.bf16 %v1798, %v1838
    %v1936 = vmul.bf16 %v1799, %v1838
    %v1937 = vmul.bf16 %v1800, %v1838
    %v1938 = vmul.bf16 %v1801, %v1838
    %v1939 = vmul.bf16 %v1802, %v1838
    %v1940 = vmul.bf16 %v1803, %v1838
    %v1941 = vmul.bf16 %v1804, %v1838
    %v1942 = vmul.bf16 %v1805, %v1838
    %v1943 = vmul.bf16 %v1806, %v1838
    %v1944 = vmul.bf16 %v1807, %v1838
    %v1945 = vmul.bf16 %v1808, %v1838
    %v1946 = vmul.bf16 %v1809, %v1838
    %v1947 = vmul.bf16 %v1810, %v1838
    %v1948 = vmul.bf16 %v1811, %v1838
    %v1949 = vmul.bf16 %v1812, %v1838
    %v1950 = vmul.bf16 %v1813, %v1838
    %v1951 = vmul.bf16 %v1814, %v1838
    %v1952 = vmul.bf16 %v1815, %v1838
    %v1953 = vmul.bf16 %v1816, %v1838
    %v1954 = vmul.bf16 %v1817, %v1838
    %v1955 = vmul.bf16 %v1818, %v1838
    %v1956 = vmul.bf16 %v1819, %v1838
    %v1957 = vmul.bf16 %v1820, %v1838
    %v1958 = vmul.bf16 %v1821, %v1838
    %v1959 = vmul.bf16 %v1822, %v1838
    %v1960 = vmul.bf16 %v1823, %v1838
    %v1961 = vmul.bf16 %v1824, %v1838
    %v1962 = vmul.bf16 %v1825, %v1838
    %v1963 = vmul.bf16 %v1826, %v1838
    %v1964 = vmul.bf16 %v1827, %v1838
    %v1965 = vmul.bf16 %v1828, %v1838
    %v1966 = vmul.bf16 %v1829, %v1838
    %v1967 = vunpack.c.l.bf16 %v1839
    %v1968 = vunpack.c.l.bf16 %v1840
    %v1969 = vunpack.c.l.bf16 %v1841
    %v1970 = vunpack.c.l.bf16 %v1842
    %v1971 = vunpack.c.l.bf16 %v1843
    %v1972 = vunpack.c.l.bf16 %v1844
    %v1973 = vunpack.c.l.bf16 %v1845
    %v1974 = vunpack.c.l.bf16 %v1846
    %v1975 = vunpack.c.l.bf16 %v1847
    %v1976 = vunpack.c.l.bf16 %v1848
    %v1977 = vunpack.c.l.bf16 %v1849
    %v1978 = vunpack.c.l.bf16 %v1850
    %v1979 = vunpack.c.l.bf16 %v1851
    %v1980 = vunpack.c.l.bf16 %v1852
    %v1981 = vunpack.c.l.bf16 %v1853
    %v1982 = vunpack.c.l.bf16 %v1854
    %v1983 = vunpack.c.l.bf16 %v1855
    %v1984 = vunpack.c.l.bf16 %v1856
    %v1985 = vunpack.c.l.bf16 %v1857
    %v1986 = vunpack.c.l.bf16 %v1858
    %v1987 = vunpack.c.l.bf16 %v1859
    %v1988 = vunpack.c.l.bf16 %v1860
    %v1989 = vunpack.c.l.bf16 %v1861
    %v1990 = vunpack.c.l.bf16 %v1862
    %v1991 = vunpack.c.l.bf16 %v1863
    %v1992 = vunpack.c.l.bf16 %v1864
    %v1993 = vunpack.c.l.bf16 %v1865
    %v1994 = vunpack.c.l.bf16 %v1866
    %v1995 = vunpack.c.l.bf16 %v1867
    %v1996 = vunpack.c.l.bf16 %v1868
    %v1997 = vunpack.c.l.bf16 %v1869
    %v1998 = vunpack.c.l.bf16 %v1870
    %v1999 = vunpack.c.l.bf16 %v1871
    %v2000 = vunpack.c.l.bf16 %v1872
    %v2001 = vunpack.c.l.bf16 %v1873
    %v2002 = vunpack.c.l.bf16 %v1874
    %v2003 = vunpack.c.l.bf16 %v1875
    %v2004 = vunpack.c.l.bf16 %v1876
    %v2005 = vunpack.c.l.bf16 %v1877
    %v2006 = vunpack.c.l.bf16 %v1878
    %v2007 = vunpack.c.l.bf16 %v1879
    %v2008 = vunpack.c.l.bf16 %v1880
    %v2009 = vunpack.c.l.bf16 %v1881
    %v2010 = vunpack.c.l.bf16 %v1882
    %v2011 = vunpack.c.l.bf16 %v1883
    %v2012 = vunpack.c.l.bf16 %v1884
    %v2013 = vunpack.c.l.bf16 %v1885
    %v2014 = vunpack.c.l.bf16 %v1886
    %v2015 = vunpack.c.l.bf16 %v1887
    %v2016 = vunpack.c.l.bf16 %v1888
    %v2017 = vunpack.c.l.bf16 %v1889
    %v2018 = vunpack.c.l.bf16 %v1890
    %v2019 = vunpack.c.l.bf16 %v1891
    %v2020 = vunpack.c.l.bf16 %v1892
    %v2021 = vunpack.c.l.bf16 %v1893
    %v2022 = vunpack.c.l.bf16 %v1894
    %v2023 = vunpack.c.l.bf16 %v1895
    %v2024 = vunpack.c.l.bf16 %v1896
    %v2025 = vunpack.c.l.bf16 %v1897
    %v2026 = vunpack.c.l.bf16 %v1898
    %v2027 = vunpack.c.l.bf16 %v1899
    %v2028 = vunpack.c.l.bf16 %v1900
    %v2029 = vunpack.c.l.bf16 %v1901
    %v2030 = vunpack.c.l.bf16 %v1902
    %v2031 = vunpack.c.l.bf16 %v1903
    %v2032 = vunpack.c.l.bf16 %v1904
    %v2033 = vunpack.c.l.bf16 %v1905
    %v2034 = vunpack.c.l.bf16 %v1906
    %v2035 = vunpack.c.l.bf16 %v1907
    %v2036 = vunpack.c.l.bf16 %v1908
    %v2037 = vunpack.c.l.bf16 %v1909
    %v2038 = vunpack.c.l.bf16 %v1910
    %v2039 = vunpack.c.l.bf16 %v1911
    %v2040 = vunpack.c.l.bf16 %v1912
    %v2041 = vunpack.c.l.bf16 %v1913
    %v2042 = vunpack.c.l.bf16 %v1914
    %v2043 = vunpack.c.l.bf16 %v1915
    %v2044 = vunpack.c.l.bf16 %v1916
    %v2045 = vunpack.c.l.bf16 %v1917
    %v2046 = vunpack.c.l.bf16 %v1918
    %v2047 = vunpack.c.l.bf16 %v1919
    %v2048 = vunpack.c.l.bf16 %v1920
    %v2049 = vunpack.c.l.bf16 %v1921
    %v2050 = vunpack.c.l.bf16 %v1922
    %v2051 = vunpack.c.l.bf16 %v1923
    %v2052 = vunpack.c.l.bf16 %v1924
    %v2053 = vunpack.c.l.bf16 %v1925
    %v2054 = vunpack.c.l.bf16 %v1926
    %v2055 = vunpack.c.l.bf16 %v1927
    %v2056 = vunpack.c.l.bf16 %v1928
    %v2057 = vunpack.c.l.bf16 %v1929
    %v2058 = vunpack.c.l.bf16 %v1930
    %v2059 = vunpack.c.l.bf16 %v1931
    %v2060 = vunpack.c.l.bf16 %v1932
    %v2061 = vunpack.c.l.bf16 %v1933
    %v2062 = vunpack.c.l.bf16 %v1934
    %v2063 = vunpack.c.l.bf16 %v1935
    %v2064 = vunpack.c.l.bf16 %v1936
    %v2065 = vunpack.c.l.bf16 %v1937
    %v2066 = vunpack.c.l.bf16 %v1938
    %v2067 = vunpack.c.l.bf16 %v1939
    %v2068 = vunpack.c.l.bf16 %v1940
    %v2069 = vunpack.c.l.bf16 %v1941
    %v2070 = vunpack.c.l.bf16 %v1942
    %v2071 = vunpack.c.l.bf16 %v1943
    %v2072 = vunpack.c.l.bf16 %v1944
    %v2073 = vunpack.c.l.bf16 %v1945
    %v2074 = vunpack.c.l.bf16 %v1946
    %v2075 = vunpack.c.l.bf16 %v1947
    %v2076 = vunpack.c.l.bf16 %v1948
    %v2077 = vunpack.c.l.bf16 %v1949
    %v2078 = vunpack.c.l.bf16 %v1950
    %v2079 = vunpack.c.l.bf16 %v1951
    %v2080 = vunpack.c.l.bf16 %v1952
    %v2081 = vunpack.c.l.bf16 %v1953
    %v2082 = vunpack.c.l.bf16 %v1954
    %v2083 = vunpack.c.l.bf16 %v1955
    %v2084 = vunpack.c.l.bf16 %v1956
    %v2085 = vunpack.c.l.bf16 %v1957
    %v2086 = vunpack.c.l.bf16 %v1958
    %v2087 = vunpack.c.l.bf16 %v1959
    %v2088 = vunpack.c.l.bf16 %v1960
    %v2089 = vunpack.c.l.bf16 %v1961
    %v2090 = vunpack.c.l.bf16 %v1962
    %v2091 = vunpack.c.l.bf16 %v1963
    %v2092 = vunpack.c.l.bf16 %v1964
    %v2093 = vunpack.c.l.bf16 %v1965
    %v2094 = vunpack.c.l.bf16 %v1966
    %vm2095 = vcmask 261120
    %v2096 = vsel %vm2095, %v1967, 0.0
    %2097 = vadd.xlane.f32.xlu0 %v2096
    %v2098 = vpop.xlane.xlu0 %2097
    %v2099 = vsel %vm2095, %v1968, 0.0
    %2100 = vadd.xlane.f32.xlu0 %v2099
    %v2101 = vpop.xlane.xlu0 %2100
    %v2102 = vsel %vm2095, %v1969, 0.0
    %2103 = vadd.xlane.f32.xlu0 %v2102
    %v2104 = vpop.xlane.xlu0 %2103
    %v2105 = vsel %vm2095, %v1970, 0.0
    %2106 = vadd.xlane.f32.xlu0 %v2105
    %v2107 = vpop.xlane.xlu0 %2106
    %v2108 = vsel %vm2095, %v1971, 0.0
    %2109 = vadd.xlane.f32.xlu0 %v2108
    %v2110 = vpop.xlane.xlu0 %2109
    %v2111 = vsel %vm2095, %v1972, 0.0
    %2112 = vadd.xlane.f32.xlu0 %v2111
    %v2113 = vpop.xlane.xlu0 %2112
    %v2114 = vsel %vm2095, %v1973, 0.0
    %2115 = vadd.xlane.f32.xlu0 %v2114
    %v2116 = vpop.xlane.xlu0 %2115
    %v2117 = vsel %vm2095, %v1974, 0.0
    %2118 = vadd.xlane.f32.xlu0 %v2117
    %v2119 = vpop.xlane.xlu0 %2118
    %v2120 = vsel %vm2095, %v1975, 0.0
    %2121 = vadd.xlane.f32.xlu0 %v2120
    %v2122 = vpop.xlane.xlu0 %2121
    %v2123 = vsel %vm2095, %v1976, 0.0
    %2124 = vadd.xlane.f32.xlu0 %v2123
    %v2125 = vpop.xlane.xlu0 %2124
    %v2126 = vsel %vm2095, %v1977, 0.0
    %2127 = vadd.xlane.f32.xlu0 %v2126
    %v2128 = vpop.xlane.xlu0 %2127
    %v2129 = vsel %vm2095, %v1978, 0.0
    %2130 = vadd.xlane.f32.xlu0 %v2129
    %v2131 = vpop.xlane.xlu0 %2130
    %v2132 = vsel %vm2095, %v1979, 0.0
    %2133 = vadd.xlane.f32.xlu0 %v2132
    %v2134 = vpop.xlane.xlu0 %2133
    %v2135 = vsel %vm2095, %v1980, 0.0
    %2136 = vadd.xlane.f32.xlu0 %v2135
    %v2137 = vpop.xlane.xlu0 %2136
    %v2138 = vsel %vm2095, %v1981, 0.0
    %2139 = vadd.xlane.f32.xlu0 %v2138
    %v2140 = vpop.xlane.xlu0 %2139
    %v2141 = vsel %vm2095, %v1982, 0.0
    %2142 = vadd.xlane.f32.xlu0 %v2141
    %v2143 = vpop.xlane.xlu0 %2142
    %v2144 = vsel %vm2095, %v1983, 0.0
    %2145 = vadd.xlane.f32.xlu0 %v2144
    %v2146 = vpop.xlane.xlu0 %2145
    %v2147 = vsel %vm2095, %v1984, 0.0
    %2148 = vadd.xlane.f32.xlu0 %v2147
    %v2149 = vpop.xlane.xlu0 %2148
    %v2150 = vsel %vm2095, %v1985, 0.0
    %2151 = vadd.xlane.f32.xlu0 %v2150
    %v2152 = vpop.xlane.xlu0 %2151
    %v2153 = vsel %vm2095, %v1986, 0.0
    %2154 = vadd.xlane.f32.xlu0 %v2153
    %v2155 = vpop.xlane.xlu0 %2154
    %v2156 = vsel %vm2095, %v1987, 0.0
    %2157 = vadd.xlane.f32.xlu0 %v2156
    %v2158 = vpop.xlane.xlu0 %2157
    %v2159 = vsel %vm2095, %v1988, 0.0
    %2160 = vadd.xlane.f32.xlu0 %v2159
    %v2161 = vpop.xlane.xlu0 %2160
    %v2162 = vsel %vm2095, %v1989, 0.0
    %2163 = vadd.xlane.f32.xlu0 %v2162
    %v2164 = vpop.xlane.xlu0 %2163
    %v2165 = vsel %vm2095, %v1990, 0.0
    %2166 = vadd.xlane.f32.xlu0 %v2165
    %v2167 = vpop.xlane.xlu0 %2166
    %v2168 = vsel %vm2095, %v1991, 0.0
    %2169 = vadd.xlane.f32.xlu0 %v2168
    %v2170 = vpop.xlane.xlu0 %2169
    %v2171 = vsel %vm2095, %v1992, 0.0
    %2172 = vadd.xlane.f32.xlu0 %v2171
    %v2173 = vpop.xlane.xlu0 %2172
    %v2174 = vsel %vm2095, %v1993, 0.0
    %2175 = vadd.xlane.f32.xlu0 %v2174
    %v2176 = vpop.xlane.xlu0 %2175
    %v2177 = vsel %vm2095, %v1994, 0.0
    %2178 = vadd.xlane.f32.xlu0 %v2177
    %v2179 = vpop.xlane.xlu0 %2178
    %v2180 = vsel %vm2095, %v1995, 0.0
    %2181 = vadd.xlane.f32.xlu0 %v2180
    %v2182 = vpop.xlane.xlu0 %2181
    %v2183 = vsel %vm2095, %v1996, 0.0
    %2184 = vadd.xlane.f32.xlu0 %v2183
    %v2185 = vpop.xlane.xlu0 %2184
    %v2186 = vsel %vm2095, %v1997, 0.0
    %2187 = vadd.xlane.f32.xlu0 %v2186
    %v2188 = vpop.xlane.xlu0 %2187
    %v2189 = vsel %vm2095, %v1998, 0.0
    %2190 = vadd.xlane.f32.xlu0 %v2189
    %v2191 = vpop.xlane.xlu0 %2190
    %v2192 = vsel %vm2095, %v1999, 0.0
    %2193 = vadd.xlane.f32.xlu0 %v2192
    %v2194 = vpop.xlane.xlu0 %2193
    %v2195 = vsel %vm2095, %v2000, 0.0
    %2196 = vadd.xlane.f32.xlu0 %v2195
    %v2197 = vpop.xlane.xlu0 %2196
    %v2198 = vsel %vm2095, %v2001, 0.0
    %2199 = vadd.xlane.f32.xlu0 %v2198
    %v2200 = vpop.xlane.xlu0 %2199
    %v2201 = vsel %vm2095, %v2002, 0.0
    %2202 = vadd.xlane.f32.xlu0 %v2201
    %v2203 = vpop.xlane.xlu0 %2202
    %v2204 = vsel %vm2095, %v2003, 0.0
    %2205 = vadd.xlane.f32.xlu0 %v2204
    %v2206 = vpop.xlane.xlu0 %2205
    %v2207 = vsel %vm2095, %v2004, 0.0
    %2208 = vadd.xlane.f32.xlu0 %v2207
    %v2209 = vpop.xlane.xlu0 %2208
    %v2210 = vsel %vm2095, %v2005, 0.0
    %2211 = vadd.xlane.f32.xlu0 %v2210
    %v2212 = vpop.xlane.xlu0 %2211
    %v2213 = vsel %vm2095, %v2006, 0.0
    %2214 = vadd.xlane.f32.xlu0 %v2213
    %v2215 = vpop.xlane.xlu0 %2214
    %v2216 = vsel %vm2095, %v2007, 0.0
    %2217 = vadd.xlane.f32.xlu0 %v2216
    %v2218 = vpop.xlane.xlu0 %2217
    %v2219 = vsel %vm2095, %v2008, 0.0
    %2220 = vadd.xlane.f32.xlu0 %v2219
    %v2221 = vpop.xlane.xlu0 %2220
    %v2222 = vsel %vm2095, %v2009, 0.0
    %2223 = vadd.xlane.f32.xlu0 %v2222
    %v2224 = vpop.xlane.xlu0 %2223
    %v2225 = vsel %vm2095, %v2010, 0.0
    %2226 = vadd.xlane.f32.xlu0 %v2225
    %v2227 = vpop.xlane.xlu0 %2226
    %v2228 = vsel %vm2095, %v2011, 0.0
    %2229 = vadd.xlane.f32.xlu0 %v2228
    %v2230 = vpop.xlane.xlu0 %2229
    %v2231 = vsel %vm2095, %v2012, 0.0
    %2232 = vadd.xlane.f32.xlu0 %v2231
    %v2233 = vpop.xlane.xlu0 %2232
    %v2234 = vsel %vm2095, %v2013, 0.0
    %2235 = vadd.xlane.f32.xlu0 %v2234
    %v2236 = vpop.xlane.xlu0 %2235
    %v2237 = vsel %vm2095, %v2014, 0.0
    %2238 = vadd.xlane.f32.xlu0 %v2237
    %v2239 = vpop.xlane.xlu0 %2238
    %v2240 = vsel %vm2095, %v2015, 0.0
    %2241 = vadd.xlane.f32.xlu0 %v2240
    %v2242 = vpop.xlane.xlu0 %2241
    %v2243 = vsel %vm2095, %v2016, 0.0
    %2244 = vadd.xlane.f32.xlu0 %v2243
    %v2245 = vpop.xlane.xlu0 %2244
    %v2246 = vsel %vm2095, %v2017, 0.0
    %2247 = vadd.xlane.f32.xlu0 %v2246
    %v2248 = vpop.xlane.xlu0 %2247
    %v2249 = vsel %vm2095, %v2018, 0.0
    %2250 = vadd.xlane.f32.xlu0 %v2249
    %v2251 = vpop.xlane.xlu0 %2250
    %v2252 = vsel %vm2095, %v2019, 0.0
    %2253 = vadd.xlane.f32.xlu0 %v2252
    %v2254 = vpop.xlane.xlu0 %2253
    %v2255 = vsel %vm2095, %v2020, 0.0
    %2256 = vadd.xlane.f32.xlu0 %v2255
    %v2257 = vpop.xlane.xlu0 %2256
    %v2258 = vsel %vm2095, %v2021, 0.0
    %2259 = vadd.xlane.f32.xlu0 %v2258
    %v2260 = vpop.xlane.xlu0 %2259
    %v2261 = vsel %vm2095, %v2022, 0.0
    %2262 = vadd.xlane.f32.xlu0 %v2261
    %v2263 = vpop.xlane.xlu0 %2262
    %v2264 = vsel %vm2095, %v2023, 0.0
    %2265 = vadd.xlane.f32.xlu0 %v2264
    %v2266 = vpop.xlane.xlu0 %2265
    %v2267 = vsel %vm2095, %v2024, 0.0
    %2268 = vadd.xlane.f32.xlu0 %v2267
    %v2269 = vpop.xlane.xlu0 %2268
    %v2270 = vsel %vm2095, %v2025, 0.0
    %2271 = vadd.xlane.f32.xlu0 %v2270
    %v2272 = vpop.xlane.xlu0 %2271
    %v2273 = vsel %vm2095, %v2026, 0.0
    %2274 = vadd.xlane.f32.xlu0 %v2273
    %v2275 = vpop.xlane.xlu0 %2274
    %v2276 = vsel %vm2095, %v2027, 0.0
    %2277 = vadd.xlane.f32.xlu0 %v2276
    %v2278 = vpop.xlane.xlu0 %2277
    %v2279 = vsel %vm2095, %v2028, 0.0
    %2280 = vadd.xlane.f32.xlu0 %v2279
    %v2281 = vpop.xlane.xlu0 %2280
    %v2282 = vsel %vm2095, %v2029, 0.0
    %2283 = vadd.xlane.f32.xlu0 %v2282
    %v2284 = vpop.xlane.xlu0 %2283
    %v2285 = vsel %vm2095, %v2030, 0.0
    %2286 = vadd.xlane.f32.xlu0 %v2285
    %v2287 = vpop.xlane.xlu0 %2286
    %v2288 = vsel %vm2095, %v2031, 0.0
    %2289 = vadd.xlane.f32.xlu0 %v2288
    %v2290 = vpop.xlane.xlu0 %2289
    %v2291 = vsel %vm2095, %v2032, 0.0
    %2292 = vadd.xlane.f32.xlu0 %v2291
    %v2293 = vpop.xlane.xlu0 %2292
    %v2294 = vsel %vm2095, %v2033, 0.0
    %2295 = vadd.xlane.f32.xlu0 %v2294
    %v2296 = vpop.xlane.xlu0 %2295
    %v2297 = vsel %vm2095, %v2034, 0.0
    %2298 = vadd.xlane.f32.xlu0 %v2297
    %v2299 = vpop.xlane.xlu0 %2298
    %v2300 = vsel %vm2095, %v2035, 0.0
    %2301 = vadd.xlane.f32.xlu0 %v2300
    %v2302 = vpop.xlane.xlu0 %2301
    %v2303 = vsel %vm2095, %v2036, 0.0
    %2304 = vadd.xlane.f32.xlu0 %v2303
    %v2305 = vpop.xlane.xlu0 %2304
    %v2306 = vsel %vm2095, %v2037, 0.0
    %2307 = vadd.xlane.f32.xlu0 %v2306
    %v2308 = vpop.xlane.xlu0 %2307
    %v2309 = vsel %vm2095, %v2038, 0.0
    %2310 = vadd.xlane.f32.xlu0 %v2309
    %v2311 = vpop.xlane.xlu0 %2310
    %v2312 = vsel %vm2095, %v2039, 0.0
    %2313 = vadd.xlane.f32.xlu0 %v2312
    %v2314 = vpop.xlane.xlu0 %2313
    %v2315 = vsel %vm2095, %v2040, 0.0
    %2316 = vadd.xlane.f32.xlu0 %v2315
    %v2317 = vpop.xlane.xlu0 %2316
    %v2318 = vsel %vm2095, %v2041, 0.0
    %2319 = vadd.xlane.f32.xlu0 %v2318
    %v2320 = vpop.xlane.xlu0 %2319
    %v2321 = vsel %vm2095, %v2042, 0.0
    %2322 = vadd.xlane.f32.xlu0 %v2321
    %v2323 = vpop.xlane.xlu0 %2322
    %v2324 = vsel %vm2095, %v2043, 0.0
    %2325 = vadd.xlane.f32.xlu0 %v2324
    %v2326 = vpop.xlane.xlu0 %2325
    %v2327 = vsel %vm2095, %v2044, 0.0
    %2328 = vadd.xlane.f32.xlu0 %v2327
    %v2329 = vpop.xlane.xlu0 %2328
    %v2330 = vsel %vm2095, %v2045, 0.0
    %2331 = vadd.xlane.f32.xlu0 %v2330
    %v2332 = vpop.xlane.xlu0 %2331
    %v2333 = vsel %vm2095, %v2046, 0.0
    %2334 = vadd.xlane.f32.xlu0 %v2333
    %v2335 = vpop.xlane.xlu0 %2334
    %v2336 = vsel %vm2095, %v2047, 0.0
    %2337 = vadd.xlane.f32.xlu0 %v2336
    %v2338 = vpop.xlane.xlu0 %2337
    %v2339 = vsel %vm2095, %v2048, 0.0
    %2340 = vadd.xlane.f32.xlu0 %v2339
    %v2341 = vpop.xlane.xlu0 %2340
    %v2342 = vsel %vm2095, %v2049, 0.0
    %2343 = vadd.xlane.f32.xlu0 %v2342
    %v2344 = vpop.xlane.xlu0 %2343
    %v2345 = vsel %vm2095, %v2050, 0.0
    %2346 = vadd.xlane.f32.xlu0 %v2345
    %v2347 = vpop.xlane.xlu0 %2346
    %v2348 = vsel %vm2095, %v2051, 0.0
    %2349 = vadd.xlane.f32.xlu0 %v2348
    %v2350 = vpop.xlane.xlu0 %2349
    %v2351 = vsel %vm2095, %v2052, 0.0
    %2352 = vadd.xlane.f32.xlu0 %v2351
    %v2353 = vpop.xlane.xlu0 %2352
    %v2354 = vsel %vm2095, %v2053, 0.0
    %2355 = vadd.xlane.f32.xlu0 %v2354
    %v2356 = vpop.xlane.xlu0 %2355
    %v2357 = vsel %vm2095, %v2054, 0.0
    %2358 = vadd.xlane.f32.xlu0 %v2357
    %v2359 = vpop.xlane.xlu0 %2358
    %v2360 = vsel %vm2095, %v2055, 0.0
    %2361 = vadd.xlane.f32.xlu0 %v2360
    %v2362 = vpop.xlane.xlu0 %2361
    %v2363 = vsel %vm2095, %v2056, 0.0
    %2364 = vadd.xlane.f32.xlu0 %v2363
    %v2365 = vpop.xlane.xlu0 %2364
    %v2366 = vsel %vm2095, %v2057, 0.0
    %2367 = vadd.xlane.f32.xlu0 %v2366
    %v2368 = vpop.xlane.xlu0 %2367
    %v2369 = vsel %vm2095, %v2058, 0.0
    %2370 = vadd.xlane.f32.xlu0 %v2369
    %v2371 = vpop.xlane.xlu0 %2370
    %v2372 = vsel %vm2095, %v2059, 0.0
    %2373 = vadd.xlane.f32.xlu0 %v2372
    %v2374 = vpop.xlane.xlu0 %2373
    %v2375 = vsel %vm2095, %v2060, 0.0
    %2376 = vadd.xlane.f32.xlu0 %v2375
    %v2377 = vpop.xlane.xlu0 %2376
    %v2378 = vsel %vm2095, %v2061, 0.0
    %2379 = vadd.xlane.f32.xlu0 %v2378
    %v2380 = vpop.xlane.xlu0 %2379
    %v2381 = vsel %vm2095, %v2062, 0.0
    %2382 = vadd.xlane.f32.xlu0 %v2381
    %v2383 = vpop.xlane.xlu0 %2382
    %v2384 = vsel %vm2095, %v2063, 0.0
    %2385 = vadd.xlane.f32.xlu0 %v2384
    %v2386 = vpop.xlane.xlu0 %2385
    %v2387 = vsel %vm2095, %v2064, 0.0
    %2388 = vadd.xlane.f32.xlu0 %v2387
    %v2389 = vpop.xlane.xlu0 %2388
    %v2390 = vsel %vm2095, %v2065, 0.0
    %2391 = vadd.xlane.f32.xlu0 %v2390
    %v2392 = vpop.xlane.xlu0 %2391
    %v2393 = vsel %vm2095, %v2066, 0.0
    %2394 = vadd.xlane.f32.xlu0 %v2393
    %v2395 = vpop.xlane.xlu0 %2394
    %v2396 = vsel %vm2095, %v2067, 0.0
    %2397 = vadd.xlane.f32.xlu0 %v2396
    %v2398 = vpop.xlane.xlu0 %2397
    %v2399 = vsel %vm2095, %v2068, 0.0
    %2400 = vadd.xlane.f32.xlu0 %v2399
    %v2401 = vpop.xlane.xlu0 %2400
    %v2402 = vsel %vm2095, %v2069, 0.0
    %2403 = vadd.xlane.f32.xlu0 %v2402
    %v2404 = vpop.xlane.xlu0 %2403
    %v2405 = vsel %vm2095, %v2070, 0.0
    %2406 = vadd.xlane.f32.xlu0 %v2405
    %v2407 = vpop.xlane.xlu0 %2406
    %v2408 = vsel %vm2095, %v2071, 0.0
    %2409 = vadd.xlane.f32.xlu0 %v2408
    %v2410 = vpop.xlane.xlu0 %2409
    %v2411 = vsel %vm2095, %v2072, 0.0
    %2412 = vadd.xlane.f32.xlu0 %v2411
    %v2413 = vpop.xlane.xlu0 %2412
    %v2414 = vsel %vm2095, %v2073, 0.0
    %2415 = vadd.xlane.f32.xlu0 %v2414
    %v2416 = vpop.xlane.xlu0 %2415
    %v2417 = vsel %vm2095, %v2074, 0.0
    %2418 = vadd.xlane.f32.xlu0 %v2417
    %v2419 = vpop.xlane.xlu0 %2418
    %v2420 = vsel %vm2095, %v2075, 0.0
    %2421 = vadd.xlane.f32.xlu0 %v2420
    %v2422 = vpop.xlane.xlu0 %2421
    %v2423 = vsel %vm2095, %v2076, 0.0
    %2424 = vadd.xlane.f32.xlu0 %v2423
    %v2425 = vpop.xlane.xlu0 %2424
    %v2426 = vsel %vm2095, %v2077, 0.0
    %2427 = vadd.xlane.f32.xlu0 %v2426
    %v2428 = vpop.xlane.xlu0 %2427
    %v2429 = vsel %vm2095, %v2078, 0.0
    %2430 = vadd.xlane.f32.xlu0 %v2429
    %v2431 = vpop.xlane.xlu0 %2430
    %v2432 = vsel %vm2095, %v2079, 0.0
    %2433 = vadd.xlane.f32.xlu0 %v2432
    %v2434 = vpop.xlane.xlu0 %2433
    %v2435 = vsel %vm2095, %v2080, 0.0
    %2436 = vadd.xlane.f32.xlu0 %v2435
    %v2437 = vpop.xlane.xlu0 %2436
    %v2438 = vsel %vm2095, %v2081, 0.0
    %2439 = vadd.xlane.f32.xlu0 %v2438
    %v2440 = vpop.xlane.xlu0 %2439
    %v2441 = vsel %vm2095, %v2082, 0.0
    %2442 = vadd.xlane.f32.xlu0 %v2441
    %v2443 = vpop.xlane.xlu0 %2442
    %v2444 = vsel %vm2095, %v2083, 0.0
    %2445 = vadd.xlane.f32.xlu0 %v2444
    %v2446 = vpop.xlane.xlu0 %2445
    %v2447 = vsel %vm2095, %v2084, 0.0
    %2448 = vadd.xlane.f32.xlu0 %v2447
    %v2449 = vpop.xlane.xlu0 %2448
    %v2450 = vsel %vm2095, %v2085, 0.0
    %2451 = vadd.xlane.f32.xlu0 %v2450
    %v2452 = vpop.xlane.xlu0 %2451
    %v2453 = vsel %vm2095, %v2086, 0.0
    %2454 = vadd.xlane.f32.xlu0 %v2453
    %v2455 = vpop.xlane.xlu0 %2454
    %v2456 = vsel %vm2095, %v2087, 0.0
    %2457 = vadd.xlane.f32.xlu0 %v2456
    %v2458 = vpop.xlane.xlu0 %2457
    %v2459 = vsel %vm2095, %v2088, 0.0
    %2460 = vadd.xlane.f32.xlu0 %v2459
    %v2461 = vpop.xlane.xlu0 %2460
    %v2462 = vsel %vm2095, %v2089, 0.0
    %2463 = vadd.xlane.f32.xlu0 %v2462
    %v2464 = vpop.xlane.xlu0 %2463
    %v2465 = vsel %vm2095, %v2090, 0.0
    %2466 = vadd.xlane.f32.xlu0 %v2465
    %v2467 = vpop.xlane.xlu0 %2466
    %v2468 = vsel %vm2095, %v2091, 0.0
    %2469 = vadd.xlane.f32.xlu0 %v2468
    %v2470 = vpop.xlane.xlu0 %2469
    %v2471 = vsel %vm2095, %v2092, 0.0
    %2472 = vadd.xlane.f32.xlu0 %v2471
    %v2473 = vpop.xlane.xlu0 %2472
    %v2474 = vsel %vm2095, %v2093, 0.0
    %2475 = vadd.xlane.f32.xlu0 %v2474
    %v2476 = vpop.xlane.xlu0 %2475
    %v2477 = vsel %vm2095, %v2094, 0.0
    %2478 = vadd.xlane.f32.xlu0 %v2477
    %v2479 = vpop.xlane.xlu0 %2478
    %s2480 = smul.u32 0, 128
    %v2609 = vlaneseq
    %v2610 = vand.u32 %v2609, 127
    %v2611 = vlaneseq
    %v2612 = vshrl.u32 %v2611, 7
    %v2613 = vsub.s32 %v2610, %v2612
    %v2614 = vrot.slane %v2098, %v2613
    %v2615 = vlaneseq
    %v2616 = vshrl.u32 %v2615, 7
    %v2617 = vsub.s32 %v2610, %v2616
    %v2618 = vrot.slane %v2101, %v2617
    %v2619 = vlaneseq
    %v2620 = vshrl.u32 %v2619, 7
    %v2621 = vsub.s32 %v2610, %v2620
    %v2622 = vrot.slane %v2104, %v2621
    %v2623 = vlaneseq
    %v2624 = vshrl.u32 %v2623, 7
    %v2625 = vsub.s32 %v2610, %v2624
    %v2626 = vrot.slane %v2107, %v2625
    %v2627 = vlaneseq
    %v2628 = vshrl.u32 %v2627, 7
    %v2629 = vsub.s32 %v2610, %v2628
    %v2630 = vrot.slane %v2110, %v2629
    %v2631 = vlaneseq
    %v2632 = vshrl.u32 %v2631, 7
    %v2633 = vsub.s32 %v2610, %v2632
    %v2634 = vrot.slane %v2113, %v2633
    %v2635 = vlaneseq
    %v2636 = vshrl.u32 %v2635, 7
    %v2637 = vsub.s32 %v2610, %v2636
    %v2638 = vrot.slane %v2116, %v2637
    %v2639 = vlaneseq
    %v2640 = vshrl.u32 %v2639, 7
    %v2641 = vsub.s32 %v2610, %v2640
    %v2642 = vrot.slane %v2119, %v2641
    %v2643 = vlaneseq
    %v2644 = vshrl.u32 %v2643, 7
    %v2645 = vsub.s32 %v2610, %v2644
    %v2646 = vrot.slane %v2122, %v2645
    %v2647 = vlaneseq
    %v2648 = vshrl.u32 %v2647, 7
    %v2649 = vsub.s32 %v2610, %v2648
    %v2650 = vrot.slane %v2125, %v2649
    %v2651 = vlaneseq
    %v2652 = vshrl.u32 %v2651, 7
    %v2653 = vsub.s32 %v2610, %v2652
    %v2654 = vrot.slane %v2128, %v2653
    %v2655 = vlaneseq
    %v2656 = vshrl.u32 %v2655, 7
    %v2657 = vsub.s32 %v2610, %v2656
    %v2658 = vrot.slane %v2131, %v2657
    %v2659 = vlaneseq
    %v2660 = vshrl.u32 %v2659, 7
    %v2661 = vsub.s32 %v2610, %v2660
    %v2662 = vrot.slane %v2134, %v2661
    %v2663 = vlaneseq
    %v2664 = vshrl.u32 %v2663, 7
    %v2665 = vsub.s32 %v2610, %v2664
    %v2666 = vrot.slane %v2137, %v2665
    %v2667 = vlaneseq
    %v2668 = vshrl.u32 %v2667, 7
    %v2669 = vsub.s32 %v2610, %v2668
    %v2670 = vrot.slane %v2140, %v2669
    %v2671 = vlaneseq
    %v2672 = vshrl.u32 %v2671, 7
    %v2673 = vsub.s32 %v2610, %v2672
    %v2674 = vrot.slane %v2143, %v2673
    %v2675 = vlaneseq
    %v2676 = vshrl.u32 %v2675, 7
    %v2677 = vsub.s32 %v2610, %v2676
    %v2678 = vrot.slane %v2146, %v2677
    %v2679 = vlaneseq
    %v2680 = vshrl.u32 %v2679, 7
    %v2681 = vsub.s32 %v2610, %v2680
    %v2682 = vrot.slane %v2149, %v2681
    %v2683 = vlaneseq
    %v2684 = vshrl.u32 %v2683, 7
    %v2685 = vsub.s32 %v2610, %v2684
    %v2686 = vrot.slane %v2152, %v2685
    %v2687 = vlaneseq
    %v2688 = vshrl.u32 %v2687, 7
    %v2689 = vsub.s32 %v2610, %v2688
    %v2690 = vrot.slane %v2155, %v2689
    %v2691 = vlaneseq
    %v2692 = vshrl.u32 %v2691, 7
    %v2693 = vsub.s32 %v2610, %v2692
    %v2694 = vrot.slane %v2158, %v2693
    %v2695 = vlaneseq
    %v2696 = vshrl.u32 %v2695, 7
    %v2697 = vsub.s32 %v2610, %v2696
    %v2698 = vrot.slane %v2161, %v2697
    %v2699 = vlaneseq
    %v2700 = vshrl.u32 %v2699, 7
    %v2701 = vsub.s32 %v2610, %v2700
    %v2702 = vrot.slane %v2164, %v2701
    %v2703 = vlaneseq
    %v2704 = vshrl.u32 %v2703, 7
    %v2705 = vsub.s32 %v2610, %v2704
    %v2706 = vrot.slane %v2167, %v2705
    %v2707 = vlaneseq
    %v2708 = vshrl.u32 %v2707, 7
    %v2709 = vsub.s32 %v2610, %v2708
    %v2710 = vrot.slane %v2170, %v2709
    %v2711 = vlaneseq
    %v2712 = vshrl.u32 %v2711, 7
    %v2713 = vsub.s32 %v2610, %v2712
    %v2714 = vrot.slane %v2173, %v2713
    %v2715 = vlaneseq
    %v2716 = vshrl.u32 %v2715, 7
    %v2717 = vsub.s32 %v2610, %v2716
    %v2718 = vrot.slane %v2176, %v2717
    %v2719 = vlaneseq
    %v2720 = vshrl.u32 %v2719, 7
    %v2721 = vsub.s32 %v2610, %v2720
    %v2722 = vrot.slane %v2179, %v2721
    %v2723 = vlaneseq
    %v2724 = vshrl.u32 %v2723, 7
    %v2725 = vsub.s32 %v2610, %v2724
    %v2726 = vrot.slane %v2182, %v2725
    %v2727 = vlaneseq
    %v2728 = vshrl.u32 %v2727, 7
    %v2729 = vsub.s32 %v2610, %v2728
    %v2730 = vrot.slane %v2185, %v2729
    %v2731 = vlaneseq
    %v2732 = vshrl.u32 %v2731, 7
    %v2733 = vsub.s32 %v2610, %v2732
    %v2734 = vrot.slane %v2188, %v2733
    %v2735 = vlaneseq
    %v2736 = vshrl.u32 %v2735, 7
    %v2737 = vsub.s32 %v2610, %v2736
    %v2738 = vrot.slane %v2191, %v2737
    %v2739 = vlaneseq
    %v2740 = vshrl.u32 %v2739, 7
    %v2741 = vsub.s32 %v2610, %v2740
    %v2742 = vrot.slane %v2194, %v2741
    %v2743 = vlaneseq
    %v2744 = vshrl.u32 %v2743, 7
    %v2745 = vsub.s32 %v2610, %v2744
    %v2746 = vrot.slane %v2197, %v2745
    %v2747 = vlaneseq
    %v2748 = vshrl.u32 %v2747, 7
    %v2749 = vsub.s32 %v2610, %v2748
    %v2750 = vrot.slane %v2200, %v2749
    %v2751 = vlaneseq
    %v2752 = vshrl.u32 %v2751, 7
    %v2753 = vsub.s32 %v2610, %v2752
    %v2754 = vrot.slane %v2203, %v2753
    %v2755 = vlaneseq
    %v2756 = vshrl.u32 %v2755, 7
    %v2757 = vsub.s32 %v2610, %v2756
    %v2758 = vrot.slane %v2206, %v2757
    %v2759 = vlaneseq
    %v2760 = vshrl.u32 %v2759, 7
    %v2761 = vsub.s32 %v2610, %v2760
    %v2762 = vrot.slane %v2209, %v2761
    %v2763 = vlaneseq
    %v2764 = vshrl.u32 %v2763, 7
    %v2765 = vsub.s32 %v2610, %v2764
    %v2766 = vrot.slane %v2212, %v2765
    %v2767 = vlaneseq
    %v2768 = vshrl.u32 %v2767, 7
    %v2769 = vsub.s32 %v2610, %v2768
    %v2770 = vrot.slane %v2215, %v2769
    %v2771 = vlaneseq
    %v2772 = vshrl.u32 %v2771, 7
    %v2773 = vsub.s32 %v2610, %v2772
    %v2774 = vrot.slane %v2218, %v2773
    %v2775 = vlaneseq
    %v2776 = vshrl.u32 %v2775, 7
    %v2777 = vsub.s32 %v2610, %v2776
    %v2778 = vrot.slane %v2221, %v2777
    %v2779 = vlaneseq
    %v2780 = vshrl.u32 %v2779, 7
    %v2781 = vsub.s32 %v2610, %v2780
    %v2782 = vrot.slane %v2224, %v2781
    %v2783 = vlaneseq
    %v2784 = vshrl.u32 %v2783, 7
    %v2785 = vsub.s32 %v2610, %v2784
    %v2786 = vrot.slane %v2227, %v2785
    %v2787 = vlaneseq
    %v2788 = vshrl.u32 %v2787, 7
    %v2789 = vsub.s32 %v2610, %v2788
    %v2790 = vrot.slane %v2230, %v2789
    %v2791 = vlaneseq
    %v2792 = vshrl.u32 %v2791, 7
    %v2793 = vsub.s32 %v2610, %v2792
    %v2794 = vrot.slane %v2233, %v2793
    %v2795 = vlaneseq
    %v2796 = vshrl.u32 %v2795, 7
    %v2797 = vsub.s32 %v2610, %v2796
    %v2798 = vrot.slane %v2236, %v2797
    %v2799 = vlaneseq
    %v2800 = vshrl.u32 %v2799, 7
    %v2801 = vsub.s32 %v2610, %v2800
    %v2802 = vrot.slane %v2239, %v2801
    %v2803 = vlaneseq
    %v2804 = vshrl.u32 %v2803, 7
    %v2805 = vsub.s32 %v2610, %v2804
    %v2806 = vrot.slane %v2242, %v2805
    %v2807 = vlaneseq
    %v2808 = vshrl.u32 %v2807, 7
    %v2809 = vsub.s32 %v2610, %v2808
    %v2810 = vrot.slane %v2245, %v2809
    %v2811 = vlaneseq
    %v2812 = vshrl.u32 %v2811, 7
    %v2813 = vsub.s32 %v2610, %v2812
    %v2814 = vrot.slane %v2248, %v2813
    %v2815 = vlaneseq
    %v2816 = vshrl.u32 %v2815, 7
    %v2817 = vsub.s32 %v2610, %v2816
    %v2818 = vrot.slane %v2251, %v2817
    %v2819 = vlaneseq
    %v2820 = vshrl.u32 %v2819, 7
    %v2821 = vsub.s32 %v2610, %v2820
    %v2822 = vrot.slane %v2254, %v2821
    %v2823 = vlaneseq
    %v2824 = vshrl.u32 %v2823, 7
    %v2825 = vsub.s32 %v2610, %v2824
    %v2826 = vrot.slane %v2257, %v2825
    %v2827 = vlaneseq
    %v2828 = vshrl.u32 %v2827, 7
    %v2829 = vsub.s32 %v2610, %v2828
    %v2830 = vrot.slane %v2260, %v2829
    %v2831 = vlaneseq
    %v2832 = vshrl.u32 %v2831, 7
    %v2833 = vsub.s32 %v2610, %v2832
    %v2834 = vrot.slane %v2263, %v2833
    %v2835 = vlaneseq
    %v2836 = vshrl.u32 %v2835, 7
    %v2837 = vsub.s32 %v2610, %v2836
    %v2838 = vrot.slane %v2266, %v2837
    %v2839 = vlaneseq
    %v2840 = vshrl.u32 %v2839, 7
    %v2841 = vsub.s32 %v2610, %v2840
    %v2842 = vrot.slane %v2269, %v2841
    %v2843 = vlaneseq
    %v2844 = vshrl.u32 %v2843, 7
    %v2845 = vsub.s32 %v2610, %v2844
    %v2846 = vrot.slane %v2272, %v2845
    %v2847 = vlaneseq
    %v2848 = vshrl.u32 %v2847, 7
    %v2849 = vsub.s32 %v2610, %v2848
    %v2850 = vrot.slane %v2275, %v2849
    %v2851 = vlaneseq
    %v2852 = vshrl.u32 %v2851, 7
    %v2853 = vsub.s32 %v2610, %v2852
    %v2854 = vrot.slane %v2278, %v2853
    %v2855 = vlaneseq
    %v2856 = vshrl.u32 %v2855, 7
    %v2857 = vsub.s32 %v2610, %v2856
    %v2858 = vrot.slane %v2281, %v2857
    %v2859 = vlaneseq
    %v2860 = vshrl.u32 %v2859, 7
    %v2861 = vsub.s32 %v2610, %v2860
    %v2862 = vrot.slane %v2284, %v2861
    %v2863 = vlaneseq
    %v2864 = vshrl.u32 %v2863, 7
    %v2865 = vsub.s32 %v2610, %v2864
    %v2866 = vrot.slane %v2287, %v2865
    %v2867 = vlaneseq
    %v2868 = vshrl.u32 %v2867, 7
    %v2869 = vsub.s32 %v2610, %v2868
    %v2870 = vrot.slane %v2290, %v2869
    %v2871 = vlaneseq
    %v2872 = vshrl.u32 %v2871, 7
    %v2873 = vsub.s32 %v2610, %v2872
    %v2874 = vrot.slane %v2293, %v2873
    %v2875 = vlaneseq
    %v2876 = vshrl.u32 %v2875, 7
    %v2877 = vsub.s32 %v2610, %v2876
    %v2878 = vrot.slane %v2296, %v2877
    %v2879 = vlaneseq
    %v2880 = vshrl.u32 %v2879, 7
    %v2881 = vsub.s32 %v2610, %v2880
    %v2882 = vrot.slane %v2299, %v2881
    %v2883 = vlaneseq
    %v2884 = vshrl.u32 %v2883, 7
    %v2885 = vsub.s32 %v2610, %v2884
    %v2886 = vrot.slane %v2302, %v2885
    %v2887 = vlaneseq
    %v2888 = vshrl.u32 %v2887, 7
    %v2889 = vsub.s32 %v2610, %v2888
    %v2890 = vrot.slane %v2305, %v2889
    %v2891 = vlaneseq
    %v2892 = vshrl.u32 %v2891, 7
    %v2893 = vsub.s32 %v2610, %v2892
    %v2894 = vrot.slane %v2308, %v2893
    %v2895 = vlaneseq
    %v2896 = vshrl.u32 %v2895, 7
    %v2897 = vsub.s32 %v2610, %v2896
    %v2898 = vrot.slane %v2311, %v2897
    %v2899 = vlaneseq
    %v2900 = vshrl.u32 %v2899, 7
    %v2901 = vsub.s32 %v2610, %v2900
    %v2902 = vrot.slane %v2314, %v2901
    %v2903 = vlaneseq
    %v2904 = vshrl.u32 %v2903, 7
    %v2905 = vsub.s32 %v2610, %v2904
    %v2906 = vrot.slane %v2317, %v2905
    %v2907 = vlaneseq
    %v2908 = vshrl.u32 %v2907, 7
    %v2909 = vsub.s32 %v2610, %v2908
    %v2910 = vrot.slane %v2320, %v2909
    %v2911 = vlaneseq
    %v2912 = vshrl.u32 %v2911, 7
    %v2913 = vsub.s32 %v2610, %v2912
    %v2914 = vrot.slane %v2323, %v2913
    %v2915 = vlaneseq
    %v2916 = vshrl.u32 %v2915, 7
    %v2917 = vsub.s32 %v2610, %v2916
    %v2918 = vrot.slane %v2326, %v2917
    %v2919 = vlaneseq
    %v2920 = vshrl.u32 %v2919, 7
    %v2921 = vsub.s32 %v2610, %v2920
    %v2922 = vrot.slane %v2329, %v2921
    %v2923 = vlaneseq
    %v2924 = vshrl.u32 %v2923, 7
    %v2925 = vsub.s32 %v2610, %v2924
    %v2926 = vrot.slane %v2332, %v2925
    %v2927 = vlaneseq
    %v2928 = vshrl.u32 %v2927, 7
    %v2929 = vsub.s32 %v2610, %v2928
    %v2930 = vrot.slane %v2335, %v2929
    %v2931 = vlaneseq
    %v2932 = vshrl.u32 %v2931, 7
    %v2933 = vsub.s32 %v2610, %v2932
    %v2934 = vrot.slane %v2338, %v2933
    %v2935 = vlaneseq
    %v2936 = vshrl.u32 %v2935, 7
    %v2937 = vsub.s32 %v2610, %v2936
    %v2938 = vrot.slane %v2341, %v2937
    %v2939 = vlaneseq
    %v2940 = vshrl.u32 %v2939, 7
    %v2941 = vsub.s32 %v2610, %v2940
    %v2942 = vrot.slane %v2344, %v2941
    %v2943 = vlaneseq
    %v2944 = vshrl.u32 %v2943, 7
    %v2945 = vsub.s32 %v2610, %v2944
    %v2946 = vrot.slane %v2347, %v2945
    %v2947 = vlaneseq
    %v2948 = vshrl.u32 %v2947, 7
    %v2949 = vsub.s32 %v2610, %v2948
    %v2950 = vrot.slane %v2350, %v2949
    %v2951 = vlaneseq
    %v2952 = vshrl.u32 %v2951, 7
    %v2953 = vsub.s32 %v2610, %v2952
    %v2954 = vrot.slane %v2353, %v2953
    %v2955 = vlaneseq
    %v2956 = vshrl.u32 %v2955, 7
    %v2957 = vsub.s32 %v2610, %v2956
    %v2958 = vrot.slane %v2356, %v2957
    %v2959 = vlaneseq
    %v2960 = vshrl.u32 %v2959, 7
    %v2961 = vsub.s32 %v2610, %v2960
    %v2962 = vrot.slane %v2359, %v2961
    %v2963 = vlaneseq
    %v2964 = vshrl.u32 %v2963, 7
    %v2965 = vsub.s32 %v2610, %v2964
    %v2966 = vrot.slane %v2362, %v2965
    %v2967 = vlaneseq
    %v2968 = vshrl.u32 %v2967, 7
    %v2969 = vsub.s32 %v2610, %v2968
    %v2970 = vrot.slane %v2365, %v2969
    %v2971 = vlaneseq
    %v2972 = vshrl.u32 %v2971, 7
    %v2973 = vsub.s32 %v2610, %v2972
    %v2974 = vrot.slane %v2368, %v2973
    %v2975 = vlaneseq
    %v2976 = vshrl.u32 %v2975, 7
    %v2977 = vsub.s32 %v2610, %v2976
    %v2978 = vrot.slane %v2371, %v2977
    %v2979 = vlaneseq
    %v2980 = vshrl.u32 %v2979, 7
    %v2981 = vsub.s32 %v2610, %v2980
    %v2982 = vrot.slane %v2374, %v2981
    %v2983 = vlaneseq
    %v2984 = vshrl.u32 %v2983, 7
    %v2985 = vsub.s32 %v2610, %v2984
    %v2986 = vrot.slane %v2377, %v2985
    %v2987 = vlaneseq
    %v2988 = vshrl.u32 %v2987, 7
    %v2989 = vsub.s32 %v2610, %v2988
    %v2990 = vrot.slane %v2380, %v2989
    %v2991 = vlaneseq
    %v2992 = vshrl.u32 %v2991, 7
    %v2993 = vsub.s32 %v2610, %v2992
    %v2994 = vrot.slane %v2383, %v2993
    %v2995 = vlaneseq
    %v2996 = vshrl.u32 %v2995, 7
    %v2997 = vsub.s32 %v2610, %v2996
    %v2998 = vrot.slane %v2386, %v2997
    %v2999 = vlaneseq
    %v3000 = vshrl.u32 %v2999, 7
    %v3001 = vsub.s32 %v2610, %v3000
    %v3002 = vrot.slane %v2389, %v3001
    %v3003 = vlaneseq
    %v3004 = vshrl.u32 %v3003, 7
    %v3005 = vsub.s32 %v2610, %v3004
    %v3006 = vrot.slane %v2392, %v3005
    %v3007 = vlaneseq
    %v3008 = vshrl.u32 %v3007, 7
    %v3009 = vsub.s32 %v2610, %v3008
    %v3010 = vrot.slane %v2395, %v3009
    %v3011 = vlaneseq
    %v3012 = vshrl.u32 %v3011, 7
    %v3013 = vsub.s32 %v2610, %v3012
    %v3014 = vrot.slane %v2398, %v3013
    %v3015 = vlaneseq
    %v3016 = vshrl.u32 %v3015, 7
    %v3017 = vsub.s32 %v2610, %v3016
    %v3018 = vrot.slane %v2401, %v3017
    %v3019 = vlaneseq
    %v3020 = vshrl.u32 %v3019, 7
    %v3021 = vsub.s32 %v2610, %v3020
    %v3022 = vrot.slane %v2404, %v3021
    %v3023 = vlaneseq
    %v3024 = vshrl.u32 %v3023, 7
    %v3025 = vsub.s32 %v2610, %v3024
    %v3026 = vrot.slane %v2407, %v3025
    %v3027 = vlaneseq
    %v3028 = vshrl.u32 %v3027, 7
    %v3029 = vsub.s32 %v2610, %v3028
    %v3030 = vrot.slane %v2410, %v3029
    %v3031 = vlaneseq
    %v3032 = vshrl.u32 %v3031, 7
    %v3033 = vsub.s32 %v2610, %v3032
    %v3034 = vrot.slane %v2413, %v3033
    %v3035 = vlaneseq
    %v3036 = vshrl.u32 %v3035, 7
    %v3037 = vsub.s32 %v2610, %v3036
    %v3038 = vrot.slane %v2416, %v3037
    %v3039 = vlaneseq
    %v3040 = vshrl.u32 %v3039, 7
    %v3041 = vsub.s32 %v2610, %v3040
    %v3042 = vrot.slane %v2419, %v3041
    %v3043 = vlaneseq
    %v3044 = vshrl.u32 %v3043, 7
    %v3045 = vsub.s32 %v2610, %v3044
    %v3046 = vrot.slane %v2422, %v3045
    %v3047 = vlaneseq
    %v3048 = vshrl.u32 %v3047, 7
    %v3049 = vsub.s32 %v2610, %v3048
    %v3050 = vrot.slane %v2425, %v3049
    %v3051 = vlaneseq
    %v3052 = vshrl.u32 %v3051, 7
    %v3053 = vsub.s32 %v2610, %v3052
    %v3054 = vrot.slane %v2428, %v3053
    %v3055 = vlaneseq
    %v3056 = vshrl.u32 %v3055, 7
    %v3057 = vsub.s32 %v2610, %v3056
    %v3058 = vrot.slane %v2431, %v3057
    %v3059 = vlaneseq
    %v3060 = vshrl.u32 %v3059, 7
    %v3061 = vsub.s32 %v2610, %v3060
    %v3062 = vrot.slane %v2434, %v3061
    %v3063 = vlaneseq
    %v3064 = vshrl.u32 %v3063, 7
    %v3065 = vsub.s32 %v2610, %v3064
    %v3066 = vrot.slane %v2437, %v3065
    %v3067 = vlaneseq
    %v3068 = vshrl.u32 %v3067, 7
    %v3069 = vsub.s32 %v2610, %v3068
    %v3070 = vrot.slane %v2440, %v3069
    %v3071 = vlaneseq
    %v3072 = vshrl.u32 %v3071, 7
    %v3073 = vsub.s32 %v2610, %v3072
    %v3074 = vrot.slane %v2443, %v3073
    %v3075 = vlaneseq
    %v3076 = vshrl.u32 %v3075, 7
    %v3077 = vsub.s32 %v2610, %v3076
    %v3078 = vrot.slane %v2446, %v3077
    %v3079 = vlaneseq
    %v3080 = vshrl.u32 %v3079, 7
    %v3081 = vsub.s32 %v2610, %v3080
    %v3082 = vrot.slane %v2449, %v3081
    %v3083 = vlaneseq
    %v3084 = vshrl.u32 %v3083, 7
    %v3085 = vsub.s32 %v2610, %v3084
    %v3086 = vrot.slane %v2452, %v3085
    %v3087 = vlaneseq
    %v3088 = vshrl.u32 %v3087, 7
    %v3089 = vsub.s32 %v2610, %v3088
    %v3090 = vrot.slane %v2455, %v3089
    %v3091 = vlaneseq
    %v3092 = vshrl.u32 %v3091, 7
    %v3093 = vsub.s32 %v2610, %v3092
    %v3094 = vrot.slane %v2458, %v3093
    %v3095 = vlaneseq
    %v3096 = vshrl.u32 %v3095, 7
    %v3097 = vsub.s32 %v2610, %v3096
    %v3098 = vrot.slane %v2461, %v3097
    %v3099 = vlaneseq
    %v3100 = vshrl.u32 %v3099, 7
    %v3101 = vsub.s32 %v2610, %v3100
    %v3102 = vrot.slane %v2464, %v3101
    %v3103 = vlaneseq
    %v3104 = vshrl.u32 %v3103, 7
    %v3105 = vsub.s32 %v2610, %v3104
    %v3106 = vrot.slane %v2467, %v3105
    %v3107 = vlaneseq
    %v3108 = vshrl.u32 %v3107, 7
    %v3109 = vsub.s32 %v2610, %v3108
    %v3110 = vrot.slane %v2470, %v3109
    %v3111 = vlaneseq
    %v3112 = vshrl.u32 %v3111, 7
    %v3113 = vsub.s32 %v2610, %v3112
    %v3114 = vrot.slane %v2473, %v3113
    %v3115 = vlaneseq
    %v3116 = vshrl.u32 %v3115, 7
    %v3117 = vsub.s32 %v2610, %v3116
    %v3118 = vrot.slane %v2476, %v3117
    %v3119 = vlaneseq
    %v3120 = vshrl.u32 %v3119, 7
    %v3121 = vsub.s32 %v2610, %v3120
    %v3122 = vrot.slane %v2479, %v3121
    %vm3123 = vcmask 1041409
    %v3124 = vsel %vm3123, %v2618, %v2614
    %vm3125 = vcmask 1042434
    %v3126 = vsel %vm3125, %v2622, %v3124
    %vm3127 = vcmask 1043459
    %v3128 = vsel %vm3127, %v2626, %v3126
    %vm3129 = vcmask 1044484
    %v3130 = vsel %vm3129, %v2630, %v3128
    %vm3131 = vcmask 1045509
    %v3132 = vsel %vm3131, %v2634, %v3130
    %vm3133 = vcmask 1046534
    %v3134 = vsel %vm3133, %v2638, %v3132
    %vm3135 = vcmask 1047559
    %v3136 = vsel %vm3135, %v2642, %v3134
    %v3137 = vsel %vm3123, %v2650, %v2646
    %v3138 = vsel %vm3125, %v2654, %v3137
    %v3139 = vsel %vm3127, %v2658, %v3138
    %v3140 = vsel %vm3129, %v2662, %v3139
    %v3141 = vsel %vm3131, %v2666, %v3140
    %v3142 = vsel %vm3133, %v2670, %v3141
    %v3143 = vsel %vm3135, %v2674, %v3142
    %v3144 = vsel %vm3123, %v2682, %v2678
    %v3145 = vsel %vm3125, %v2686, %v3144
    %v3146 = vsel %vm3127, %v2690, %v3145
    %v3147 = vsel %vm3129, %v2694, %v3146
    %v3148 = vsel %vm3131, %v2698, %v3147
    %v3149 = vsel %vm3133, %v2702, %v3148
    %v3150 = vsel %vm3135, %v2706, %v3149
    %v3151 = vsel %vm3123, %v2714, %v2710
    %v3152 = vsel %vm3125, %v2718, %v3151
    %v3153 = vsel %vm3127, %v2722, %v3152
    %v3154 = vsel %vm3129, %v2726, %v3153
    %v3155 = vsel %vm3131, %v2730, %v3154
    %v3156 = vsel %vm3133, %v2734, %v3155
    %v3157 = vsel %vm3135, %v2738, %v3156
    %v3158 = vsel %vm3123, %v2746, %v2742
    %v3159 = vsel %vm3125, %v2750, %v3158
    %v3160 = vsel %vm3127, %v2754, %v3159
    %v3161 = vsel %vm3129, %v2758, %v3160
    %v3162 = vsel %vm3131, %v2762, %v3161
    %v3163 = vsel %vm3133, %v2766, %v3162
    %v3164 = vsel %vm3135, %v2770, %v3163
    %v3165 = vsel %vm3123, %v2778, %v2774
    %v3166 = vsel %vm3125, %v2782, %v3165
    %v3167 = vsel %vm3127, %v2786, %v3166
    %v3168 = vsel %vm3129, %v2790, %v3167
    %v3169 = vsel %vm3131, %v2794, %v3168
    %v3170 = vsel %vm3133, %v2798, %v3169
    %v3171 = vsel %vm3135, %v2802, %v3170
    %v3172 = vsel %vm3123, %v2810, %v2806
    %v3173 = vsel %vm3125, %v2814, %v3172
    %v3174 = vsel %vm3127, %v2818, %v3173
    %v3175 = vsel %vm3129, %v2822, %v3174
    %v3176 = vsel %vm3131, %v2826, %v3175
    %v3177 = vsel %vm3133, %v2830, %v3176
    %v3178 = vsel %vm3135, %v2834, %v3177
    %v3179 = vsel %vm3123, %v2842, %v2838
    %v3180 = vsel %vm3125, %v2846, %v3179
    %v3181 = vsel %vm3127, %v2850, %v3180
    %v3182 = vsel %vm3129, %v2854, %v3181
    %v3183 = vsel %vm3131, %v2858, %v3182
    %v3184 = vsel %vm3133, %v2862, %v3183
    %v3185 = vsel %vm3135, %v2866, %v3184
    %v3186 = vsel %vm3123, %v2874, %v2870
    %v3187 = vsel %vm3125, %v2878, %v3186
    %v3188 = vsel %vm3127, %v2882, %v3187
    %v3189 = vsel %vm3129, %v2886, %v3188
    %v3190 = vsel %vm3131, %v2890, %v3189
    %v3191 = vsel %vm3133, %v2894, %v3190
    %v3192 = vsel %vm3135, %v2898, %v3191
    %v3193 = vsel %vm3123, %v2906, %v2902
    %v3194 = vsel %vm3125, %v2910, %v3193
    %v3195 = vsel %vm3127, %v2914, %v3194
    %v3196 = vsel %vm3129, %v2918, %v3195
    %v3197 = vsel %vm3131, %v2922, %v3196
    %v3198 = vsel %vm3133, %v2926, %v3197
    %v3199 = vsel %vm3135, %v2930, %v3198
    %v3200 = vsel %vm3123, %v2938, %v2934
    %v3201 = vsel %vm3125, %v2942, %v3200
    %v3202 = vsel %vm3127, %v2946, %v3201
    %v3203 = vsel %vm3129, %v2950, %v3202
    %v3204 = vsel %vm3131, %v2954, %v3203
    %v3205 = vsel %vm3133, %v2958, %v3204
    %v3206 = vsel %vm3135, %v2962, %v3205
    %v3207 = vsel %vm3123, %v2970, %v2966
    %v3208 = vsel %vm3125, %v2974, %v3207
    %v3209 = vsel %vm3127, %v2978, %v3208
    %v3210 = vsel %vm3129, %v2982, %v3209
    %v3211 = vsel %vm3131, %v2986, %v3210
    %v3212 = vsel %vm3133, %v2990, %v3211
    %v3213 = vsel %vm3135, %v2994, %v3212
    %v3214 = vsel %vm3123, %v3002, %v2998
    %v3215 = vsel %vm3125, %v3006, %v3214
    %v3216 = vsel %vm3127, %v3010, %v3215
    %v3217 = vsel %vm3129, %v3014, %v3216
    %v3218 = vsel %vm3131, %v3018, %v3217
    %v3219 = vsel %vm3133, %v3022, %v3218
    %v3220 = vsel %vm3135, %v3026, %v3219
    %v3221 = vsel %vm3123, %v3034, %v3030
    %v3222 = vsel %vm3125, %v3038, %v3221
    %v3223 = vsel %vm3127, %v3042, %v3222
    %v3224 = vsel %vm3129, %v3046, %v3223
    %v3225 = vsel %vm3131, %v3050, %v3224
    %v3226 = vsel %vm3133, %v3054, %v3225
    %v3227 = vsel %vm3135, %v3058, %v3226
    %v3228 = vsel %vm3123, %v3066, %v3062
    %v3229 = vsel %vm3125, %v3070, %v3228
    %v3230 = vsel %vm3127, %v3074, %v3229
    %v3231 = vsel %vm3129, %v3078, %v3230
    %v3232 = vsel %vm3131, %v3082, %v3231
    %v3233 = vsel %vm3133, %v3086, %v3232
    %v3234 = vsel %vm3135, %v3090, %v3233
    %v3235 = vsel %vm3123, %v3098, %v3094
    %v3236 = vsel %vm3125, %v3102, %v3235
    %v3237 = vsel %vm3127, %v3106, %v3236
    %v3238 = vsel %vm3129, %v3110, %v3237
    %v3239 = vsel %vm3131, %v3114, %v3238
    %v3240 = vsel %vm3133, %v3118, %v3239
    %v3241 = vsel %vm3135, %v3122, %v3240
    %3258 = vxpose.xlu0.b32.start [1/16] %v3136, 128
    %3259 = vxpose.xlu0.b32.cont [2/16] %v3143, 128
    %3260 = vxpose.xlu0.b32.cont [3/16] %v3150, 128
    %3261 = vxpose.xlu0.b32.cont [4/16] %v3157, 128
    %3262 = vxpose.xlu0.b32.cont [5/16] %v3164, 128
    %3263 = vxpose.xlu0.b32.cont [6/16] %v3171, 128
    %3264 = vxpose.xlu0.b32.cont [7/16] %v3178, 128
    %3265 = vxpose.xlu0.b32.cont [8/16] %v3185, 128
    %3266 = vxpose.xlu0.b32.cont [9/16] %v3192, 128
    %3267 = vxpose.xlu0.b32.cont [10/16] %v3199, 128
    %3268 = vxpose.xlu0.b32.cont [11/16] %v3206, 128
    %3269 = vxpose.xlu0.b32.cont [12/16] %v3213, 128
    %3270 = vxpose.xlu0.b32.cont [13/16] %v3220, 128
    %3271 = vxpose.xlu0.b32.cont [14/16] %v3227, 128
    %3272 = vxpose.xlu0.b32.cont [15/16] %v3234, 128
    %3273 = vxpose.xlu0.b32.end [16/16] %v3241, 128
    %v3274 = vpop.trf.xlu0
    %v3275 = vpop.trf.xlu0
    %v3276 = vpop.trf.xlu0
    %v3277 = vpop.trf.xlu0
    %v3278 = vpop.trf.xlu0
    %v3279 = vpop.trf.xlu0
    %v3280 = vpop.trf.xlu0
    %v3281 = vpop.trf.xlu0
    %v3282 = vpop.trf.xlu0
    %v3283 = vpop.trf.xlu0
    %v3284 = vpop.trf.xlu0
    %v3285 = vpop.trf.xlu0
    %v3286 = vpop.trf.xlu0
    %v3287 = vpop.trf.xlu0
    %v3288 = vpop.trf.xlu0
    %v3289 = vpop.trf.xlu0
    %s3290 = sshra.s32 %s2480, 7
    %s3291 = sand.u32 %s2480, 127
    %s3292 = scalar_lea.vmem [#allocation3], %s3290
    %3293 = vst [vmem:[%s3292] sm:$0xff] %v3274
    // Predicated region
    $region30: #{tpu_custom_call.1} parent=1 // pred_check
      %p3294 = pneg %p25
    $region31: #{tpu_custom_call.1} parent=1 // pred_check_branch
      %3296 = sbr.rel (%p3294) target = $region33
    $region32: #{tpu_custom_call.1} parent=1 // pred_region
      %v3297 = vld [vmem:[#allocation3] sm:$0xff]
      %vm3298 = vcmp.lt.s32.totalorder %v2610, 8
      %v3299 = vsel %vm3298, %v3297, -inf
      %3300 = vmax.xlane.f32.xlu0 %v3299
      %v3301 = vpop.xlane.xlu0 %3300
      %v3302 = vsub.f32 %v3299, %v3301
      %v3303 = vmul.f32 %v3302, 1.442695
      %v3304 = vpow.pop %v3303
      %3305 = vadd.xlane.f32.xlu0 %v3304
      %v3306 = vpop.xlane.xlu0 %3305
      %v3307 = vrcp.pop %v3306
      %v3308 = vmul.f32 %v3304, %v3307
      %3309 = vst [vmem:[#allocation4] sm:$0xff] %v3308
    $region33: #{tpu_custom_call.1} parent=1 // pred_fallthru
      _
    // Predicated region
    $region34: #{tpu_custom_call.1} parent=1 // pred_check
      _
    $region35: #{tpu_custom_call.1} parent=1 // pred_check_branch
      %3311 = sbr.rel (0) target = $region37
    $region36: #{tpu_custom_call.1} parent=1 // pred_region
      %s3313 = ssub.s32 128, 128
      %3314 = vsyncadd [#allocation5], %s3313
      %s3316 = sshll.u32 [#allocation4], 4
      %s3317 = int_to_ptr.vmem [resolvable:$true] %s3316
      %3319 = dma.vmem_to_hbm [thread:$0]  %s3317, 128, %s6, [#allocation5]
    $region37: #{tpu_custom_call.1} parent=1 // pred_fallthru
      _
    // Predicated region
    $region38: #{tpu_custom_call.1} parent=1 // pred_check
      _
    $region39: #{tpu_custom_call.1} parent=1 // pred_check_branch
      %3321 = sbr.rel (0) target = $region41
    $region40: #{tpu_custom_call.1} parent=1 // pred_region
      %3322 = dma.done [#allocation5], 128
    $region41: #{tpu_custom_call.1} parent=1 // pred_fallthru
      _
    %3323 = vsyncpa [#allocation5], 1

</llo_original>
